<compile_context>
chip_gen: v7x
topology: tpu7x:2x2x1
jax: 0.10.0
libtpu: 0.0.40
codegen_flags: <defaults>
</compile_context>

<pallas_src>
import functools

import jax
import jax.numpy as jnp
from jax import lax
from jax.experimental import pallas as pl
from jax.experimental.pallas import tpu as pltpu

# ---- model hyperparameters (num_layers=2 -> 4 Linear layers total) ----------
IN_CHANNELS = 16
HIDDEN = 32
OUT_CHANNELS = 1
NUM_LAYERS = 2            # number of hidden->hidden Linear+ReLU blocks

N = 128                   # number of edges (rows) for the demo run
MAX_TILE_N = 16384        # row-tile cap (≈12-14 MiB peak VMEM at this size)

# Weight-slab packing assumes all layer input dims are equal (2*16 == 32).
assert 2 * IN_CHANNELS == HIDDEN

_HIGHEST = jax.lax.Precision.HIGHEST
# Contract the feature axis of both operands: (H, C) x (TILE_N, C) -> (H, TILE_N).
_NT = (((1,), (1,)), ((), ()))


def link_predictor_kernel(xi_ref, xj_ref, w_ref, b_ref, o_ref):
    C, H = IN_CHANNELS, HIDDEN
    xi = xi_ref[...]                                   # (TILE_N, C), batch on sublanes
    xj = xj_ref[...]                                   # (TILE_N, C)

    # Static views into the packed parameter slabs (PyTorch (out, in) layout).
    w1a = w_ref[0:H, 0:C]                              # (H, C)  layer-1 weight, x_i half
    w1b = w_ref[0:H, C:2 * C]                          # (H, C)  layer-1 weight, x_j half
    w2 = w_ref[1 * H:2 * H, :]                         # (H, H)
    w3 = w_ref[2 * H:3 * H, :]                         # (H, H)
    w4 = w_ref[3 * H:3 * H + OUT_CHANNELS, :]          # (1, H)
    b1 = b_ref[:, 0:1]                                 # (H, 1) column-broadcast biases
    b2 = b_ref[:, 1:2]
    b3 = b_ref[:, 2:3]
    b4 = b_ref[0:OUT_CHANNELS, 3:4]                    # (1, 1)

    # Layer 1: concat + transpose folded into two NT matmuls. Result is the
    # lane-dense (H, TILE_N) activation used by all remaining layers.
    h = jnp.maximum(
        lax.dot_general(w1a, xi, _NT, precision=_HIGHEST,
                        preferred_element_type=jnp.float32)
        + lax.dot_general(w1b, xj, _NT, precision=_HIGHEST,
                          preferred_element_type=jnp.float32)
        + b1, 0.0)

    h = jnp.maximum(jnp.dot(w2, h, precision=_HIGHEST,
                            preferred_element_type=jnp.float32) + b2, 0.0)
    h = jnp.maximum(jnp.dot(w3, h, precision=_HIGHEST,
                            preferred_element_type=jnp.float32) + b3, 0.0)
    out = jnp.dot(w4, h, precision=_HIGHEST,
                  preferred_element_type=jnp.float32) + b4
    o_ref[...] = out.astype(o_ref.dtype)               # (1, TILE_N) unmasked store


def pack_params(params):
    """Pack 4 (W, b) pairs (PyTorch (out,in) layout) into two resident slabs.

    Called ONCE at setup time; the slabs are reused by every forward call.
    """
    (w1, b1), (w2, b2), (w3, b3), (w4, b4) = params
    w_slab = jnp.concatenate([w1, w2, w3, w4], axis=0)        # (3H+1, H)
    b4_col = jnp.zeros((HIDDEN,), jnp.float32).at[0].set(b4[0])
    b_slab = jnp.stack([b1, b2, b3, b4_col], axis=1)          # (H, 4)
    return w_slab, b_slab


def _choose_tile_n(n):
    """Largest 128-multiple divisor of n, capped so large N gets >= 2 tiles
    (lets 'parallel' shard across v7x's two TensorCores) and by MAX_TILE_N."""
    assert n % 128 == 0, "ragged N unsupported; pad rows to a multiple of 128"
    if n == 128:
        return 128
    cap = min(MAX_TILE_N, n // 2)
    best = 128
    t = 256
    while t <= cap:
        if n % t == 0:
            best = t
        t += 128
    return best


@jax.jit
def link_predictor(x_i, x_j, w_slab, b_slab):
    n, c = x_i.shape
    assert c == IN_CHANNELS and x_j.shape == (n, c)
    tile_n = _choose_tile_n(n)

    out_t = pl.pallas_call(
        link_predictor_kernel,
        out_shape=jax.ShapeDtypeStruct((OUT_CHANNELS, n), jnp.float32),
        grid=(n // tile_n,),
        in_specs=[
            pl.BlockSpec((tile_n, c), lambda i: (i, 0)),      # x_i tile (no concat/T)
            pl.BlockSpec((tile_n, c), lambda i: (i, 0)),      # x_j tile
            pl.BlockSpec(w_slab.shape, lambda i: (0, 0)),     # resident weight slab
            pl.BlockSpec(b_slab.shape, lambda i: (0, 0)),     # resident bias slab
        ],
        out_specs=pl.BlockSpec((OUT_CHANNELS, tile_n), lambda i: (0, i)),
        compiler_params=pltpu.CompilerParams(
            dimension_semantics=("parallel",),
            # Headroom for 16K-row tiles; default scoped VMEM on v5e (~16 MiB)
            # is too tight, and 48 MiB still fits under v7x's 64 MiB physical.
            vmem_limit_bytes=48 * 1024 * 1024),
    )(x_i, x_j, w_slab, b_slab)

    # (1, N) -> (N, 1): layout-only move for a size-1 dim (fused under jit).
    return out_t.T


def init_params(key):
    """Deterministic synthetic parameters in PyTorch nn.Linear (out,in) layout."""
    dims = [(HIDDEN, 2 * IN_CHANNELS)]
    for _ in range(NUM_LAYERS):
        dims.append((HIDDEN, HIDDEN))
    dims.append((OUT_CHANNELS, HIDDEN))

    params = []
    for (dout, din) in dims:
        key, kw, kb = jax.random.split(key, 3)
        scale = 1.0 / jnp.sqrt(jnp.float32(din))
        w = jax.random.uniform(kw, (dout, din), jnp.float32, -scale, scale)
        b = jax.random.uniform(kb, (dout,), jnp.float32, -scale, scale)
        params.append((w, b))
    return params


def reference(x_i, x_j, params):
    x = jnp.concatenate([x_i, x_j], axis=1)
    for (w, b) in params[:-1]:
        x = jnp.maximum(jnp.dot(x, w.T, precision=_HIGHEST) + b, 0.0)
    w, b = params[-1]
    return jnp.dot(x, w.T, precision=_HIGHEST) + b


if __name__ == "__main__":
    key = jax.random.PRNGKey(0)
    k_xi, k_xj, k_p = jax.random.split(key, 3)

    x_i = jax.random.normal(k_xi, (N, IN_CHANNELS), jnp.float32)
    x_j = jax.random.normal(k_xj, (N, IN_CHANNELS), jnp.float32)
    params = init_params(k_p)

    # Parameter packing hoisted out of the forward path: done exactly once.
    w_slab, b_slab = pack_params(params)
    w_slab, b_slab = jax.block_until_ready((w_slab, b_slab))

    out = jax.block_until_ready(link_predictor(x_i, x_j, w_slab, b_slab))
    ref = reference(x_i, x_j, params)

    assert out.shape == (N, OUT_CHANNELS)
    assert jnp.allclose(out, ref, atol=1e-4, rtol=1e-4), \
        float(jnp.max(jnp.abs(out - ref)))

    print("KERNEL_OK")
</pallas_src>

<mosaic_0001>
module attributes {stable_mosaic.version = 11 : i64} {
  func.func @link_predictor_kernel(%arg0: i32, %arg1: memref<128x16xf32, #tpu.memory_space<vmem>>, %arg2: memref<128x16xf32, #tpu.memory_space<vmem>>, %arg3: memref<97x32xf32, #tpu.memory_space<vmem>>, %arg4: memref<32x4xf32, #tpu.memory_space<vmem>>, %arg5: memref<1x128xf32, #tpu.memory_space<vmem>>) attributes {dimension_semantics = [#tpu.dimension_semantics<parallel>], iteration_bounds = array<i64: 1>, scalar_prefetch = 0 : i64, scratch_operands = 0 : i64, tpu.core_type = #tpu.core_type<tc>, window_params = [{transform_indices = @transform_0, window_bounds = array<i64: 128, 16>}, {transform_indices = @transform_1, window_bounds = array<i64: 128, 16>}, {pipeline_mode = #tpu.pipeline_mode<synchronous>, transform_indices = @transform_2, window_bounds = array<i64: 97, 32>}, {pipeline_mode = #tpu.pipeline_mode<synchronous>, transform_indices = @transform_3, window_bounds = array<i64: 32, 4>}, {transform_indices = @transform_4, window_bounds = array<i64: 1, 128>}]} {
    %c0 = arith.constant 0 : index
    %c0_0 = arith.constant 0 : index
    %0 = vector.load %arg1[%c0, %c0_0] : memref<128x16xf32, #tpu.memory_space<vmem>>, vector<128x16xf32>
    %c0_1 = arith.constant 0 : index
    %c0_2 = arith.constant 0 : index
    %1 = vector.load %arg2[%c0_1, %c0_2] : memref<128x16xf32, #tpu.memory_space<vmem>>, vector<128x16xf32>
    %c0_3 = arith.constant 0 : index
    %c0_4 = arith.constant 0 : index
    %2 = vector.load %arg3[%c0_3, %c0_4] : memref<97x32xf32, #tpu.memory_space<vmem>>, vector<32x16xf32>
    %c0_5 = arith.constant 0 : index
    %c16 = arith.constant 16 : index
    %3 = vector.load %arg3[%c0_5, %c16] : memref<97x32xf32, #tpu.memory_space<vmem>>, vector<32x16xf32>
    %c32 = arith.constant 32 : index
    %c0_6 = arith.constant 0 : index
    %4 = vector.load %arg3[%c32, %c0_6] : memref<97x32xf32, #tpu.memory_space<vmem>>, vector<32x32xf32>
    %c64 = arith.constant 64 : index
    %c0_7 = arith.constant 0 : index
    %5 = vector.load %arg3[%c64, %c0_7] : memref<97x32xf32, #tpu.memory_space<vmem>>, vector<32x32xf32>
    %c96 = arith.constant 96 : index
    %c0_8 = arith.constant 0 : index
    %6 = vector.load %arg3[%c96, %c0_8] : memref<97x32xf32, #tpu.memory_space<vmem>>, vector<1x32xf32>
    %c0_9 = arith.constant 0 : index
    %c0_10 = arith.constant 0 : index
    %7 = vector.load %arg4[%c0_9, %c0_10] : memref<32x4xf32, #tpu.memory_space<vmem>>, vector<32x1xf32>
    %c0_11 = arith.constant 0 : index
    %c1 = arith.constant 1 : index
    %8 = vector.load %arg4[%c0_11, %c1] : memref<32x4xf32, #tpu.memory_space<vmem>>, vector<32x1xf32>
    %c0_12 = arith.constant 0 : index
    %c2 = arith.constant 2 : index
    %9 = vector.load %arg4[%c0_12, %c2] : memref<32x4xf32, #tpu.memory_space<vmem>>, vector<32x1xf32>
    %c0_13 = arith.constant 0 : index
    %c3 = arith.constant 3 : index
    %10 = vector.load %arg4[%c0_13, %c3] : memref<32x4xf32, #tpu.memory_space<vmem>>, vector<1x1xf32>
    %cst = arith.constant dense<0.000000e+00> : vector<32x128xf32>
    %11 = tpu.matmul %2, %0, %cst {dimension_numbers = #tpu.dot_dimension_numbers<[1], [1], [0], [0], [0, 0, 1, 0], [], []>, precision = #tpu.contract_precision<fp32>} : vector<32x16xf32>, vector<128x16xf32>, vector<32x128xf32> -> vector<32x128xf32>
    %cst_14 = arith.constant dense<0.000000e+00> : vector<32x128xf32>
    %12 = tpu.matmul %3, %1, %cst_14 {dimension_numbers = #tpu.dot_dimension_numbers<[1], [1], [0], [0], [0, 0, 1, 0], [], []>, precision = #tpu.contract_precision<fp32>} : vector<32x16xf32>, vector<128x16xf32>, vector<32x128xf32> -> vector<32x128xf32>
    %13 = arith.addf %11, %12 : vector<32x128xf32>
    %14 = vector.broadcast %7 : vector<32x1xf32> to vector<32x128xf32>
    %15 = arith.addf %13, %14 : vector<32x128xf32>
    %cst_15 = arith.constant 0.000000e+00 : f32
    %16 = vector.broadcast %cst_15 : f32 to vector<32x128xf32>
    %17 = arith.maximumf %15, %16 : vector<32x128xf32>
    %cst_16 = arith.constant dense<0.000000e+00> : vector<32x128xf32>
    %18 = tpu.matmul %4, %17, %cst_16 {dimension_numbers = #tpu.dot_dimension_numbers<[1], [0], [0], [1], [0, 0, 1, 1], [], []>, precision = #tpu.contract_precision<fp32>} : vector<32x32xf32>, vector<32x128xf32>, vector<32x128xf32> -> vector<32x128xf32>
    %19 = vector.broadcast %8 : vector<32x1xf32> to vector<32x128xf32>
    %20 = arith.addf %18, %19 : vector<32x128xf32>
    %cst_17 = arith.constant 0.000000e+00 : f32
    %21 = vector.broadcast %cst_17 : f32 to vector<32x128xf32>
    %22 = arith.maximumf %20, %21 : vector<32x128xf32>
    %cst_18 = arith.constant dense<0.000000e+00> : vector<32x128xf32>
    %23 = tpu.matmul %5, %22, %cst_18 {dimension_numbers = #tpu.dot_dimension_numbers<[1], [0], [0], [1], [0, 0, 1, 1], [], []>, precision = #tpu.contract_precision<fp32>} : vector<32x32xf32>, vector<32x128xf32>, vector<32x128xf32> -> vector<32x128xf32>
    %24 = vector.broadcast %9 : vector<32x1xf32> to vector<32x128xf32>
    %25 = arith.addf %23, %24 : vector<32x128xf32>
    %cst_19 = arith.constant 0.000000e+00 : f32
    %26 = vector.broadcast %cst_19 : f32 to vector<32x128xf32>
    %27 = arith.maximumf %25, %26 : vector<32x128xf32>
    %cst_20 = arith.constant dense<0.000000e+00> : vector<1x128xf32>
    %28 = tpu.matmul %6, %27, %cst_20 {dimension_numbers = #tpu.dot_dimension_numbers<[1], [0], [0], [1], [0, 0, 1, 1], [], []>, precision = #tpu.contract_precision<fp32>} : vector<1x32xf32>, vector<32x128xf32>, vector<1x128xf32> -> vector<1x128xf32>
    %29 = vector.broadcast %10 : vector<1x1xf32> to vector<1x128xf32>
    %30 = arith.addf %28, %29 : vector<1x128xf32>
    %c0_21 = arith.constant 0 : index
    %c0_22 = arith.constant 0 : index
    %31 = vector.load %arg5[%c0_21, %c0_22] : memref<1x128xf32, #tpu.memory_space<vmem>>, vector<1x128xf32>
    tpu.vector_store %arg5[%c0_21, %c0_22], %30 {strides = array<i32>} : memref<1x128xf32, #tpu.memory_space<vmem>>, vector<1x128xf32>,
    return
  }
  func.func @transform_0(%arg0: i32) -> (i32, i32) {
    %c0_i32 = arith.constant 0 : i32
    %c0_i32_0 = arith.constant 0 : i32
    return %arg0, %c0_i32 : i32, i32
  }
  func.func @transform_1(%arg0: i32) -> (i32, i32) {
    %c0_i32 = arith.constant 0 : i32
    %c0_i32_0 = arith.constant 0 : i32
    return %arg0, %c0_i32 : i32, i32
  }
  func.func @transform_2(%arg0: i32) -> (i32, i32) {
    %c0_i32 = arith.constant 0 : i32
    %c0_i32_0 = arith.constant 0 : i32
    %c0_i32_1 = arith.constant 0 : i32
    return %c0_i32, %c0_i32_0 : i32, i32
  }
  func.func @transform_3(%arg0: i32) -> (i32, i32) {
    %c0_i32 = arith.constant 0 : i32
    %c0_i32_0 = arith.constant 0 : i32
    %c0_i32_1 = arith.constant 0 : i32
    return %c0_i32, %c0_i32_0 : i32, i32
  }
  func.func @transform_4(%arg0: i32) -> (i32, i32) {
    %c0_i32 = arith.constant 0 : i32
    %c0_i32_0 = arith.constant 0 : i32
    return %c0_i32, %arg0 : i32, i32
  }
}

</mosaic_0001>

<llo_original>
// kernel: link_predictor.1
$region0: #{link_predictor.1}
  #allocation0 [shape = 'u32[]', space=smem, size = 0x4, offset = 0x4, fixed_abs, tag = 'smem constant byte address 0x4 - core index']
  #allocation1 [shape = 'u32[144,128]{1,0:T(1,128)}', space=vmem, size = 0x12000, scoped, tag = 'internal scratch']
  %s0 = inlined_call_operand.vmem [shape: f32[128,16], index: 0, kind: input, shape index: {}]
  %s1 = inlined_call_operand.vmem [shape: f32[128,16], index: 1, kind: input, shape index: {}]
  %s2 = inlined_call_operand.vmem [shape: f32[97,32], index: 2, kind: input, shape index: {}]
  %s3 = inlined_call_operand.vmem [shape: f32[32,4], index: 3, kind: input, shape index: {}]
  %s4 = inlined_call_operand.hbm [shape: f32[1,128], index: 4, kind: output, shape index: {}]
  %s5 = sld [smem:[#allocation0]]
  $region26: #{link_predictor.1} parent=0
    _
  %s7 = ssub.s32 1, %s5
  %s8 = scalar_select 0, %s7, %s5
  $region1: #{link_predictor.1} parent=0
    #allocation2 [shape = 'u8[512]{0}', space=vmem, size = 0x400, scoped, tag = 'output window, operand 0, single buffered']
    #allocation3 [shape = 's32[1]{0}', space=sflag, size = 0x4, scoped, tag = 'scoped memory for link_predictor.1']
    %9 = vsyncpa [#allocation3], 0
    // Predicated region
    $region2: #{link_predictor.1} parent=1 // pred_check
      _
    $region3: #{link_predictor.1} parent=1 // pred_check_branch
      %11 = sbr.rel (0) target = $region5
    $region4: #{link_predictor.1} parent=1 // pred_region
      _
    $region5: #{link_predictor.1} parent=1 // pred_fallthru
      _
    // Predicated region
    $region6: #{link_predictor.1} parent=1 // pred_check
      _
    $region7: #{link_predictor.1} parent=1 // pred_check_branch
      %13 = sbr.rel (0) target = $region9
    $region8: #{link_predictor.1} parent=1 // pred_region
      _
    $region9: #{link_predictor.1} parent=1 // pred_fallthru
      _
    // Predicated region
    $region10: #{link_predictor.1} parent=1 // pred_check
      _
    $region11: #{link_predictor.1} parent=1 // pred_check_branch
      %15 = sbr.rel (0) target = $region13
    $region12: #{link_predictor.1} parent=1 // pred_region
      _
    $region13: #{link_predictor.1} parent=1 // pred_fallthru
      _
    // Predicated region
    $region14: #{link_predictor.1} parent=1 // pred_check
      _
    $region15: #{link_predictor.1} parent=1 // pred_check_branch
      %17 = sbr.rel (0) target = $region17
    $region16: #{link_predictor.1} parent=1 // pred_region
      _
    $region17: #{link_predictor.1} parent=1 // pred_fallthru
      _
    %v18 = vld [vmem:[%s0] sm:$0xff]
    %v19 = vld [vmem:[%s0 + $0x8] sm:$0xff]
    %v20 = vld [vmem:[%s0 + $0x10] sm:$0xff]
    %v21 = vld [vmem:[%s0 + $0x18] sm:$0xff]
    %v22 = vld [vmem:[%s0 + $0x20] sm:$0xff]
    %v23 = vld [vmem:[%s0 + $0x28] sm:$0xff]
    %v24 = vld [vmem:[%s0 + $0x30] sm:$0xff]
    %v25 = vld [vmem:[%s0 + $0x38] sm:$0xff]
    %v26 = vld [vmem:[%s0 + $0x40] sm:$0xff]
    %v27 = vld [vmem:[%s0 + $0x48] sm:$0xff]
    %v28 = vld [vmem:[%s0 + $0x50] sm:$0xff]
    %v29 = vld [vmem:[%s0 + $0x58] sm:$0xff]
    %v30 = vld [vmem:[%s0 + $0x60] sm:$0xff]
    %v31 = vld [vmem:[%s0 + $0x68] sm:$0xff]
    %v32 = vld [vmem:[%s0 + $0x70] sm:$0xff]
    %v33 = vld [vmem:[%s0 + $0x78] sm:$0xff]
    %v34 = vld [vmem:[%s1] sm:$0xff]
    %v35 = vld [vmem:[%s1 + $0x8] sm:$0xff]
    %v36 = vld [vmem:[%s1 + $0x10] sm:$0xff]
    %v37 = vld [vmem:[%s1 + $0x18] sm:$0xff]
    %v38 = vld [vmem:[%s1 + $0x20] sm:$0xff]
    %v39 = vld [vmem:[%s1 + $0x28] sm:$0xff]
    %v40 = vld [vmem:[%s1 + $0x30] sm:$0xff]
    %v41 = vld [vmem:[%s1 + $0x38] sm:$0xff]
    %v42 = vld [vmem:[%s1 + $0x40] sm:$0xff]
    %v43 = vld [vmem:[%s1 + $0x48] sm:$0xff]
    %v44 = vld [vmem:[%s1 + $0x50] sm:$0xff]
    %v45 = vld [vmem:[%s1 + $0x58] sm:$0xff]
    %v46 = vld [vmem:[%s1 + $0x60] sm:$0xff]
    %v47 = vld [vmem:[%s1 + $0x68] sm:$0xff]
    %v48 = vld [vmem:[%s1 + $0x70] sm:$0xff]
    %v49 = vld [vmem:[%s1 + $0x78] sm:$0xff]
    %v50 = vld [vmem:[%s2] sm:$0xff]
    %v51 = vld [vmem:[%s2 + $0x8] sm:$0xff]
    %v52 = vld [vmem:[%s2 + $0x10] sm:$0xff]
    %v53 = vld [vmem:[%s2 + $0x18] sm:$0xff]
    %v54 = vld [vmem:[%s2 + $0x20] sm:$0xff]
    %v55 = vld [vmem:[%s2 + $0x28] sm:$0xff]
    %v56 = vld [vmem:[%s2 + $0x30] sm:$0xff]
    %v57 = vld [vmem:[%s2 + $0x38] sm:$0xff]
    %v58 = vld [vmem:[%s2 + $0x40] sm:$0xff]
    %v59 = vld [vmem:[%s2 + $0x48] sm:$0xff]
    %v60 = vld [vmem:[%s2 + $0x50] sm:$0xff]
    %v61 = vld [vmem:[%s2 + $0x58] sm:$0xff]
    %v62 = vld [vmem:[%s2 + $0x60] sm:$0x1]
    %v63 = vld [vmem:[%s3] sm:$0xff]
    %v64 = vld [vmem:[%s3 + $0x8] sm:$0xff]
    %v65 = vld [vmem:[%s3 + $0x10] sm:$0xff]
    %v66 = vld [vmem:[%s3 + $0x18] sm:$0xff]
    %v67 = vld [vmem:[%s3] sm:$0x1]
    %72 = vrot.lane.b32.xlu0 %v50, 112
    %v73 = vpop.permute.xlu0 %72
    %74 = vrot.lane.b32.xlu0 %v51, 112
    %v75 = vpop.permute.xlu0 %74
    %76 = vrot.lane.b32.xlu0 %v52, 112
    %v77 = vpop.permute.xlu0 %76
    %78 = vrot.lane.b32.xlu0 %v53, 112
    %v79 = vpop.permute.xlu0 %78
    %vm80 = vcmask 130048
    %v81 = vsel %vm80, %v73, 0
    %v83 = vsel %vm80, %v75, 0
    %v85 = vsel %vm80, %v77, 0
    %v87 = vsel %vm80, %v79, 0
    %v90 = vsel %vm80, %v34, 0
    %v93 = vsel %vm80, %v35, 0
    %v96 = vsel %vm80, %v36, 0
    %v99 = vsel %vm80, %v37, 0
    %v102 = vsel %vm80, %v38, 0
    %v105 = vsel %vm80, %v39, 0
    %v108 = vsel %vm80, %v40, 0
    %v111 = vsel %vm80, %v41, 0
    %v114 = vsel %vm80, %v42, 0
    %v117 = vsel %vm80, %v43, 0
    %v120 = vsel %vm80, %v44, 0
    %v123 = vsel %vm80, %v45, 0
    %v126 = vsel %vm80, %v46, 0
    %v129 = vsel %vm80, %v47, 0
    %v132 = vsel %vm80, %v48, 0
    %v135 = vsel %vm80, %v49, 0
    %137 = vmatprep.subr.mxu0 0.0
    %v138 = vand.u32 %v90, 4294901760
    %139 = vmatpush1.xpose.msra.mxu0 %v138
    %140 = vmatprep.subr.mxu0 0.0
    %v141 = vand.u32 %v93, 4294901760
    %142 = vmatpush1.xpose.msra.mxu0 %v141
    %143 = vmatprep.subr.mxu0 0.0
    %v144 = vand.u32 %v96, 4294901760
    %145 = vmatpush1.xpose.msra.mxu0 %v144
    %146 = vmatprep.subr.mxu0 0.0
    %v147 = vand.u32 %v99, 4294901760
    %148 = vmatpush1.xpose.msra.mxu0 %v147
    %149 = vmatprep.subr.mxu0 0.0
    %v150 = vand.u32 %v102, 4294901760
    %151 = vmatpush1.xpose.msra.mxu0 %v150
    %152 = vmatprep.subr.mxu0 0.0
    %v153 = vand.u32 %v105, 4294901760
    %154 = vmatpush1.xpose.msra.mxu0 %v153
    %155 = vmatprep.subr.mxu0 0.0
    %v156 = vand.u32 %v108, 4294901760
    %157 = vmatpush1.xpose.msra.mxu0 %v156
    %158 = vmatprep.subr.mxu0 0.0
    %v159 = vand.u32 %v111, 4294901760
    %160 = vmatpush1.xpose.msra.mxu0 %v159
    %161 = vmatprep.subr.mxu0 0.0
    %v162 = vand.u32 %v114, 4294901760
    %163 = vmatpush1.xpose.msra.mxu0 %v162
    %164 = vmatprep.subr.mxu0 0.0
    %v165 = vand.u32 %v117, 4294901760
    %166 = vmatpush1.xpose.msra.mxu0 %v165
    %167 = vmatprep.subr.mxu0 0.0
    %v168 = vand.u32 %v120, 4294901760
    %169 = vmatpush1.xpose.msra.mxu0 %v168
    %170 = vmatprep.subr.mxu0 0.0
    %v171 = vand.u32 %v123, 4294901760
    %172 = vmatpush1.xpose.msra.mxu0 %v171
    %173 = vmatprep.subr.mxu0 0.0
    %v174 = vand.u32 %v126, 4294901760
    %175 = vmatpush1.xpose.msra.mxu0 %v174
    %176 = vmatprep.subr.mxu0 0.0
    %v177 = vand.u32 %v129, 4294901760
    %178 = vmatpush1.xpose.msra.mxu0 %v177
    %179 = vmatprep.subr.mxu0 0.0
    %v180 = vand.u32 %v132, 4294901760
    %181 = vmatpush1.xpose.msra.mxu0 %v180
    %182 = vmatprep.subr.mxu0 0.0
    %v183 = vand.u32 %v135, 4294901760
    %184 = vmatpush1.xpose.msra.mxu0 %v183
    %185 = vmatprep.subr.mxu0 0.0
    %186 = vmatpush1.xpose.msra.mxu0 0.0
    %187 = vmatprep.subr.mxu0 0.0
    %188 = vmatpush1.xpose.msra.mxu0 0.0
    %189 = vmatprep.subr.mxu0 0.0
    %190 = vmatpush1.xpose.msra.mxu0 0.0
    %191 = vmatprep.subr.mxu0 0.0
    %192 = vmatpush1.xpose.msra.mxu0 0.0
    %193 = vmatprep.subr.mxu0 0.0
    %194 = vmatpush1.xpose.msra.mxu0 0.0
    %195 = vmatprep.subr.mxu0 0.0
    %196 = vmatpush1.xpose.msra.mxu0 0.0
    %197 = vmatprep.subr.mxu0 0.0
    %198 = vmatpush1.xpose.msra.mxu0 0.0
    %199 = vmatprep.subr.mxu0 0.0
    %200 = vmatpush1.xpose.msra.mxu0 0.0
    %201 = vmatprep.subr.mxu0 0.0
    %202 = vmatpush1.xpose.msra.mxu0 0.0
    %203 = vmatprep.subr.mxu0 0.0
    %204 = vmatpush1.xpose.msra.mxu0 0.0
    %205 = vmatprep.subr.mxu0 0.0
    %206 = vmatpush1.xpose.msra.mxu0 0.0
    %207 = vmatprep.subr.mxu0 0.0
    %208 = vmatpush1.xpose.msra.mxu0 0.0
    %209 = vmatprep.subr.mxu0 0.0
    %210 = vmatpush1.xpose.msra.mxu0 0.0
    %211 = vmatprep.subr.mxu0 0.0
    %212 = vmatpush1.xpose.msra.mxu0 0.0
    %213 = vmatprep.subr.mxu0 0.0
    %214 = vmatpush1.xpose.msra.mxu0 0.0
    %215 = vmatprep.subr.mxu0 0.0
    %216 = vmatpush1.xpose.msra.mxu0 0.0
    %217 = vmatprep.mubr.f32.mxu0 0.0
    %v218 = vand.u32 %v81, 4294901760
    %v219 = vsub.f32 %v81, %v218
    %v220 = vand.u32 %v219, 4294901760
    %v221 = vsub.f32 %v219, %v220
    %v222 = vand.u32 %v221, 4294901760
    %223 = vmatmul.mubr.f32.gmra.mrb[0].mxu0 %v222
    %v224 = vpop.f32.mrb[0].mxu0
    %v225 = vadd.f32 0.0, %v224
    %v226 = vpop.f32.mrb[0].mxu0
    %227 = vmatprep.mubr.f32.mxu0 0.0
    %v228 = vand.u32 %v83, 4294901760
    %v229 = vsub.f32 %v83, %v228
    %v230 = vand.u32 %v229, 4294901760
    %v231 = vsub.f32 %v229, %v230
    %v232 = vand.u32 %v231, 4294901760
    %233 = vmatmul.mubr.f32.gmra.mrb[0].mxu0 %v232
    %v234 = vpop.f32.mrb[0].mxu0
    %v235 = vadd.f32 0.0, %v234
    %v236 = vpop.f32.mrb[0].mxu0
    %237 = vmatprep.mubr.f32.mxu0 0.0
    %v238 = vand.u32 %v85, 4294901760
    %v239 = vsub.f32 %v85, %v238
    %v240 = vand.u32 %v239, 4294901760
    %v241 = vsub.f32 %v239, %v240
    %v242 = vand.u32 %v241, 4294901760
    %243 = vmatmul.mubr.f32.gmra.mrb[0].mxu0 %v242
    %v244 = vpop.f32.mrb[0].mxu0
    %v245 = vadd.f32 0.0, %v244
    %v246 = vpop.f32.mrb[0].mxu0
    %247 = vmatprep.mubr.f32.mxu0 0.0
    %v248 = vand.u32 %v87, 4294901760
    %v249 = vsub.f32 %v87, %v248
    %v250 = vand.u32 %v249, 4294901760
    %v251 = vsub.f32 %v249, %v250
    %v252 = vand.u32 %v251, 4294901760
    %253 = vmatmul.mubr.f32.gmra.mrb[0].mxu0 %v252
    %v254 = vpop.f32.mrb[0].mxu0
    %v255 = vadd.f32 0.0, %v254
    %v256 = vpop.f32.mrb[0].mxu0
    %257 = vdwg.mxu0
    %258 = vmatprep.subr.mxu0 0.0
    %v259 = vand.u32 %v90, 4294901760
    %v260 = vsub.f32 %v90, %v259
    %v261 = vand.u32 %v260, 4294901760
    %v262 = vsub.f32 %v260, %v261
    %v263 = vand.u32 %v262, 4294901760
    %264 = vmatpush1.xpose.msra.mxu0 %v263
    %265 = vmatprep.subr.mxu0 0.0
    %v266 = vand.u32 %v93, 4294901760
    %v267 = vsub.f32 %v93, %v266
    %v268 = vand.u32 %v267, 4294901760
    %v269 = vsub.f32 %v267, %v268
    %v270 = vand.u32 %v269, 4294901760
    %271 = vmatpush1.xpose.msra.mxu0 %v270
    %272 = vmatprep.subr.mxu0 0.0
    %v273 = vand.u32 %v96, 4294901760
    %v274 = vsub.f32 %v96, %v273
    %v275 = vand.u32 %v274, 4294901760
    %v276 = vsub.f32 %v274, %v275
    %v277 = vand.u32 %v276, 4294901760
    %278 = vmatpush1.xpose.msra.mxu0 %v277
    %279 = vmatprep.subr.mxu0 0.0
    %v280 = vand.u32 %v99, 4294901760
    %v281 = vsub.f32 %v99, %v280
    %v282 = vand.u32 %v281, 4294901760
    %v283 = vsub.f32 %v281, %v282
    %v284 = vand.u32 %v283, 4294901760
    %285 = vmatpush1.xpose.msra.mxu0 %v284
    %286 = vmatprep.subr.mxu0 0.0
    %v287 = vand.u32 %v102, 4294901760
    %v288 = vsub.f32 %v102, %v287
    %v289 = vand.u32 %v288, 4294901760
    %v290 = vsub.f32 %v288, %v289
    %v291 = vand.u32 %v290, 4294901760
    %292 = vmatpush1.xpose.msra.mxu0 %v291
    %293 = vmatprep.subr.mxu0 0.0
    %v294 = vand.u32 %v105, 4294901760
    %v295 = vsub.f32 %v105, %v294
    %v296 = vand.u32 %v295, 4294901760
    %v297 = vsub.f32 %v295, %v296
    %v298 = vand.u32 %v297, 4294901760
    %299 = vmatpush1.xpose.msra.mxu0 %v298
    %300 = vmatprep.subr.mxu0 0.0
    %v301 = vand.u32 %v108, 4294901760
    %v302 = vsub.f32 %v108, %v301
    %v303 = vand.u32 %v302, 4294901760
    %v304 = vsub.f32 %v302, %v303
    %v305 = vand.u32 %v304, 4294901760
    %306 = vmatpush1.xpose.msra.mxu0 %v305
    %307 = vmatprep.subr.mxu0 0.0
    %v308 = vand.u32 %v111, 4294901760
    %v309 = vsub.f32 %v111, %v308
    %v310 = vand.u32 %v309, 4294901760
    %v311 = vsub.f32 %v309, %v310
    %v312 = vand.u32 %v311, 4294901760
    %313 = vmatpush1.xpose.msra.mxu0 %v312
    %314 = vmatprep.subr.mxu0 0.0
    %v315 = vand.u32 %v114, 4294901760
    %v316 = vsub.f32 %v114, %v315
    %v317 = vand.u32 %v316, 4294901760
    %v318 = vsub.f32 %v316, %v317
    %v319 = vand.u32 %v318, 4294901760
    %320 = vmatpush1.xpose.msra.mxu0 %v319
    %321 = vmatprep.subr.mxu0 0.0
    %v322 = vand.u32 %v117, 4294901760
    %v323 = vsub.f32 %v117, %v322
    %v324 = vand.u32 %v323, 4294901760
    %v325 = vsub.f32 %v323, %v324
    %v326 = vand.u32 %v325, 4294901760
    %327 = vmatpush1.xpose.msra.mxu0 %v326
    %328 = vmatprep.subr.mxu0 0.0
    %v329 = vand.u32 %v120, 4294901760
    %v330 = vsub.f32 %v120, %v329
    %v331 = vand.u32 %v330, 4294901760
    %v332 = vsub.f32 %v330, %v331
    %v333 = vand.u32 %v332, 4294901760
    %334 = vmatpush1.xpose.msra.mxu0 %v333
    %335 = vmatprep.subr.mxu0 0.0
    %v336 = vand.u32 %v123, 4294901760
    %v337 = vsub.f32 %v123, %v336
    %v338 = vand.u32 %v337, 4294901760
    %v339 = vsub.f32 %v337, %v338
    %v340 = vand.u32 %v339, 4294901760
    %341 = vmatpush1.xpose.msra.mxu0 %v340
    %342 = vmatprep.subr.mxu0 0.0
    %v343 = vand.u32 %v126, 4294901760
    %v344 = vsub.f32 %v126, %v343
    %v345 = vand.u32 %v344, 4294901760
    %v346 = vsub.f32 %v344, %v345
    %v347 = vand.u32 %v346, 4294901760
    %348 = vmatpush1.xpose.msra.mxu0 %v347
    %349 = vmatprep.subr.mxu0 0.0
    %v350 = vand.u32 %v129, 4294901760
    %v351 = vsub.f32 %v129, %v350
    %v352 = vand.u32 %v351, 4294901760
    %v353 = vsub.f32 %v351, %v352
    %v354 = vand.u32 %v353, 4294901760
    %355 = vmatpush1.xpose.msra.mxu0 %v354
    %356 = vmatprep.subr.mxu0 0.0
    %v357 = vand.u32 %v132, 4294901760
    %v358 = vsub.f32 %v132, %v357
    %v359 = vand.u32 %v358, 4294901760
    %v360 = vsub.f32 %v358, %v359
    %v361 = vand.u32 %v360, 4294901760
    %362 = vmatpush1.xpose.msra.mxu0 %v361
    %363 = vmatprep.subr.mxu0 0.0
    %v364 = vand.u32 %v135, 4294901760
    %v365 = vsub.f32 %v135, %v364
    %v366 = vand.u32 %v365, 4294901760
    %v367 = vsub.f32 %v365, %v366
    %v368 = vand.u32 %v367, 4294901760
    %369 = vmatpush1.xpose.msra.mxu0 %v368
    %370 = vmatprep.subr.mxu0 0.0
    %371 = vmatpush1.xpose.msra.mxu0 0.0
    %372 = vmatprep.subr.mxu0 0.0
    %373 = vmatpush1.xpose.msra.mxu0 0.0
    %374 = vmatprep.subr.mxu0 0.0
    %375 = vmatpush1.xpose.msra.mxu0 0.0
    %376 = vmatprep.subr.mxu0 0.0
    %377 = vmatpush1.xpose.msra.mxu0 0.0
    %378 = vmatprep.subr.mxu0 0.0
    %379 = vmatpush1.xpose.msra.mxu0 0.0
    %380 = vmatprep.subr.mxu0 0.0
    %381 = vmatpush1.xpose.msra.mxu0 0.0
    %382 = vmatprep.subr.mxu0 0.0
    %383 = vmatpush1.xpose.msra.mxu0 0.0
    %384 = vmatprep.subr.mxu0 0.0
    %385 = vmatpush1.xpose.msra.mxu0 0.0
    %386 = vmatprep.subr.mxu0 0.0
    %387 = vmatpush1.xpose.msra.mxu0 0.0
    %388 = vmatprep.subr.mxu0 0.0
    %389 = vmatpush1.xpose.msra.mxu0 0.0
    %390 = vmatprep.subr.mxu0 0.0
    %391 = vmatpush1.xpose.msra.mxu0 0.0
    %392 = vmatprep.subr.mxu0 0.0
    %393 = vmatpush1.xpose.msra.mxu0 0.0
    %394 = vmatprep.subr.mxu0 0.0
    %395 = vmatpush1.xpose.msra.mxu0 0.0
    %396 = vmatprep.subr.mxu0 0.0
    %397 = vmatpush1.xpose.msra.mxu0 0.0
    %398 = vmatprep.subr.mxu0 0.0
    %399 = vmatpush1.xpose.msra.mxu0 0.0
    %400 = vmatprep.subr.mxu0 0.0
    %401 = vmatpush1.xpose.msra.mxu0 0.0
    %402 = vmatprep.mubr.f32.mxu0 0.0
    %v403 = vand.u32 %v81, 4294901760
    %404 = vmatmul.mubr.f32.gmra.mrb[0].mxu0 %v403
    %v405 = vpop.f32.mrb[0].mxu0
    %v406 = vadd.f32 %v225, %v405
    %v407 = vpop.f32.mrb[0].mxu0
    %408 = vmatprep.mubr.f32.mxu0 0.0
    %v409 = vand.u32 %v83, 4294901760
    %410 = vmatmul.mubr.f32.gmra.mrb[0].mxu0 %v409
    %v411 = vpop.f32.mrb[0].mxu0
    %v412 = vadd.f32 %v235, %v411
    %v413 = vpop.f32.mrb[0].mxu0
    %414 = vmatprep.mubr.f32.mxu0 0.0
    %v415 = vand.u32 %v85, 4294901760
    %416 = vmatmul.mubr.f32.gmra.mrb[0].mxu0 %v415
    %v417 = vpop.f32.mrb[0].mxu0
    %v418 = vadd.f32 %v245, %v417
    %v419 = vpop.f32.mrb[0].mxu0
    %420 = vmatprep.mubr.f32.mxu0 0.0
    %v421 = vand.u32 %v87, 4294901760
    %422 = vmatmul.mubr.f32.gmra.mrb[0].mxu0 %v421
    %v423 = vpop.f32.mrb[0].mxu0
    %v424 = vadd.f32 %v255, %v423
    %v425 = vpop.f32.mrb[0].mxu0
    %426 = vdwg.mxu0
    %427 = vmatprep.subr.mxu0 0.0
    %v428 = vand.u32 %v90, 4294901760
    %v429 = vsub.f32 %v90, %v428
    %430 = vmatpush1.xpose.msra.mxu0 %v429
    %431 = vmatprep.subr.mxu0 0.0
    %v432 = vand.u32 %v93, 4294901760
    %v433 = vsub.f32 %v93, %v432
    %434 = vmatpush1.xpose.msra.mxu0 %v433
    %435 = vmatprep.subr.mxu0 0.0
    %v436 = vand.u32 %v96, 4294901760
    %v437 = vsub.f32 %v96, %v436
    %438 = vmatpush1.xpose.msra.mxu0 %v437
    %439 = vmatprep.subr.mxu0 0.0
    %v440 = vand.u32 %v99, 4294901760
    %v441 = vsub.f32 %v99, %v440
    %442 = vmatpush1.xpose.msra.mxu0 %v441
    %443 = vmatprep.subr.mxu0 0.0
    %v444 = vand.u32 %v102, 4294901760
    %v445 = vsub.f32 %v102, %v444
    %446 = vmatpush1.xpose.msra.mxu0 %v445
    %447 = vmatprep.subr.mxu0 0.0
    %v448 = vand.u32 %v105, 4294901760
    %v449 = vsub.f32 %v105, %v448
    %450 = vmatpush1.xpose.msra.mxu0 %v449
    %451 = vmatprep.subr.mxu0 0.0
    %v452 = vand.u32 %v108, 4294901760
    %v453 = vsub.f32 %v108, %v452
    %454 = vmatpush1.xpose.msra.mxu0 %v453
    %455 = vmatprep.subr.mxu0 0.0
    %v456 = vand.u32 %v111, 4294901760
    %v457 = vsub.f32 %v111, %v456
    %458 = vmatpush1.xpose.msra.mxu0 %v457
    %459 = vmatprep.subr.mxu0 0.0
    %v460 = vand.u32 %v114, 4294901760
    %v461 = vsub.f32 %v114, %v460
    %462 = vmatpush1.xpose.msra.mxu0 %v461
    %463 = vmatprep.subr.mxu0 0.0
    %v464 = vand.u32 %v117, 4294901760
    %v465 = vsub.f32 %v117, %v464
    %466 = vmatpush1.xpose.msra.mxu0 %v465
    %467 = vmatprep.subr.mxu0 0.0
    %v468 = vand.u32 %v120, 4294901760
    %v469 = vsub.f32 %v120, %v468
    %470 = vmatpush1.xpose.msra.mxu0 %v469
    %471 = vmatprep.subr.mxu0 0.0
    %v472 = vand.u32 %v123, 4294901760
    %v473 = vsub.f32 %v123, %v472
    %474 = vmatpush1.xpose.msra.mxu0 %v473
    %475 = vmatprep.subr.mxu0 0.0
    %v476 = vand.u32 %v126, 4294901760
    %v477 = vsub.f32 %v126, %v476
    %478 = vmatpush1.xpose.msra.mxu0 %v477
    %479 = vmatprep.subr.mxu0 0.0
    %v480 = vand.u32 %v129, 4294901760
    %v481 = vsub.f32 %v129, %v480
    %482 = vmatpush1.xpose.msra.mxu0 %v481
    %483 = vmatprep.subr.mxu0 0.0
    %v484 = vand.u32 %v132, 4294901760
    %v485 = vsub.f32 %v132, %v484
    %486 = vmatpush1.xpose.msra.mxu0 %v485
    %487 = vmatprep.subr.mxu0 0.0
    %v488 = vand.u32 %v135, 4294901760
    %v489 = vsub.f32 %v135, %v488
    %490 = vmatpush1.xpose.msra.mxu0 %v489
    %491 = vmatprep.subr.mxu0 0.0
    %492 = vmatpush1.xpose.msra.mxu0 0.0
    %493 = vmatprep.subr.mxu0 0.0
    %494 = vmatpush1.xpose.msra.mxu0 0.0
    %495 = vmatprep.subr.mxu0 0.0
    %496 = vmatpush1.xpose.msra.mxu0 0.0
    %497 = vmatprep.subr.mxu0 0.0
    %498 = vmatpush1.xpose.msra.mxu0 0.0
    %499 = vmatprep.subr.mxu0 0.0
    %500 = vmatpush1.xpose.msra.mxu0 0.0
    %501 = vmatprep.subr.mxu0 0.0
    %502 = vmatpush1.xpose.msra.mxu0 0.0
    %503 = vmatprep.subr.mxu0 0.0
    %504 = vmatpush1.xpose.msra.mxu0 0.0
    %505 = vmatprep.subr.mxu0 0.0
    %506 = vmatpush1.xpose.msra.mxu0 0.0
    %507 = vmatprep.subr.mxu0 0.0
    %508 = vmatpush1.xpose.msra.mxu0 0.0
    %509 = vmatprep.subr.mxu0 0.0
    %510 = vmatpush1.xpose.msra.mxu0 0.0
    %511 = vmatprep.subr.mxu0 0.0
    %512 = vmatpush1.xpose.msra.mxu0 0.0
    %513 = vmatprep.subr.mxu0 0.0
    %514 = vmatpush1.xpose.msra.mxu0 0.0
    %515 = vmatprep.subr.mxu0 0.0
    %516 = vmatpush1.xpose.msra.mxu0 0.0
    %517 = vmatprep.subr.mxu0 0.0
    %518 = vmatpush1.xpose.msra.mxu0 0.0
    %519 = vmatprep.subr.mxu0 0.0
    %520 = vmatpush1.xpose.msra.mxu0 0.0
    %521 = vmatprep.subr.mxu0 0.0
    %522 = vmatpush1.xpose.msra.mxu0 0.0
    %523 = vmatprep.mubr.f32.mxu0 0.0
    %v524 = vand.u32 %v81, 4294901760
    %v525 = vsub.f32 %v81, %v524
    %526 = vmatmul.mubr.f32.gmra.mrb[0].mxu0 %v525
    %v527 = vpop.f32.mrb[0].mxu0
    %v528 = vadd.f32 %v406, %v527
    %v529 = vpop.f32.mrb[0].mxu0
    %530 = vmatprep.mubr.f32.mxu0 0.0
    %v531 = vand.u32 %v83, 4294901760
    %v532 = vsub.f32 %v83, %v531
    %533 = vmatmul.mubr.f32.gmra.mrb[0].mxu0 %v532
    %v534 = vpop.f32.mrb[0].mxu0
    %v535 = vadd.f32 %v412, %v534
    %v536 = vpop.f32.mrb[0].mxu0
    %537 = vmatprep.mubr.f32.mxu0 0.0
    %v538 = vand.u32 %v85, 4294901760
    %v539 = vsub.f32 %v85, %v538
    %540 = vmatmul.mubr.f32.gmra.mrb[0].mxu0 %v539
    %v541 = vpop.f32.mrb[0].mxu0
    %v542 = vadd.f32 %v418, %v541
    %v543 = vpop.f32.mrb[0].mxu0
    %544 = vmatprep.mubr.f32.mxu0 0.0
    %v545 = vand.u32 %v87, 4294901760
    %v546 = vsub.f32 %v87, %v545
    %547 = vmatmul.mubr.f32.gmra.mrb[0].mxu0 %v546
    %v548 = vpop.f32.mrb[0].mxu0
    %v549 = vadd.f32 %v424, %v548
    %v550 = vpop.f32.mrb[0].mxu0
    %551 = vdwg.mxu0
    %552 = vmatprep.subr.mxu0 0.0
    %v553 = vand.u32 %v90, 4294901760
    %554 = vmatpush1.xpose.msra.mxu0 %v553
    %555 = vmatprep.subr.mxu0 0.0
    %v556 = vand.u32 %v93, 4294901760
    %557 = vmatpush1.xpose.msra.mxu0 %v556
    %558 = vmatprep.subr.mxu0 0.0
    %v559 = vand.u32 %v96, 4294901760
    %560 = vmatpush1.xpose.msra.mxu0 %v559
    %561 = vmatprep.subr.mxu0 0.0
    %v562 = vand.u32 %v99, 4294901760
    %563 = vmatpush1.xpose.msra.mxu0 %v562
    %564 = vmatprep.subr.mxu0 0.0
    %v565 = vand.u32 %v102, 4294901760
    %566 = vmatpush1.xpose.msra.mxu0 %v565
    %567 = vmatprep.subr.mxu0 0.0
    %v568 = vand.u32 %v105, 4294901760
    %569 = vmatpush1.xpose.msra.mxu0 %v568
    %570 = vmatprep.subr.mxu0 0.0
    %v571 = vand.u32 %v108, 4294901760
    %572 = vmatpush1.xpose.msra.mxu0 %v571
    %573 = vmatprep.subr.mxu0 0.0
    %v574 = vand.u32 %v111, 4294901760
    %575 = vmatpush1.xpose.msra.mxu0 %v574
    %576 = vmatprep.subr.mxu0 0.0
    %v577 = vand.u32 %v114, 4294901760
    %578 = vmatpush1.xpose.msra.mxu0 %v577
    %579 = vmatprep.subr.mxu0 0.0
    %v580 = vand.u32 %v117, 4294901760
    %581 = vmatpush1.xpose.msra.mxu0 %v580
    %582 = vmatprep.subr.mxu0 0.0
    %v583 = vand.u32 %v120, 4294901760
    %584 = vmatpush1.xpose.msra.mxu0 %v583
    %585 = vmatprep.subr.mxu0 0.0
    %v586 = vand.u32 %v123, 4294901760
    %587 = vmatpush1.xpose.msra.mxu0 %v586
    %588 = vmatprep.subr.mxu0 0.0
    %v589 = vand.u32 %v126, 4294901760
    %590 = vmatpush1.xpose.msra.mxu0 %v589
    %591 = vmatprep.subr.mxu0 0.0
    %v592 = vand.u32 %v129, 4294901760
    %593 = vmatpush1.xpose.msra.mxu0 %v592
    %594 = vmatprep.subr.mxu0 0.0
    %v595 = vand.u32 %v132, 4294901760
    %596 = vmatpush1.xpose.msra.mxu0 %v595
    %597 = vmatprep.subr.mxu0 0.0
    %v598 = vand.u32 %v135, 4294901760
    %599 = vmatpush1.xpose.msra.mxu0 %v598
    %600 = vmatprep.subr.mxu0 0.0
    %601 = vmatpush1.xpose.msra.mxu0 0.0
    %602 = vmatprep.subr.mxu0 0.0
    %603 = vmatpush1.xpose.msra.mxu0 0.0
    %604 = vmatprep.subr.mxu0 0.0
    %605 = vmatpush1.xpose.msra.mxu0 0.0
    %606 = vmatprep.subr.mxu0 0.0
    %607 = vmatpush1.xpose.msra.mxu0 0.0
    %608 = vmatprep.subr.mxu0 0.0
    %609 = vmatpush1.xpose.msra.mxu0 0.0
    %610 = vmatprep.subr.mxu0 0.0
    %611 = vmatpush1.xpose.msra.mxu0 0.0
    %612 = vmatprep.subr.mxu0 0.0
    %613 = vmatpush1.xpose.msra.mxu0 0.0
    %614 = vmatprep.subr.mxu0 0.0
    %615 = vmatpush1.xpose.msra.mxu0 0.0
    %616 = vmatprep.subr.mxu0 0.0
    %617 = vmatpush1.xpose.msra.mxu0 0.0
    %618 = vmatprep.subr.mxu0 0.0
    %619 = vmatpush1.xpose.msra.mxu0 0.0
    %620 = vmatprep.subr.mxu0 0.0
    %621 = vmatpush1.xpose.msra.mxu0 0.0
    %622 = vmatprep.subr.mxu0 0.0
    %623 = vmatpush1.xpose.msra.mxu0 0.0
    %624 = vmatprep.subr.mxu0 0.0
    %625 = vmatpush1.xpose.msra.mxu0 0.0
    %626 = vmatprep.subr.mxu0 0.0
    %627 = vmatpush1.xpose.msra.mxu0 0.0
    %628 = vmatprep.subr.mxu0 0.0
    %629 = vmatpush1.xpose.msra.mxu0 0.0
    %630 = vmatprep.subr.mxu0 0.0
    %631 = vmatpush1.xpose.msra.mxu0 0.0
    %632 = vmatprep.mubr.f32.mxu0 0.0
    %v633 = vand.u32 %v81, 4294901760
    %v634 = vsub.f32 %v81, %v633
    %v635 = vand.u32 %v634, 4294901760
    %636 = vmatmul.mubr.f32.gmra.mrb[0].mxu0 %v635
    %v637 = vpop.f32.mrb[0].mxu0
    %v638 = vadd.f32 %v528, %v637
    %v639 = vpop.f32.mrb[0].mxu0
    %640 = vmatprep.mubr.f32.mxu0 0.0
    %v641 = vand.u32 %v83, 4294901760
    %v642 = vsub.f32 %v83, %v641
    %v643 = vand.u32 %v642, 4294901760
    %644 = vmatmul.mubr.f32.gmra.mrb[0].mxu0 %v643
    %v645 = vpop.f32.mrb[0].mxu0
    %v646 = vadd.f32 %v535, %v645
    %v647 = vpop.f32.mrb[0].mxu0
    %648 = vmatprep.mubr.f32.mxu0 0.0
    %v649 = vand.u32 %v85, 4294901760
    %v650 = vsub.f32 %v85, %v649
    %v651 = vand.u32 %v650, 4294901760
    %652 = vmatmul.mubr.f32.gmra.mrb[0].mxu0 %v651
    %v653 = vpop.f32.mrb[0].mxu0
    %v654 = vadd.f32 %v542, %v653
    %v655 = vpop.f32.mrb[0].mxu0
    %656 = vmatprep.mubr.f32.mxu0 0.0
    %v657 = vand.u32 %v87, 4294901760
    %v658 = vsub.f32 %v87, %v657
    %v659 = vand.u32 %v658, 4294901760
    %660 = vmatmul.mubr.f32.gmra.mrb[0].mxu0 %v659
    %v661 = vpop.f32.mrb[0].mxu0
    %v662 = vadd.f32 %v549, %v661
    %v663 = vpop.f32.mrb[0].mxu0
    %664 = vdwg.mxu0
    %665 = vmatprep.subr.mxu0 0.0
    %v666 = vand.u32 %v90, 4294901760
    %v667 = vsub.f32 %v90, %v666
    %v668 = vand.u32 %v667, 4294901760
    %669 = vmatpush1.xpose.msra.mxu0 %v668
    %670 = vmatprep.subr.mxu0 0.0
    %v671 = vand.u32 %v93, 4294901760
    %v672 = vsub.f32 %v93, %v671
    %v673 = vand.u32 %v672, 4294901760
    %674 = vmatpush1.xpose.msra.mxu0 %v673
    %675 = vmatprep.subr.mxu0 0.0
    %v676 = vand.u32 %v96, 4294901760
    %v677 = vsub.f32 %v96, %v676
    %v678 = vand.u32 %v677, 4294901760
    %679 = vmatpush1.xpose.msra.mxu0 %v678
    %680 = vmatprep.subr.mxu0 0.0
    %v681 = vand.u32 %v99, 4294901760
    %v682 = vsub.f32 %v99, %v681
    %v683 = vand.u32 %v682, 4294901760
    %684 = vmatpush1.xpose.msra.mxu0 %v683
    %685 = vmatprep.subr.mxu0 0.0
    %v686 = vand.u32 %v102, 4294901760
    %v687 = vsub.f32 %v102, %v686
    %v688 = vand.u32 %v687, 4294901760
    %689 = vmatpush1.xpose.msra.mxu0 %v688
    %690 = vmatprep.subr.mxu0 0.0
    %v691 = vand.u32 %v105, 4294901760
    %v692 = vsub.f32 %v105, %v691
    %v693 = vand.u32 %v692, 4294901760
    %694 = vmatpush1.xpose.msra.mxu0 %v693
    %695 = vmatprep.subr.mxu0 0.0
    %v696 = vand.u32 %v108, 4294901760
    %v697 = vsub.f32 %v108, %v696
    %v698 = vand.u32 %v697, 4294901760
    %699 = vmatpush1.xpose.msra.mxu0 %v698
    %700 = vmatprep.subr.mxu0 0.0
    %v701 = vand.u32 %v111, 4294901760
    %v702 = vsub.f32 %v111, %v701
    %v703 = vand.u32 %v702, 4294901760
    %704 = vmatpush1.xpose.msra.mxu0 %v703
    %705 = vmatprep.subr.mxu0 0.0
    %v706 = vand.u32 %v114, 4294901760
    %v707 = vsub.f32 %v114, %v706
    %v708 = vand.u32 %v707, 4294901760
    %709 = vmatpush1.xpose.msra.mxu0 %v708
    %710 = vmatprep.subr.mxu0 0.0
    %v711 = vand.u32 %v117, 4294901760
    %v712 = vsub.f32 %v117, %v711
    %v713 = vand.u32 %v712, 4294901760
    %714 = vmatpush1.xpose.msra.mxu0 %v713
    %715 = vmatprep.subr.mxu0 0.0
    %v716 = vand.u32 %v120, 4294901760
    %v717 = vsub.f32 %v120, %v716
    %v718 = vand.u32 %v717, 4294901760
    %719 = vmatpush1.xpose.msra.mxu0 %v718
    %720 = vmatprep.subr.mxu0 0.0
    %v721 = vand.u32 %v123, 4294901760
    %v722 = vsub.f32 %v123, %v721
    %v723 = vand.u32 %v722, 4294901760
    %724 = vmatpush1.xpose.msra.mxu0 %v723
    %725 = vmatprep.subr.mxu0 0.0
    %v726 = vand.u32 %v126, 4294901760
    %v727 = vsub.f32 %v126, %v726
    %v728 = vand.u32 %v727, 4294901760
    %729 = vmatpush1.xpose.msra.mxu0 %v728
    %730 = vmatprep.subr.mxu0 0.0
    %v731 = vand.u32 %v129, 4294901760
    %v732 = vsub.f32 %v129, %v731
    %v733 = vand.u32 %v732, 4294901760
    %734 = vmatpush1.xpose.msra.mxu0 %v733
    %735 = vmatprep.subr.mxu0 0.0
    %v736 = vand.u32 %v132, 4294901760
    %v737 = vsub.f32 %v132, %v736
    %v738 = vand.u32 %v737, 4294901760
    %739 = vmatpush1.xpose.msra.mxu0 %v738
    %740 = vmatprep.subr.mxu0 0.0
    %v741 = vand.u32 %v135, 4294901760
    %v742 = vsub.f32 %v135, %v741
    %v743 = vand.u32 %v742, 4294901760
    %744 = vmatpush1.xpose.msra.mxu0 %v743
    %745 = vmatprep.subr.mxu0 0.0
    %746 = vmatpush1.xpose.msra.mxu0 0.0
    %747 = vmatprep.subr.mxu0 0.0
    %748 = vmatpush1.xpose.msra.mxu0 0.0
    %749 = vmatprep.subr.mxu0 0.0
    %750 = vmatpush1.xpose.msra.mxu0 0.0
    %751 = vmatprep.subr.mxu0 0.0
    %752 = vmatpush1.xpose.msra.mxu0 0.0
    %753 = vmatprep.subr.mxu0 0.0
    %754 = vmatpush1.xpose.msra.mxu0 0.0
    %755 = vmatprep.subr.mxu0 0.0
    %756 = vmatpush1.xpose.msra.mxu0 0.0
    %757 = vmatprep.subr.mxu0 0.0
    %758 = vmatpush1.xpose.msra.mxu0 0.0
    %759 = vmatprep.subr.mxu0 0.0
    %760 = vmatpush1.xpose.msra.mxu0 0.0
    %761 = vmatprep.subr.mxu0 0.0
    %762 = vmatpush1.xpose.msra.mxu0 0.0
    %763 = vmatprep.subr.mxu0 0.0
    %764 = vmatpush1.xpose.msra.mxu0 0.0
    %765 = vmatprep.subr.mxu0 0.0
    %766 = vmatpush1.xpose.msra.mxu0 0.0
    %767 = vmatprep.subr.mxu0 0.0
    %768 = vmatpush1.xpose.msra.mxu0 0.0
    %769 = vmatprep.subr.mxu0 0.0
    %770 = vmatpush1.xpose.msra.mxu0 0.0
    %771 = vmatprep.subr.mxu0 0.0
    %772 = vmatpush1.xpose.msra.mxu0 0.0
    %773 = vmatprep.subr.mxu0 0.0
    %774 = vmatpush1.xpose.msra.mxu0 0.0
    %775 = vmatprep.subr.mxu0 0.0
    %776 = vmatpush1.xpose.msra.mxu0 0.0
    %777 = vmatprep.mubr.f32.mxu0 0.0
    %v778 = vand.u32 %v81, 4294901760
    %779 = vmatmul.mubr.f32.gmra.mrb[0].mxu0 %v778
    %v780 = vpop.f32.mrb[0].mxu0
    %v781 = vadd.f32 %v638, %v780
    %v782 = vpop.f32.mrb[0].mxu0
    %783 = vmatprep.mubr.f32.mxu0 0.0
    %v784 = vand.u32 %v83, 4294901760
    %785 = vmatmul.mubr.f32.gmra.mrb[0].mxu0 %v784
    %v786 = vpop.f32.mrb[0].mxu0
    %v787 = vadd.f32 %v646, %v786
    %v788 = vpop.f32.mrb[0].mxu0
    %789 = vmatprep.mubr.f32.mxu0 0.0
    %v790 = vand.u32 %v85, 4294901760
    %791 = vmatmul.mubr.f32.gmra.mrb[0].mxu0 %v790
    %v792 = vpop.f32.mrb[0].mxu0
    %v793 = vadd.f32 %v654, %v792
    %v794 = vpop.f32.mrb[0].mxu0
    %795 = vmatprep.mubr.f32.mxu0 0.0
    %v796 = vand.u32 %v87, 4294901760
    %797 = vmatmul.mubr.f32.gmra.mrb[0].mxu0 %v796
    %v798 = vpop.f32.mrb[0].mxu0
    %v799 = vadd.f32 %v662, %v798
    %v800 = vpop.f32.mrb[0].mxu0
    %801 = vdwg.mxu0
    %802 = vmatprep.subr.mxu0 0.0
    %v803 = vand.u32 %v90, 4294901760
    %804 = vmatpush1.xpose.msra.mxu0 %v803
    %805 = vmatprep.subr.mxu0 0.0
    %v806 = vand.u32 %v93, 4294901760
    %807 = vmatpush1.xpose.msra.mxu0 %v806
    %808 = vmatprep.subr.mxu0 0.0
    %v809 = vand.u32 %v96, 4294901760
    %810 = vmatpush1.xpose.msra.mxu0 %v809
    %811 = vmatprep.subr.mxu0 0.0
    %v812 = vand.u32 %v99, 4294901760
    %813 = vmatpush1.xpose.msra.mxu0 %v812
    %814 = vmatprep.subr.mxu0 0.0
    %v815 = vand.u32 %v102, 4294901760
    %816 = vmatpush1.xpose.msra.mxu0 %v815
    %817 = vmatprep.subr.mxu0 0.0
    %v818 = vand.u32 %v105, 4294901760
    %819 = vmatpush1.xpose.msra.mxu0 %v818
    %820 = vmatprep.subr.mxu0 0.0
    %v821 = vand.u32 %v108, 4294901760
    %822 = vmatpush1.xpose.msra.mxu0 %v821
    %823 = vmatprep.subr.mxu0 0.0
    %v824 = vand.u32 %v111, 4294901760
    %825 = vmatpush1.xpose.msra.mxu0 %v824
    %826 = vmatprep.subr.mxu0 0.0
    %v827 = vand.u32 %v114, 4294901760
    %828 = vmatpush1.xpose.msra.mxu0 %v827
    %829 = vmatprep.subr.mxu0 0.0
    %v830 = vand.u32 %v117, 4294901760
    %831 = vmatpush1.xpose.msra.mxu0 %v830
    %832 = vmatprep.subr.mxu0 0.0
    %v833 = vand.u32 %v120, 4294901760
    %834 = vmatpush1.xpose.msra.mxu0 %v833
    %835 = vmatprep.subr.mxu0 0.0
    %v836 = vand.u32 %v123, 4294901760
    %837 = vmatpush1.xpose.msra.mxu0 %v836
    %838 = vmatprep.subr.mxu0 0.0
    %v839 = vand.u32 %v126, 4294901760
    %840 = vmatpush1.xpose.msra.mxu0 %v839
    %841 = vmatprep.subr.mxu0 0.0
    %v842 = vand.u32 %v129, 4294901760
    %843 = vmatpush1.xpose.msra.mxu0 %v842
    %844 = vmatprep.subr.mxu0 0.0
    %v845 = vand.u32 %v132, 4294901760
    %846 = vmatpush1.xpose.msra.mxu0 %v845
    %847 = vmatprep.subr.mxu0 0.0
    %v848 = vand.u32 %v135, 4294901760
    %849 = vmatpush1.xpose.msra.mxu0 %v848
    %850 = vmatprep.subr.mxu0 0.0
    %851 = vmatpush1.xpose.msra.mxu0 0.0
    %852 = vmatprep.subr.mxu0 0.0
    %853 = vmatpush1.xpose.msra.mxu0 0.0
    %854 = vmatprep.subr.mxu0 0.0
    %855 = vmatpush1.xpose.msra.mxu0 0.0
    %856 = vmatprep.subr.mxu0 0.0
    %857 = vmatpush1.xpose.msra.mxu0 0.0
    %858 = vmatprep.subr.mxu0 0.0
    %859 = vmatpush1.xpose.msra.mxu0 0.0
    %860 = vmatprep.subr.mxu0 0.0
    %861 = vmatpush1.xpose.msra.mxu0 0.0
    %862 = vmatprep.subr.mxu0 0.0
    %863 = vmatpush1.xpose.msra.mxu0 0.0
    %864 = vmatprep.subr.mxu0 0.0
    %865 = vmatpush1.xpose.msra.mxu0 0.0
    %866 = vmatprep.subr.mxu0 0.0
    %867 = vmatpush1.xpose.msra.mxu0 0.0
    %868 = vmatprep.subr.mxu0 0.0
    %869 = vmatpush1.xpose.msra.mxu0 0.0
    %870 = vmatprep.subr.mxu0 0.0
    %871 = vmatpush1.xpose.msra.mxu0 0.0
    %872 = vmatprep.subr.mxu0 0.0
    %873 = vmatpush1.xpose.msra.mxu0 0.0
    %874 = vmatprep.subr.mxu0 0.0
    %875 = vmatpush1.xpose.msra.mxu0 0.0
    %876 = vmatprep.subr.mxu0 0.0
    %877 = vmatpush1.xpose.msra.mxu0 0.0
    %878 = vmatprep.subr.mxu0 0.0
    %879 = vmatpush1.xpose.msra.mxu0 0.0
    %880 = vmatprep.subr.mxu0 0.0
    %881 = vmatpush1.xpose.msra.mxu0 0.0
    %882 = vmatprep.mubr.f32.mxu0 0.0
    %v883 = vand.u32 %v81, 4294901760
    %884 = vmatmul.mubr.f32.gmra.mrb[0].mxu0 %v883
    %v885 = vpop.f32.mrb[0].mxu0
    %v886 = vadd.f32 %v781, %v885
    %v887 = vpop.f32.mrb[0].mxu0
    %888 = vmatprep.mubr.f32.mxu0 0.0
    %v889 = vand.u32 %v83, 4294901760
    %890 = vmatmul.mubr.f32.gmra.mrb[0].mxu0 %v889
    %v891 = vpop.f32.mrb[0].mxu0
    %v892 = vadd.f32 %v787, %v891
    %v893 = vpop.f32.mrb[0].mxu0
    %894 = vmatprep.mubr.f32.mxu0 0.0
    %v895 = vand.u32 %v85, 4294901760
    %896 = vmatmul.mubr.f32.gmra.mrb[0].mxu0 %v895
    %v897 = vpop.f32.mrb[0].mxu0
    %v898 = vadd.f32 %v793, %v897
    %v899 = vpop.f32.mrb[0].mxu0
    %900 = vmatprep.mubr.f32.mxu0 0.0
    %v901 = vand.u32 %v87, 4294901760
    %902 = vmatmul.mubr.f32.gmra.mrb[0].mxu0 %v901
    %v903 = vpop.f32.mrb[0].mxu0
    %v904 = vadd.f32 %v799, %v903
    %v905 = vpop.f32.mrb[0].mxu0
    %906 = vdwg.mxu0
    %v907 = vsel %vm80, %v50, 0
    %v909 = vsel %vm80, %v51, 0
    %v911 = vsel %vm80, %v52, 0
    %v913 = vsel %vm80, %v53, 0
    %v916 = vsel %vm80, %v18, 0
    %v919 = vsel %vm80, %v19, 0
    %v922 = vsel %vm80, %v20, 0
    %v925 = vsel %vm80, %v21, 0
    %v928 = vsel %vm80, %v22, 0
    %v931 = vsel %vm80, %v23, 0
    %v934 = vsel %vm80, %v24, 0
    %v937 = vsel %vm80, %v25, 0
    %v940 = vsel %vm80, %v26, 0
    %v943 = vsel %vm80, %v27, 0
    %v946 = vsel %vm80, %v28, 0
    %v949 = vsel %vm80, %v29, 0
    %v952 = vsel %vm80, %v30, 0
    %v955 = vsel %vm80, %v31, 0
    %v958 = vsel %vm80, %v32, 0
    %v961 = vsel %vm80, %v33, 0
    %963 = vmatprep.subr.mxu0 0.0
    %v964 = vand.u32 %v916, 4294901760
    %965 = vmatpush1.xpose.msra.mxu0 %v964
    %966 = vmatprep.subr.mxu0 0.0
    %v967 = vand.u32 %v919, 4294901760
    %968 = vmatpush1.xpose.msra.mxu0 %v967
    %969 = vmatprep.subr.mxu0 0.0
    %v970 = vand.u32 %v922, 4294901760
    %971 = vmatpush1.xpose.msra.mxu0 %v970
    %972 = vmatprep.subr.mxu0 0.0
    %v973 = vand.u32 %v925, 4294901760
    %974 = vmatpush1.xpose.msra.mxu0 %v973
    %975 = vmatprep.subr.mxu0 0.0
    %v976 = vand.u32 %v928, 4294901760
    %977 = vmatpush1.xpose.msra.mxu0 %v976
    %978 = vmatprep.subr.mxu0 0.0
    %v979 = vand.u32 %v931, 4294901760
    %980 = vmatpush1.xpose.msra.mxu0 %v979
    %981 = vmatprep.subr.mxu0 0.0
    %v982 = vand.u32 %v934, 4294901760
    %983 = vmatpush1.xpose.msra.mxu0 %v982
    %984 = vmatprep.subr.mxu0 0.0
    %v985 = vand.u32 %v937, 4294901760
    %986 = vmatpush1.xpose.msra.mxu0 %v985
    %987 = vmatprep.subr.mxu0 0.0
    %v988 = vand.u32 %v940, 4294901760
    %989 = vmatpush1.xpose.msra.mxu0 %v988
    %990 = vmatprep.subr.mxu0 0.0
    %v991 = vand.u32 %v943, 4294901760
    %992 = vmatpush1.xpose.msra.mxu0 %v991
    %993 = vmatprep.subr.mxu0 0.0
    %v994 = vand.u32 %v946, 4294901760
    %995 = vmatpush1.xpose.msra.mxu0 %v994
    %996 = vmatprep.subr.mxu0 0.0
    %v997 = vand.u32 %v949, 4294901760
    %998 = vmatpush1.xpose.msra.mxu0 %v997
    %999 = vmatprep.subr.mxu0 0.0
    %v1000 = vand.u32 %v952, 4294901760
    %1001 = vmatpush1.xpose.msra.mxu0 %v1000
    %1002 = vmatprep.subr.mxu0 0.0
    %v1003 = vand.u32 %v955, 4294901760
    %1004 = vmatpush1.xpose.msra.mxu0 %v1003
    %1005 = vmatprep.subr.mxu0 0.0
    %v1006 = vand.u32 %v958, 4294901760
    %1007 = vmatpush1.xpose.msra.mxu0 %v1006
    %1008 = vmatprep.subr.mxu0 0.0
    %v1009 = vand.u32 %v961, 4294901760
    %1010 = vmatpush1.xpose.msra.mxu0 %v1009
    %1011 = vmatprep.subr.mxu0 0.0
    %1012 = vmatpush1.xpose.msra.mxu0 0.0
    %1013 = vmatprep.subr.mxu0 0.0
    %1014 = vmatpush1.xpose.msra.mxu0 0.0
    %1015 = vmatprep.subr.mxu0 0.0
    %1016 = vmatpush1.xpose.msra.mxu0 0.0
    %1017 = vmatprep.subr.mxu0 0.0
    %1018 = vmatpush1.xpose.msra.mxu0 0.0
    %1019 = vmatprep.subr.mxu0 0.0
    %1020 = vmatpush1.xpose.msra.mxu0 0.0
    %1021 = vmatprep.subr.mxu0 0.0
    %1022 = vmatpush1.xpose.msra.mxu0 0.0
    %1023 = vmatprep.subr.mxu0 0.0
    %1024 = vmatpush1.xpose.msra.mxu0 0.0
    %1025 = vmatprep.subr.mxu0 0.0
    %1026 = vmatpush1.xpose.msra.mxu0 0.0
    %1027 = vmatprep.subr.mxu0 0.0
    %1028 = vmatpush1.xpose.msra.mxu0 0.0
    %1029 = vmatprep.subr.mxu0 0.0
    %1030 = vmatpush1.xpose.msra.mxu0 0.0
    %1031 = vmatprep.subr.mxu0 0.0
    %1032 = vmatpush1.xpose.msra.mxu0 0.0
    %1033 = vmatprep.subr.mxu0 0.0
    %1034 = vmatpush1.xpose.msra.mxu0 0.0
    %1035 = vmatprep.subr.mxu0 0.0
    %1036 = vmatpush1.xpose.msra.mxu0 0.0
    %1037 = vmatprep.subr.mxu0 0.0
    %1038 = vmatpush1.xpose.msra.mxu0 0.0
    %1039 = vmatprep.subr.mxu0 0.0
    %1040 = vmatpush1.xpose.msra.mxu0 0.0
    %1041 = vmatprep.subr.mxu0 0.0
    %1042 = vmatpush1.xpose.msra.mxu0 0.0
    %1043 = vmatprep.mubr.f32.mxu0 0.0
    %v1044 = vand.u32 %v907, 4294901760
    %v1045 = vsub.f32 %v907, %v1044
    %v1046 = vand.u32 %v1045, 4294901760
    %v1047 = vsub.f32 %v1045, %v1046
    %v1048 = vand.u32 %v1047, 4294901760
    %1049 = vmatmul.mubr.f32.gmra.mrb[0].mxu0 %v1048
    %v1050 = vpop.f32.mrb[0].mxu0
    %v1051 = vadd.f32 %v886, %v1050
    %v1052 = vpop.f32.mrb[0].mxu0
    %1053 = vmatprep.mubr.f32.mxu0 0.0
    %v1054 = vand.u32 %v909, 4294901760
    %v1055 = vsub.f32 %v909, %v1054
    %v1056 = vand.u32 %v1055, 4294901760
    %v1057 = vsub.f32 %v1055, %v1056
    %v1058 = vand.u32 %v1057, 4294901760
    %1059 = vmatmul.mubr.f32.gmra.mrb[0].mxu0 %v1058
    %v1060 = vpop.f32.mrb[0].mxu0
    %v1061 = vadd.f32 %v892, %v1060
    %v1062 = vpop.f32.mrb[0].mxu0
    %1063 = vmatprep.mubr.f32.mxu0 0.0
    %v1064 = vand.u32 %v911, 4294901760
    %v1065 = vsub.f32 %v911, %v1064
    %v1066 = vand.u32 %v1065, 4294901760
    %v1067 = vsub.f32 %v1065, %v1066
    %v1068 = vand.u32 %v1067, 4294901760
    %1069 = vmatmul.mubr.f32.gmra.mrb[0].mxu0 %v1068
    %v1070 = vpop.f32.mrb[0].mxu0
    %v1071 = vadd.f32 %v898, %v1070
    %v1072 = vpop.f32.mrb[0].mxu0
    %1073 = vmatprep.mubr.f32.mxu0 0.0
    %v1074 = vand.u32 %v913, 4294901760
    %v1075 = vsub.f32 %v913, %v1074
    %v1076 = vand.u32 %v1075, 4294901760
    %v1077 = vsub.f32 %v1075, %v1076
    %v1078 = vand.u32 %v1077, 4294901760
    %1079 = vmatmul.mubr.f32.gmra.mrb[0].mxu0 %v1078
    %v1080 = vpop.f32.mrb[0].mxu0
    %v1081 = vadd.f32 %v904, %v1080
    %v1082 = vpop.f32.mrb[0].mxu0
    %1083 = vdwg.mxu0
    %1084 = vmatprep.subr.mxu0 0.0
    %v1085 = vand.u32 %v916, 4294901760
    %v1086 = vsub.f32 %v916, %v1085
    %v1087 = vand.u32 %v1086, 4294901760
    %v1088 = vsub.f32 %v1086, %v1087
    %v1089 = vand.u32 %v1088, 4294901760
    %1090 = vmatpush1.xpose.msra.mxu0 %v1089
    %1091 = vmatprep.subr.mxu0 0.0
    %v1092 = vand.u32 %v919, 4294901760
    %v1093 = vsub.f32 %v919, %v1092
    %v1094 = vand.u32 %v1093, 4294901760
    %v1095 = vsub.f32 %v1093, %v1094
    %v1096 = vand.u32 %v1095, 4294901760
    %1097 = vmatpush1.xpose.msra.mxu0 %v1096
    %1098 = vmatprep.subr.mxu0 0.0
    %v1099 = vand.u32 %v922, 4294901760
    %v1100 = vsub.f32 %v922, %v1099
    %v1101 = vand.u32 %v1100, 4294901760
    %v1102 = vsub.f32 %v1100, %v1101
    %v1103 = vand.u32 %v1102, 4294901760
    %1104 = vmatpush1.xpose.msra.mxu0 %v1103
    %1105 = vmatprep.subr.mxu0 0.0
    %v1106 = vand.u32 %v925, 4294901760
    %v1107 = vsub.f32 %v925, %v1106
    %v1108 = vand.u32 %v1107, 4294901760
    %v1109 = vsub.f32 %v1107, %v1108
    %v1110 = vand.u32 %v1109, 4294901760
    %1111 = vmatpush1.xpose.msra.mxu0 %v1110
    %1112 = vmatprep.subr.mxu0 0.0
    %v1113 = vand.u32 %v928, 4294901760
    %v1114 = vsub.f32 %v928, %v1113
    %v1115 = vand.u32 %v1114, 4294901760
    %v1116 = vsub.f32 %v1114, %v1115
    %v1117 = vand.u32 %v1116, 4294901760
    %1118 = vmatpush1.xpose.msra.mxu0 %v1117
    %1119 = vmatprep.subr.mxu0 0.0
    %v1120 = vand.u32 %v931, 4294901760
    %v1121 = vsub.f32 %v931, %v1120
    %v1122 = vand.u32 %v1121, 4294901760
    %v1123 = vsub.f32 %v1121, %v1122
    %v1124 = vand.u32 %v1123, 4294901760
    %1125 = vmatpush1.xpose.msra.mxu0 %v1124
    %1126 = vmatprep.subr.mxu0 0.0
    %v1127 = vand.u32 %v934, 4294901760
    %v1128 = vsub.f32 %v934, %v1127
    %v1129 = vand.u32 %v1128, 4294901760
    %v1130 = vsub.f32 %v1128, %v1129
    %v1131 = vand.u32 %v1130, 4294901760
    %1132 = vmatpush1.xpose.msra.mxu0 %v1131
    %1133 = vmatprep.subr.mxu0 0.0
    %v1134 = vand.u32 %v937, 4294901760
    %v1135 = vsub.f32 %v937, %v1134
    %v1136 = vand.u32 %v1135, 4294901760
    %v1137 = vsub.f32 %v1135, %v1136
    %v1138 = vand.u32 %v1137, 4294901760
    %1139 = vmatpush1.xpose.msra.mxu0 %v1138
    %1140 = vmatprep.subr.mxu0 0.0
    %v1141 = vand.u32 %v940, 4294901760
    %v1142 = vsub.f32 %v940, %v1141
    %v1143 = vand.u32 %v1142, 4294901760
    %v1144 = vsub.f32 %v1142, %v1143
    %v1145 = vand.u32 %v1144, 4294901760
    %1146 = vmatpush1.xpose.msra.mxu0 %v1145
    %1147 = vmatprep.subr.mxu0 0.0
    %v1148 = vand.u32 %v943, 4294901760
    %v1149 = vsub.f32 %v943, %v1148
    %v1150 = vand.u32 %v1149, 4294901760
    %v1151 = vsub.f32 %v1149, %v1150
    %v1152 = vand.u32 %v1151, 4294901760
    %1153 = vmatpush1.xpose.msra.mxu0 %v1152
    %1154 = vmatprep.subr.mxu0 0.0
    %v1155 = vand.u32 %v946, 4294901760
    %v1156 = vsub.f32 %v946, %v1155
    %v1157 = vand.u32 %v1156, 4294901760
    %v1158 = vsub.f32 %v1156, %v1157
    %v1159 = vand.u32 %v1158, 4294901760
    %1160 = vmatpush1.xpose.msra.mxu0 %v1159
    %1161 = vmatprep.subr.mxu0 0.0
    %v1162 = vand.u32 %v949, 4294901760
    %v1163 = vsub.f32 %v949, %v1162
    %v1164 = vand.u32 %v1163, 4294901760
    %v1165 = vsub.f32 %v1163, %v1164
    %v1166 = vand.u32 %v1165, 4294901760
    %1167 = vmatpush1.xpose.msra.mxu0 %v1166
    %1168 = vmatprep.subr.mxu0 0.0
    %v1169 = vand.u32 %v952, 4294901760
    %v1170 = vsub.f32 %v952, %v1169
    %v1171 = vand.u32 %v1170, 4294901760
    %v1172 = vsub.f32 %v1170, %v1171
    %v1173 = vand.u32 %v1172, 4294901760
    %1174 = vmatpush1.xpose.msra.mxu0 %v1173
    %1175 = vmatprep.subr.mxu0 0.0
    %v1176 = vand.u32 %v955, 4294901760
    %v1177 = vsub.f32 %v955, %v1176
    %v1178 = vand.u32 %v1177, 4294901760
    %v1179 = vsub.f32 %v1177, %v1178
    %v1180 = vand.u32 %v1179, 4294901760
    %1181 = vmatpush1.xpose.msra.mxu0 %v1180
    %1182 = vmatprep.subr.mxu0 0.0
    %v1183 = vand.u32 %v958, 4294901760
    %v1184 = vsub.f32 %v958, %v1183
    %v1185 = vand.u32 %v1184, 4294901760
    %v1186 = vsub.f32 %v1184, %v1185
    %v1187 = vand.u32 %v1186, 4294901760
    %1188 = vmatpush1.xpose.msra.mxu0 %v1187
    %1189 = vmatprep.subr.mxu0 0.0
    %v1190 = vand.u32 %v961, 4294901760
    %v1191 = vsub.f32 %v961, %v1190
    %v1192 = vand.u32 %v1191, 4294901760
    %v1193 = vsub.f32 %v1191, %v1192
    %v1194 = vand.u32 %v1193, 4294901760
    %1195 = vmatpush1.xpose.msra.mxu0 %v1194
    %1196 = vmatprep.subr.mxu0 0.0
    %1197 = vmatpush1.xpose.msra.mxu0 0.0
    %1198 = vmatprep.subr.mxu0 0.0
    %1199 = vmatpush1.xpose.msra.mxu0 0.0
    %1200 = vmatprep.subr.mxu0 0.0
    %1201 = vmatpush1.xpose.msra.mxu0 0.0
    %1202 = vmatprep.subr.mxu0 0.0
    %1203 = vmatpush1.xpose.msra.mxu0 0.0
    %1204 = vmatprep.subr.mxu0 0.0
    %1205 = vmatpush1.xpose.msra.mxu0 0.0
    %1206 = vmatprep.subr.mxu0 0.0
    %1207 = vmatpush1.xpose.msra.mxu0 0.0
    %1208 = vmatprep.subr.mxu0 0.0
    %1209 = vmatpush1.xpose.msra.mxu0 0.0
    %1210 = vmatprep.subr.mxu0 0.0
    %1211 = vmatpush1.xpose.msra.mxu0 0.0
    %1212 = vmatprep.subr.mxu0 0.0
    %1213 = vmatpush1.xpose.msra.mxu0 0.0
    %1214 = vmatprep.subr.mxu0 0.0
    %1215 = vmatpush1.xpose.msra.mxu0 0.0
    %1216 = vmatprep.subr.mxu0 0.0
    %1217 = vmatpush1.xpose.msra.mxu0 0.0
    %1218 = vmatprep.subr.mxu0 0.0
    %1219 = vmatpush1.xpose.msra.mxu0 0.0
    %1220 = vmatprep.subr.mxu0 0.0
    %1221 = vmatpush1.xpose.msra.mxu0 0.0
    %1222 = vmatprep.subr.mxu0 0.0
    %1223 = vmatpush1.xpose.msra.mxu0 0.0
    %1224 = vmatprep.subr.mxu0 0.0
    %1225 = vmatpush1.xpose.msra.mxu0 0.0
    %1226 = vmatprep.subr.mxu0 0.0
    %1227 = vmatpush1.xpose.msra.mxu0 0.0
    %1228 = vmatprep.mubr.f32.mxu0 0.0
    %v1229 = vand.u32 %v907, 4294901760
    %1230 = vmatmul.mubr.f32.gmra.mrb[0].mxu0 %v1229
    %v1231 = vpop.f32.mrb[0].mxu0
    %v1232 = vadd.f32 %v1051, %v1231
    %v1233 = vpop.f32.mrb[0].mxu0
    %1234 = vmatprep.mubr.f32.mxu0 0.0
    %v1235 = vand.u32 %v909, 4294901760
    %1236 = vmatmul.mubr.f32.gmra.mrb[0].mxu0 %v1235
    %v1237 = vpop.f32.mrb[0].mxu0
    %v1238 = vadd.f32 %v1061, %v1237
    %v1239 = vpop.f32.mrb[0].mxu0
    %1240 = vmatprep.mubr.f32.mxu0 0.0
    %v1241 = vand.u32 %v911, 4294901760
    %1242 = vmatmul.mubr.f32.gmra.mrb[0].mxu0 %v1241
    %v1243 = vpop.f32.mrb[0].mxu0
    %v1244 = vadd.f32 %v1071, %v1243
    %v1245 = vpop.f32.mrb[0].mxu0
    %1246 = vmatprep.mubr.f32.mxu0 0.0
    %v1247 = vand.u32 %v913, 4294901760
    %1248 = vmatmul.mubr.f32.gmra.mrb[0].mxu0 %v1247
    %v1249 = vpop.f32.mrb[0].mxu0
    %v1250 = vadd.f32 %v1081, %v1249
    %v1251 = vpop.f32.mrb[0].mxu0
    %1252 = vdwg.mxu0
    %1253 = vmatprep.subr.mxu0 0.0
    %v1254 = vand.u32 %v916, 4294901760
    %v1255 = vsub.f32 %v916, %v1254
    %1256 = vmatpush1.xpose.msra.mxu0 %v1255
    %1257 = vmatprep.subr.mxu0 0.0
    %v1258 = vand.u32 %v919, 4294901760
    %v1259 = vsub.f32 %v919, %v1258
    %1260 = vmatpush1.xpose.msra.mxu0 %v1259
    %1261 = vmatprep.subr.mxu0 0.0
    %v1262 = vand.u32 %v922, 4294901760
    %v1263 = vsub.f32 %v922, %v1262
    %1264 = vmatpush1.xpose.msra.mxu0 %v1263
    %1265 = vmatprep.subr.mxu0 0.0
    %v1266 = vand.u32 %v925, 4294901760
    %v1267 = vsub.f32 %v925, %v1266
    %1268 = vmatpush1.xpose.msra.mxu0 %v1267
    %1269 = vmatprep.subr.mxu0 0.0
    %v1270 = vand.u32 %v928, 4294901760
    %v1271 = vsub.f32 %v928, %v1270
    %1272 = vmatpush1.xpose.msra.mxu0 %v1271
    %1273 = vmatprep.subr.mxu0 0.0
    %v1274 = vand.u32 %v931, 4294901760
    %v1275 = vsub.f32 %v931, %v1274
    %1276 = vmatpush1.xpose.msra.mxu0 %v1275
    %1277 = vmatprep.subr.mxu0 0.0
    %v1278 = vand.u32 %v934, 4294901760
    %v1279 = vsub.f32 %v934, %v1278
    %1280 = vmatpush1.xpose.msra.mxu0 %v1279
    %1281 = vmatprep.subr.mxu0 0.0
    %v1282 = vand.u32 %v937, 4294901760
    %v1283 = vsub.f32 %v937, %v1282
    %1284 = vmatpush1.xpose.msra.mxu0 %v1283
    %1285 = vmatprep.subr.mxu0 0.0
    %v1286 = vand.u32 %v940, 4294901760
    %v1287 = vsub.f32 %v940, %v1286
    %1288 = vmatpush1.xpose.msra.mxu0 %v1287
    %1289 = vmatprep.subr.mxu0 0.0
    %v1290 = vand.u32 %v943, 4294901760
    %v1291 = vsub.f32 %v943, %v1290
    %1292 = vmatpush1.xpose.msra.mxu0 %v1291
    %1293 = vmatprep.subr.mxu0 0.0
    %v1294 = vand.u32 %v946, 4294901760
    %v1295 = vsub.f32 %v946, %v1294
    %1296 = vmatpush1.xpose.msra.mxu0 %v1295
    %1297 = vmatprep.subr.mxu0 0.0
    %v1298 = vand.u32 %v949, 4294901760
    %v1299 = vsub.f32 %v949, %v1298
    %1300 = vmatpush1.xpose.msra.mxu0 %v1299
    %1301 = vmatprep.subr.mxu0 0.0
    %v1302 = vand.u32 %v952, 4294901760
    %v1303 = vsub.f32 %v952, %v1302
    %1304 = vmatpush1.xpose.msra.mxu0 %v1303
    %1305 = vmatprep.subr.mxu0 0.0
    %v1306 = vand.u32 %v955, 4294901760
    %v1307 = vsub.f32 %v955, %v1306
    %1308 = vmatpush1.xpose.msra.mxu0 %v1307
    %1309 = vmatprep.subr.mxu0 0.0
    %v1310 = vand.u32 %v958, 4294901760
    %v1311 = vsub.f32 %v958, %v1310
    %1312 = vmatpush1.xpose.msra.mxu0 %v1311
    %1313 = vmatprep.subr.mxu0 0.0
    %v1314 = vand.u32 %v961, 4294901760
    %v1315 = vsub.f32 %v961, %v1314
    %1316 = vmatpush1.xpose.msra.mxu0 %v1315
    %1317 = vmatprep.subr.mxu0 0.0
    %1318 = vmatpush1.xpose.msra.mxu0 0.0
    %1319 = vmatprep.subr.mxu0 0.0
    %1320 = vmatpush1.xpose.msra.mxu0 0.0
    %1321 = vmatprep.subr.mxu0 0.0
    %1322 = vmatpush1.xpose.msra.mxu0 0.0
    %1323 = vmatprep.subr.mxu0 0.0
    %1324 = vmatpush1.xpose.msra.mxu0 0.0
    %1325 = vmatprep.subr.mxu0 0.0
    %1326 = vmatpush1.xpose.msra.mxu0 0.0
    %1327 = vmatprep.subr.mxu0 0.0
    %1328 = vmatpush1.xpose.msra.mxu0 0.0
    %1329 = vmatprep.subr.mxu0 0.0
    %1330 = vmatpush1.xpose.msra.mxu0 0.0
    %1331 = vmatprep.subr.mxu0 0.0
    %1332 = vmatpush1.xpose.msra.mxu0 0.0
    %1333 = vmatprep.subr.mxu0 0.0
    %1334 = vmatpush1.xpose.msra.mxu0 0.0
    %1335 = vmatprep.subr.mxu0 0.0
    %1336 = vmatpush1.xpose.msra.mxu0 0.0
    %1337 = vmatprep.subr.mxu0 0.0
    %1338 = vmatpush1.xpose.msra.mxu0 0.0
    %1339 = vmatprep.subr.mxu0 0.0
    %1340 = vmatpush1.xpose.msra.mxu0 0.0
    %1341 = vmatprep.subr.mxu0 0.0
    %1342 = vmatpush1.xpose.msra.mxu0 0.0
    %1343 = vmatprep.subr.mxu0 0.0
    %1344 = vmatpush1.xpose.msra.mxu0 0.0
    %1345 = vmatprep.subr.mxu0 0.0
    %1346 = vmatpush1.xpose.msra.mxu0 0.0
    %1347 = vmatprep.subr.mxu0 0.0
    %1348 = vmatpush1.xpose.msra.mxu0 0.0
    %1349 = vmatprep.mubr.f32.mxu0 0.0
    %v1350 = vand.u32 %v907, 4294901760
    %v1351 = vsub.f32 %v907, %v1350
    %1352 = vmatmul.mubr.f32.gmra.mrb[0].mxu0 %v1351
    %v1353 = vpop.f32.mrb[0].mxu0
    %v1354 = vadd.f32 %v1232, %v1353
    %v1355 = vpop.f32.mrb[0].mxu0
    %1356 = vmatprep.mubr.f32.mxu0 0.0
    %v1357 = vand.u32 %v909, 4294901760
    %v1358 = vsub.f32 %v909, %v1357
    %1359 = vmatmul.mubr.f32.gmra.mrb[0].mxu0 %v1358
    %v1360 = vpop.f32.mrb[0].mxu0
    %v1361 = vadd.f32 %v1238, %v1360
    %v1362 = vpop.f32.mrb[0].mxu0
    %1363 = vmatprep.mubr.f32.mxu0 0.0
    %v1364 = vand.u32 %v911, 4294901760
    %v1365 = vsub.f32 %v911, %v1364
    %1366 = vmatmul.mubr.f32.gmra.mrb[0].mxu0 %v1365
    %v1367 = vpop.f32.mrb[0].mxu0
    %v1368 = vadd.f32 %v1244, %v1367
    %v1369 = vpop.f32.mrb[0].mxu0
    %1370 = vmatprep.mubr.f32.mxu0 0.0
    %v1371 = vand.u32 %v913, 4294901760
    %v1372 = vsub.f32 %v913, %v1371
    %1373 = vmatmul.mubr.f32.gmra.mrb[0].mxu0 %v1372
    %v1374 = vpop.f32.mrb[0].mxu0
    %v1375 = vadd.f32 %v1250, %v1374
    %v1376 = vpop.f32.mrb[0].mxu0
    %1377 = vdwg.mxu0
    %1378 = vmatprep.subr.mxu0 0.0
    %v1379 = vand.u32 %v916, 4294901760
    %1380 = vmatpush1.xpose.msra.mxu0 %v1379
    %1381 = vmatprep.subr.mxu0 0.0
    %v1382 = vand.u32 %v919, 4294901760
    %1383 = vmatpush1.xpose.msra.mxu0 %v1382
    %1384 = vmatprep.subr.mxu0 0.0
    %v1385 = vand.u32 %v922, 4294901760
    %1386 = vmatpush1.xpose.msra.mxu0 %v1385
    %1387 = vmatprep.subr.mxu0 0.0
    %v1388 = vand.u32 %v925, 4294901760
    %1389 = vmatpush1.xpose.msra.mxu0 %v1388
    %1390 = vmatprep.subr.mxu0 0.0
    %v1391 = vand.u32 %v928, 4294901760
    %1392 = vmatpush1.xpose.msra.mxu0 %v1391
    %1393 = vmatprep.subr.mxu0 0.0
    %v1394 = vand.u32 %v931, 4294901760
    %1395 = vmatpush1.xpose.msra.mxu0 %v1394
    %1396 = vmatprep.subr.mxu0 0.0
    %v1397 = vand.u32 %v934, 4294901760
    %1398 = vmatpush1.xpose.msra.mxu0 %v1397
    %1399 = vmatprep.subr.mxu0 0.0
    %v1400 = vand.u32 %v937, 4294901760
    %1401 = vmatpush1.xpose.msra.mxu0 %v1400
    %1402 = vmatprep.subr.mxu0 0.0
    %v1403 = vand.u32 %v940, 4294901760
    %1404 = vmatpush1.xpose.msra.mxu0 %v1403
    %1405 = vmatprep.subr.mxu0 0.0
    %v1406 = vand.u32 %v943, 4294901760
    %1407 = vmatpush1.xpose.msra.mxu0 %v1406
    %1408 = vmatprep.subr.mxu0 0.0
    %v1409 = vand.u32 %v946, 4294901760
    %1410 = vmatpush1.xpose.msra.mxu0 %v1409
    %1411 = vmatprep.subr.mxu0 0.0
    %v1412 = vand.u32 %v949, 4294901760
    %1413 = vmatpush1.xpose.msra.mxu0 %v1412
    %1414 = vmatprep.subr.mxu0 0.0
    %v1415 = vand.u32 %v952, 4294901760
    %1416 = vmatpush1.xpose.msra.mxu0 %v1415
    %1417 = vmatprep.subr.mxu0 0.0
    %v1418 = vand.u32 %v955, 4294901760
    %1419 = vmatpush1.xpose.msra.mxu0 %v1418
    %1420 = vmatprep.subr.mxu0 0.0
    %v1421 = vand.u32 %v958, 4294901760
    %1422 = vmatpush1.xpose.msra.mxu0 %v1421
    %1423 = vmatprep.subr.mxu0 0.0
    %v1424 = vand.u32 %v961, 4294901760
    %1425 = vmatpush1.xpose.msra.mxu0 %v1424
    %1426 = vmatprep.subr.mxu0 0.0
    %1427 = vmatpush1.xpose.msra.mxu0 0.0
    %1428 = vmatprep.subr.mxu0 0.0
    %1429 = vmatpush1.xpose.msra.mxu0 0.0
    %1430 = vmatprep.subr.mxu0 0.0
    %1431 = vmatpush1.xpose.msra.mxu0 0.0
    %1432 = vmatprep.subr.mxu0 0.0
    %1433 = vmatpush1.xpose.msra.mxu0 0.0
    %1434 = vmatprep.subr.mxu0 0.0
    %1435 = vmatpush1.xpose.msra.mxu0 0.0
    %1436 = vmatprep.subr.mxu0 0.0
    %1437 = vmatpush1.xpose.msra.mxu0 0.0
    %1438 = vmatprep.subr.mxu0 0.0
    %1439 = vmatpush1.xpose.msra.mxu0 0.0
    %1440 = vmatprep.subr.mxu0 0.0
    %1441 = vmatpush1.xpose.msra.mxu0 0.0
    %1442 = vmatprep.subr.mxu0 0.0
    %1443 = vmatpush1.xpose.msra.mxu0 0.0
    %1444 = vmatprep.subr.mxu0 0.0
    %1445 = vmatpush1.xpose.msra.mxu0 0.0
    %1446 = vmatprep.subr.mxu0 0.0
    %1447 = vmatpush1.xpose.msra.mxu0 0.0
    %1448 = vmatprep.subr.mxu0 0.0
    %1449 = vmatpush1.xpose.msra.mxu0 0.0
    %1450 = vmatprep.subr.mxu0 0.0
    %1451 = vmatpush1.xpose.msra.mxu0 0.0
    %1452 = vmatprep.subr.mxu0 0.0
    %1453 = vmatpush1.xpose.msra.mxu0 0.0
    %1454 = vmatprep.subr.mxu0 0.0
    %1455 = vmatpush1.xpose.msra.mxu0 0.0
    %1456 = vmatprep.subr.mxu0 0.0
    %1457 = vmatpush1.xpose.msra.mxu0 0.0
    %1458 = vmatprep.mubr.f32.mxu0 0.0
    %v1459 = vand.u32 %v907, 4294901760
    %v1460 = vsub.f32 %v907, %v1459
    %v1461 = vand.u32 %v1460, 4294901760
    %1462 = vmatmul.mubr.f32.gmra.mrb[0].mxu0 %v1461
    %v1463 = vpop.f32.mrb[0].mxu0
    %v1464 = vadd.f32 %v1354, %v1463
    %v1465 = vpop.f32.mrb[0].mxu0
    %1466 = vmatprep.mubr.f32.mxu0 0.0
    %v1467 = vand.u32 %v909, 4294901760
    %v1468 = vsub.f32 %v909, %v1467
    %v1469 = vand.u32 %v1468, 4294901760
    %1470 = vmatmul.mubr.f32.gmra.mrb[0].mxu0 %v1469
    %v1471 = vpop.f32.mrb[0].mxu0
    %v1472 = vadd.f32 %v1361, %v1471
    %v1473 = vpop.f32.mrb[0].mxu0
    %1474 = vmatprep.mubr.f32.mxu0 0.0
    %v1475 = vand.u32 %v911, 4294901760
    %v1476 = vsub.f32 %v911, %v1475
    %v1477 = vand.u32 %v1476, 4294901760
    %1478 = vmatmul.mubr.f32.gmra.mrb[0].mxu0 %v1477
    %v1479 = vpop.f32.mrb[0].mxu0
    %v1480 = vadd.f32 %v1368, %v1479
    %v1481 = vpop.f32.mrb[0].mxu0
    %1482 = vmatprep.mubr.f32.mxu0 0.0
    %v1483 = vand.u32 %v913, 4294901760
    %v1484 = vsub.f32 %v913, %v1483
    %v1485 = vand.u32 %v1484, 4294901760
    %1486 = vmatmul.mubr.f32.gmra.mrb[0].mxu0 %v1485
    %v1487 = vpop.f32.mrb[0].mxu0
    %v1488 = vadd.f32 %v1375, %v1487
    %v1489 = vpop.f32.mrb[0].mxu0
    %1490 = vdwg.mxu0
    %1491 = vmatprep.subr.mxu0 0.0
    %v1492 = vand.u32 %v916, 4294901760
    %v1493 = vsub.f32 %v916, %v1492
    %v1494 = vand.u32 %v1493, 4294901760
    %1495 = vmatpush1.xpose.msra.mxu0 %v1494
    %1496 = vmatprep.subr.mxu0 0.0
    %v1497 = vand.u32 %v919, 4294901760
    %v1498 = vsub.f32 %v919, %v1497
    %v1499 = vand.u32 %v1498, 4294901760
    %1500 = vmatpush1.xpose.msra.mxu0 %v1499
    %1501 = vmatprep.subr.mxu0 0.0
    %v1502 = vand.u32 %v922, 4294901760
    %v1503 = vsub.f32 %v922, %v1502
    %v1504 = vand.u32 %v1503, 4294901760
    %1505 = vmatpush1.xpose.msra.mxu0 %v1504
    %1506 = vmatprep.subr.mxu0 0.0
    %v1507 = vand.u32 %v925, 4294901760
    %v1508 = vsub.f32 %v925, %v1507
    %v1509 = vand.u32 %v1508, 4294901760
    %1510 = vmatpush1.xpose.msra.mxu0 %v1509
    %1511 = vmatprep.subr.mxu0 0.0
    %v1512 = vand.u32 %v928, 4294901760
    %v1513 = vsub.f32 %v928, %v1512
    %v1514 = vand.u32 %v1513, 4294901760
    %1515 = vmatpush1.xpose.msra.mxu0 %v1514
    %1516 = vmatprep.subr.mxu0 0.0
    %v1517 = vand.u32 %v931, 4294901760
    %v1518 = vsub.f32 %v931, %v1517
    %v1519 = vand.u32 %v1518, 4294901760
    %1520 = vmatpush1.xpose.msra.mxu0 %v1519
    %1521 = vmatprep.subr.mxu0 0.0
    %v1522 = vand.u32 %v934, 4294901760
    %v1523 = vsub.f32 %v934, %v1522
    %v1524 = vand.u32 %v1523, 4294901760
    %1525 = vmatpush1.xpose.msra.mxu0 %v1524
    %1526 = vmatprep.subr.mxu0 0.0
    %v1527 = vand.u32 %v937, 4294901760
    %v1528 = vsub.f32 %v937, %v1527
    %v1529 = vand.u32 %v1528, 4294901760
    %1530 = vmatpush1.xpose.msra.mxu0 %v1529
    %1531 = vmatprep.subr.mxu0 0.0
    %v1532 = vand.u32 %v940, 4294901760
    %v1533 = vsub.f32 %v940, %v1532
    %v1534 = vand.u32 %v1533, 4294901760
    %1535 = vmatpush1.xpose.msra.mxu0 %v1534
    %1536 = vmatprep.subr.mxu0 0.0
    %v1537 = vand.u32 %v943, 4294901760
    %v1538 = vsub.f32 %v943, %v1537
    %v1539 = vand.u32 %v1538, 4294901760
    %1540 = vmatpush1.xpose.msra.mxu0 %v1539
    %1541 = vmatprep.subr.mxu0 0.0
    %v1542 = vand.u32 %v946, 4294901760
    %v1543 = vsub.f32 %v946, %v1542
    %v1544 = vand.u32 %v1543, 4294901760
    %1545 = vmatpush1.xpose.msra.mxu0 %v1544
    %1546 = vmatprep.subr.mxu0 0.0
    %v1547 = vand.u32 %v949, 4294901760
    %v1548 = vsub.f32 %v949, %v1547
    %v1549 = vand.u32 %v1548, 4294901760
    %1550 = vmatpush1.xpose.msra.mxu0 %v1549
    %1551 = vmatprep.subr.mxu0 0.0
    %v1552 = vand.u32 %v952, 4294901760
    %v1553 = vsub.f32 %v952, %v1552
    %v1554 = vand.u32 %v1553, 4294901760
    %1555 = vmatpush1.xpose.msra.mxu0 %v1554
    %1556 = vmatprep.subr.mxu0 0.0
    %v1557 = vand.u32 %v955, 4294901760
    %v1558 = vsub.f32 %v955, %v1557
    %v1559 = vand.u32 %v1558, 4294901760
    %1560 = vmatpush1.xpose.msra.mxu0 %v1559
    %1561 = vmatprep.subr.mxu0 0.0
    %v1562 = vand.u32 %v958, 4294901760
    %v1563 = vsub.f32 %v958, %v1562
    %v1564 = vand.u32 %v1563, 4294901760
    %1565 = vmatpush1.xpose.msra.mxu0 %v1564
    %1566 = vmatprep.subr.mxu0 0.0
    %v1567 = vand.u32 %v961, 4294901760
    %v1568 = vsub.f32 %v961, %v1567
    %v1569 = vand.u32 %v1568, 4294901760
    %1570 = vmatpush1.xpose.msra.mxu0 %v1569
    %1571 = vmatprep.subr.mxu0 0.0
    %1572 = vmatpush1.xpose.msra.mxu0 0.0
    %1573 = vmatprep.subr.mxu0 0.0
    %1574 = vmatpush1.xpose.msra.mxu0 0.0
    %1575 = vmatprep.subr.mxu0 0.0
    %1576 = vmatpush1.xpose.msra.mxu0 0.0
    %1577 = vmatprep.subr.mxu0 0.0
    %1578 = vmatpush1.xpose.msra.mxu0 0.0
    %1579 = vmatprep.subr.mxu0 0.0
    %1580 = vmatpush1.xpose.msra.mxu0 0.0
    %1581 = vmatprep.subr.mxu0 0.0
    %1582 = vmatpush1.xpose.msra.mxu0 0.0
    %1583 = vmatprep.subr.mxu0 0.0
    %1584 = vmatpush1.xpose.msra.mxu0 0.0
    %1585 = vmatprep.subr.mxu0 0.0
    %1586 = vmatpush1.xpose.msra.mxu0 0.0
    %1587 = vmatprep.subr.mxu0 0.0
    %1588 = vmatpush1.xpose.msra.mxu0 0.0
    %1589 = vmatprep.subr.mxu0 0.0
    %1590 = vmatpush1.xpose.msra.mxu0 0.0
    %1591 = vmatprep.subr.mxu0 0.0
    %1592 = vmatpush1.xpose.msra.mxu0 0.0
    %1593 = vmatprep.subr.mxu0 0.0
    %1594 = vmatpush1.xpose.msra.mxu0 0.0
    %1595 = vmatprep.subr.mxu0 0.0
    %1596 = vmatpush1.xpose.msra.mxu0 0.0
    %1597 = vmatprep.subr.mxu0 0.0
    %1598 = vmatpush1.xpose.msra.mxu0 0.0
    %1599 = vmatprep.subr.mxu0 0.0
    %1600 = vmatpush1.xpose.msra.mxu0 0.0
    %1601 = vmatprep.subr.mxu0 0.0
    %1602 = vmatpush1.xpose.msra.mxu0 0.0
    %1603 = vmatprep.mubr.f32.mxu0 0.0
    %v1604 = vand.u32 %v907, 4294901760
    %1605 = vmatmul.mubr.f32.gmra.mrb[0].mxu0 %v1604
    %v1606 = vpop.f32.mrb[0].mxu0
    %v1607 = vadd.f32 %v1464, %v1606
    %v1608 = vpop.f32.mrb[0].mxu0
    %1609 = vmatprep.mubr.f32.mxu0 0.0
    %v1610 = vand.u32 %v909, 4294901760
    %1611 = vmatmul.mubr.f32.gmra.mrb[0].mxu0 %v1610
    %v1612 = vpop.f32.mrb[0].mxu0
    %v1613 = vadd.f32 %v1472, %v1612
    %v1614 = vpop.f32.mrb[0].mxu0
    %1615 = vmatprep.mubr.f32.mxu0 0.0
    %v1616 = vand.u32 %v911, 4294901760
    %1617 = vmatmul.mubr.f32.gmra.mrb[0].mxu0 %v1616
    %v1618 = vpop.f32.mrb[0].mxu0
    %v1619 = vadd.f32 %v1480, %v1618
    %v1620 = vpop.f32.mrb[0].mxu0
    %1621 = vmatprep.mubr.f32.mxu0 0.0
    %v1622 = vand.u32 %v913, 4294901760
    %1623 = vmatmul.mubr.f32.gmra.mrb[0].mxu0 %v1622
    %v1624 = vpop.f32.mrb[0].mxu0
    %v1625 = vadd.f32 %v1488, %v1624
    %v1626 = vpop.f32.mrb[0].mxu0
    %1627 = vdwg.mxu0
    %1628 = vmatprep.subr.mxu0 0.0
    %v1629 = vand.u32 %v916, 4294901760
    %1630 = vmatpush1.xpose.msra.mxu0 %v1629
    %1631 = vmatprep.subr.mxu0 0.0
    %v1632 = vand.u32 %v919, 4294901760
    %1633 = vmatpush1.xpose.msra.mxu0 %v1632
    %1634 = vmatprep.subr.mxu0 0.0
    %v1635 = vand.u32 %v922, 4294901760
    %1636 = vmatpush1.xpose.msra.mxu0 %v1635
    %1637 = vmatprep.subr.mxu0 0.0
    %v1638 = vand.u32 %v925, 4294901760
    %1639 = vmatpush1.xpose.msra.mxu0 %v1638
    %1640 = vmatprep.subr.mxu0 0.0
    %v1641 = vand.u32 %v928, 4294901760
    %1642 = vmatpush1.xpose.msra.mxu0 %v1641
    %1643 = vmatprep.subr.mxu0 0.0
    %v1644 = vand.u32 %v931, 4294901760
    %1645 = vmatpush1.xpose.msra.mxu0 %v1644
    %1646 = vmatprep.subr.mxu0 0.0
    %v1647 = vand.u32 %v934, 4294901760
    %1648 = vmatpush1.xpose.msra.mxu0 %v1647
    %1649 = vmatprep.subr.mxu0 0.0
    %v1650 = vand.u32 %v937, 4294901760
    %1651 = vmatpush1.xpose.msra.mxu0 %v1650
    %1652 = vmatprep.subr.mxu0 0.0
    %v1653 = vand.u32 %v940, 4294901760
    %1654 = vmatpush1.xpose.msra.mxu0 %v1653
    %1655 = vmatprep.subr.mxu0 0.0
    %v1656 = vand.u32 %v943, 4294901760
    %1657 = vmatpush1.xpose.msra.mxu0 %v1656
    %1658 = vmatprep.subr.mxu0 0.0
    %v1659 = vand.u32 %v946, 4294901760
    %1660 = vmatpush1.xpose.msra.mxu0 %v1659
    %1661 = vmatprep.subr.mxu0 0.0
    %v1662 = vand.u32 %v949, 4294901760
    %1663 = vmatpush1.xpose.msra.mxu0 %v1662
    %1664 = vmatprep.subr.mxu0 0.0
    %v1665 = vand.u32 %v952, 4294901760
    %1666 = vmatpush1.xpose.msra.mxu0 %v1665
    %1667 = vmatprep.subr.mxu0 0.0
    %v1668 = vand.u32 %v955, 4294901760
    %1669 = vmatpush1.xpose.msra.mxu0 %v1668
    %1670 = vmatprep.subr.mxu0 0.0
    %v1671 = vand.u32 %v958, 4294901760
    %1672 = vmatpush1.xpose.msra.mxu0 %v1671
    %1673 = vmatprep.subr.mxu0 0.0
    %v1674 = vand.u32 %v961, 4294901760
    %1675 = vmatpush1.xpose.msra.mxu0 %v1674
    %1676 = vmatprep.subr.mxu0 0.0
    %1677 = vmatpush1.xpose.msra.mxu0 0.0
    %1678 = vmatprep.subr.mxu0 0.0
    %1679 = vmatpush1.xpose.msra.mxu0 0.0
    %1680 = vmatprep.subr.mxu0 0.0
    %1681 = vmatpush1.xpose.msra.mxu0 0.0
    %1682 = vmatprep.subr.mxu0 0.0
    %1683 = vmatpush1.xpose.msra.mxu0 0.0
    %1684 = vmatprep.subr.mxu0 0.0
    %1685 = vmatpush1.xpose.msra.mxu0 0.0
    %1686 = vmatprep.subr.mxu0 0.0
    %1687 = vmatpush1.xpose.msra.mxu0 0.0
    %1688 = vmatprep.subr.mxu0 0.0
    %1689 = vmatpush1.xpose.msra.mxu0 0.0
    %1690 = vmatprep.subr.mxu0 0.0
    %1691 = vmatpush1.xpose.msra.mxu0 0.0
    %1692 = vmatprep.subr.mxu0 0.0
    %1693 = vmatpush1.xpose.msra.mxu0 0.0
    %1694 = vmatprep.subr.mxu0 0.0
    %1695 = vmatpush1.xpose.msra.mxu0 0.0
    %1696 = vmatprep.subr.mxu0 0.0
    %1697 = vmatpush1.xpose.msra.mxu0 0.0
    %1698 = vmatprep.subr.mxu0 0.0
    %1699 = vmatpush1.xpose.msra.mxu0 0.0
    %1700 = vmatprep.subr.mxu0 0.0
    %1701 = vmatpush1.xpose.msra.mxu0 0.0
    %1702 = vmatprep.subr.mxu0 0.0
    %1703 = vmatpush1.xpose.msra.mxu0 0.0
    %1704 = vmatprep.subr.mxu0 0.0
    %1705 = vmatpush1.xpose.msra.mxu0 0.0
    %1706 = vmatprep.subr.mxu0 0.0
    %1707 = vmatpush1.xpose.msra.mxu0 0.0
    %1708 = vmatprep.mubr.f32.mxu0 0.0
    %v1709 = vand.u32 %v907, 4294901760
    %1710 = vmatmul.mubr.f32.gmra.mrb[0].mxu0 %v1709
    %v1711 = vpop.f32.mrb[0].mxu0
    %v1712 = vadd.f32 %v1607, %v1711
    %v1713 = vpop.f32.mrb[0].mxu0
    %1714 = vmatprep.mubr.f32.mxu0 0.0
    %v1715 = vand.u32 %v909, 4294901760
    %1716 = vmatmul.mubr.f32.gmra.mrb[0].mxu0 %v1715
    %v1717 = vpop.f32.mrb[0].mxu0
    %v1718 = vadd.f32 %v1613, %v1717
    %v1719 = vpop.f32.mrb[0].mxu0
    %1720 = vmatprep.mubr.f32.mxu0 0.0
    %v1721 = vand.u32 %v911, 4294901760
    %1722 = vmatmul.mubr.f32.gmra.mrb[0].mxu0 %v1721
    %v1723 = vpop.f32.mrb[0].mxu0
    %v1724 = vadd.f32 %v1619, %v1723
    %v1725 = vpop.f32.mrb[0].mxu0
    %1726 = vmatprep.mubr.f32.mxu0 0.0
    %v1727 = vand.u32 %v913, 4294901760
    %1728 = vmatmul.mubr.f32.gmra.mrb[0].mxu0 %v1727
    %v1729 = vpop.f32.mrb[0].mxu0
    %v1730 = vadd.f32 %v1625, %v1729
    %v1731 = vpop.f32.mrb[0].mxu0
    %1732 = vdwg.mxu0
    %1734 = vset.pattern.permute.xlu0 0
    %1735 = vperm.xlu0 %1734, %v63
    %v1736 = vpop.permute.xlu0 %1735
    %1739 = vset.pattern.permute.xlu0 0
    %1740 = vperm.xlu0 %1739, %v64
    %v1741 = vpop.permute.xlu0 %1740
    %1744 = vset.pattern.permute.xlu0 0
    %1745 = vperm.xlu0 %1744, %v65
    %v1746 = vpop.permute.xlu0 %1745
    %1749 = vset.pattern.permute.xlu0 0
    %1750 = vperm.xlu0 %1749, %v66
    %v1751 = vpop.permute.xlu0 %1750
    %v1753 = vadd.f32 %v1712, %v1736
    %v1754 = vadd.f32 %v1718, %v1741
    %v1755 = vadd.f32 %v1724, %v1746
    %v1756 = vadd.f32 %v1730, %v1751
    %v1757 = vmax.f32 %v1753, 0.0
    %v1758 = vmax.f32 %v1754, 0.0
    %v1759 = vmax.f32 %v1755, 0.0
    %v1760 = vmax.f32 %v1756, 0.0
    %1761 = vset.pattern.permute.xlu0 1
    %1762 = vperm.xlu0 %1761, %v63
    %v1763 = vpop.permute.xlu0 %1762
    %1765 = vset.pattern.permute.xlu0 1
    %1766 = vperm.xlu0 %1765, %v64
    %v1767 = vpop.permute.xlu0 %1766
    %1769 = vset.pattern.permute.xlu0 1
    %1770 = vperm.xlu0 %1769, %v65
    %v1771 = vpop.permute.xlu0 %1770
    %1773 = vset.pattern.permute.xlu0 1
    %1774 = vperm.xlu0 %1773, %v66
    %v1775 = vpop.permute.xlu0 %1774
    %vm1777 = vcmask 261120
    %v1779 = vsel %vm1777, %v54, 0
    %v1782 = vsel %vm1777, %v55, 0
    %v1785 = vsel %vm1777, %v56, 0
    %v1788 = vsel %vm1777, %v57, 0
    %1790 = vmatprep.subr.mxu0 0.0
    %v1791 = vand.u32 %v1757, 4294901760
    %1792 = vmatpush1.msra.mxu0 %v1791
    %1793 = vmatprep.subr.mxu0 0.0
    %v1794 = vand.u32 %v1758, 4294901760
    %1795 = vmatpush1.msra.mxu0 %v1794
    %1796 = vmatprep.subr.mxu0 0.0
    %v1797 = vand.u32 %v1759, 4294901760
    %1798 = vmatpush1.msra.mxu0 %v1797
    %1799 = vmatprep.subr.mxu0 0.0
    %v1800 = vand.u32 %v1760, 4294901760
    %1801 = vmatpush1.msra.mxu0 %v1800
    %1802 = vmatprep.subr.mxu0 0.0
    %1803 = vmatpush1.msra.mxu0 0.0
    %1804 = vmatprep.subr.mxu0 0.0
    %1805 = vmatpush1.msra.mxu0 0.0
    %1806 = vmatprep.subr.mxu0 0.0
    %1807 = vmatpush1.msra.mxu0 0.0
    %1808 = vmatprep.subr.mxu0 0.0
    %1809 = vmatpush1.msra.mxu0 0.0
    %1810 = vmatprep.subr.mxu0 0.0
    %1811 = vmatpush1.msra.mxu0 0.0
    %1812 = vmatprep.subr.mxu0 0.0
    %1813 = vmatpush1.msra.mxu0 0.0
    %1814 = vmatprep.subr.mxu0 0.0
    %1815 = vmatpush1.msra.mxu0 0.0
    %1816 = vmatprep.subr.mxu0 0.0
    %1817 = vmatpush1.msra.mxu0 0.0
    %1818 = vmatprep.subr.mxu0 0.0
    %1819 = vmatpush1.msra.mxu0 0.0
    %1820 = vmatprep.subr.mxu0 0.0
    %1821 = vmatpush1.msra.mxu0 0.0
    %1822 = vmatprep.subr.mxu0 0.0
    %1823 = vmatpush1.msra.mxu0 0.0
    %1824 = vmatprep.subr.mxu0 0.0
    %1825 = vmatpush1.msra.mxu0 0.0
    %1826 = vmatprep.subr.mxu0 0.0
    %1827 = vmatpush1.msra.mxu0 0.0
    %1828 = vmatprep.subr.mxu0 0.0
    %1829 = vmatpush1.msra.mxu0 0.0
    %1830 = vmatprep.subr.mxu0 0.0
    %1831 = vmatpush1.msra.mxu0 0.0
    %1832 = vmatprep.subr.mxu0 0.0
    %1833 = vmatpush1.msra.mxu0 0.0
    %1834 = vmatprep.subr.mxu0 0.0
    %1835 = vmatpush1.msra.mxu0 0.0
    %1836 = vmatprep.subr.mxu0 0.0
    %1837 = vmatpush1.msra.mxu0 0.0
    %1838 = vmatprep.subr.mxu0 0.0
    %1839 = vmatpush1.msra.mxu0 0.0
    %1840 = vmatprep.subr.mxu0 0.0
    %1841 = vmatpush1.msra.mxu0 0.0
    %1842 = vmatprep.subr.mxu0 0.0
    %1843 = vmatpush1.msra.mxu0 0.0
    %1844 = vmatprep.subr.mxu0 0.0
    %1845 = vmatpush1.msra.mxu0 0.0
    %1846 = vmatprep.subr.mxu0 0.0
    %1847 = vmatpush1.msra.mxu0 0.0
    %1848 = vmatprep.subr.mxu0 0.0
    %1849 = vmatpush1.msra.mxu0 0.0
    %1850 = vmatprep.subr.mxu0 0.0
    %1851 = vmatpush1.msra.mxu0 0.0
    %1852 = vmatprep.subr.mxu0 0.0
    %1853 = vmatpush1.msra.mxu0 0.0
    %1854 = vmatprep.subr.mxu0 0.0
    %1855 = vmatpush1.msra.mxu0 0.0
    %1856 = vmatprep.subr.mxu0 0.0
    %1857 = vmatpush1.msra.mxu0 0.0
    %1858 = vmatprep.mubr.f32.mxu0 0.0
    %v1859 = vand.u32 %v1779, 4294901760
    %v1860 = vsub.f32 %v1779, %v1859
    %v1861 = vand.u32 %v1860, 4294901760
    %v1862 = vsub.f32 %v1860, %v1861
    %v1863 = vand.u32 %v1862, 4294901760
    %1864 = vmatmul.mubr.f32.gmra.mrb[0].mxu0 %v1863
    %v1865 = vpop.f32.mrb[0].mxu0
    %v1866 = vadd.f32 %v1763, %v1865
    %v1867 = vpop.f32.mrb[0].mxu0
    %1868 = vmatprep.mubr.f32.mxu0 0.0
    %v1869 = vand.u32 %v1782, 4294901760
    %v1870 = vsub.f32 %v1782, %v1869
    %v1871 = vand.u32 %v1870, 4294901760
    %v1872 = vsub.f32 %v1870, %v1871
    %v1873 = vand.u32 %v1872, 4294901760
    %1874 = vmatmul.mubr.f32.gmra.mrb[0].mxu0 %v1873
    %v1875 = vpop.f32.mrb[0].mxu0
    %v1876 = vadd.f32 %v1767, %v1875
    %v1877 = vpop.f32.mrb[0].mxu0
    %1878 = vmatprep.mubr.f32.mxu0 0.0
    %v1879 = vand.u32 %v1785, 4294901760
    %v1880 = vsub.f32 %v1785, %v1879
    %v1881 = vand.u32 %v1880, 4294901760
    %v1882 = vsub.f32 %v1880, %v1881
    %v1883 = vand.u32 %v1882, 4294901760
    %1884 = vmatmul.mubr.f32.gmra.mrb[0].mxu0 %v1883
    %v1885 = vpop.f32.mrb[0].mxu0
    %v1886 = vadd.f32 %v1771, %v1885
    %v1887 = vpop.f32.mrb[0].mxu0
    %1888 = vmatprep.mubr.f32.mxu0 0.0
    %v1889 = vand.u32 %v1788, 4294901760
    %v1890 = vsub.f32 %v1788, %v1889
    %v1891 = vand.u32 %v1890, 4294901760
    %v1892 = vsub.f32 %v1890, %v1891
    %v1893 = vand.u32 %v1892, 4294901760
    %1894 = vmatmul.mubr.f32.gmra.mrb[0].mxu0 %v1893
    %v1895 = vpop.f32.mrb[0].mxu0
    %v1896 = vadd.f32 %v1775, %v1895
    %v1897 = vpop.f32.mrb[0].mxu0
    %1898 = vdwg.mxu0
    %1899 = vmatprep.subr.mxu0 0.0
    %v1900 = vand.u32 %v1757, 4294901760
    %v1901 = vsub.f32 %v1757, %v1900
    %v1902 = vand.u32 %v1901, 4294901760
    %v1903 = vsub.f32 %v1901, %v1902
    %v1904 = vand.u32 %v1903, 4294901760
    %1905 = vmatpush1.msra.mxu0 %v1904
    %1906 = vmatprep.subr.mxu0 0.0
    %v1907 = vand.u32 %v1758, 4294901760
    %v1908 = vsub.f32 %v1758, %v1907
    %v1909 = vand.u32 %v1908, 4294901760
    %v1910 = vsub.f32 %v1908, %v1909
    %v1911 = vand.u32 %v1910, 4294901760
    %1912 = vmatpush1.msra.mxu0 %v1911
    %1913 = vmatprep.subr.mxu0 0.0
    %v1914 = vand.u32 %v1759, 4294901760
    %v1915 = vsub.f32 %v1759, %v1914
    %v1916 = vand.u32 %v1915, 4294901760
    %v1917 = vsub.f32 %v1915, %v1916
    %v1918 = vand.u32 %v1917, 4294901760
    %1919 = vmatpush1.msra.mxu0 %v1918
    %1920 = vmatprep.subr.mxu0 0.0
    %v1921 = vand.u32 %v1760, 4294901760
    %v1922 = vsub.f32 %v1760, %v1921
    %v1923 = vand.u32 %v1922, 4294901760
    %v1924 = vsub.f32 %v1922, %v1923
    %v1925 = vand.u32 %v1924, 4294901760
    %1926 = vmatpush1.msra.mxu0 %v1925
    %1927 = vmatprep.subr.mxu0 0.0
    %1928 = vmatpush1.msra.mxu0 0.0
    %1929 = vmatprep.subr.mxu0 0.0
    %1930 = vmatpush1.msra.mxu0 0.0
    %1931 = vmatprep.subr.mxu0 0.0
    %1932 = vmatpush1.msra.mxu0 0.0
    %1933 = vmatprep.subr.mxu0 0.0
    %1934 = vmatpush1.msra.mxu0 0.0
    %1935 = vmatprep.subr.mxu0 0.0
    %1936 = vmatpush1.msra.mxu0 0.0
    %1937 = vmatprep.subr.mxu0 0.0
    %1938 = vmatpush1.msra.mxu0 0.0
    %1939 = vmatprep.subr.mxu0 0.0
    %1940 = vmatpush1.msra.mxu0 0.0
    %1941 = vmatprep.subr.mxu0 0.0
    %1942 = vmatpush1.msra.mxu0 0.0
    %1943 = vmatprep.subr.mxu0 0.0
    %1944 = vmatpush1.msra.mxu0 0.0
    %1945 = vmatprep.subr.mxu0 0.0
    %1946 = vmatpush1.msra.mxu0 0.0
    %1947 = vmatprep.subr.mxu0 0.0
    %1948 = vmatpush1.msra.mxu0 0.0
    %1949 = vmatprep.subr.mxu0 0.0
    %1950 = vmatpush1.msra.mxu0 0.0
    %1951 = vmatprep.subr.mxu0 0.0
    %1952 = vmatpush1.msra.mxu0 0.0
    %1953 = vmatprep.subr.mxu0 0.0
    %1954 = vmatpush1.msra.mxu0 0.0
    %1955 = vmatprep.subr.mxu0 0.0
    %1956 = vmatpush1.msra.mxu0 0.0
    %1957 = vmatprep.subr.mxu0 0.0
    %1958 = vmatpush1.msra.mxu0 0.0
    %1959 = vmatprep.subr.mxu0 0.0
    %1960 = vmatpush1.msra.mxu0 0.0
    %1961 = vmatprep.subr.mxu0 0.0
    %1962 = vmatpush1.msra.mxu0 0.0
    %1963 = vmatprep.subr.mxu0 0.0
    %1964 = vmatpush1.msra.mxu0 0.0
    %1965 = vmatprep.subr.mxu0 0.0
    %1966 = vmatpush1.msra.mxu0 0.0
    %1967 = vmatprep.subr.mxu0 0.0
    %1968 = vmatpush1.msra.mxu0 0.0
    %1969 = vmatprep.subr.mxu0 0.0
    %1970 = vmatpush1.msra.mxu0 0.0
    %1971 = vmatprep.subr.mxu0 0.0
    %1972 = vmatpush1.msra.mxu0 0.0
    %1973 = vmatprep.subr.mxu0 0.0
    %1974 = vmatpush1.msra.mxu0 0.0
    %1975 = vmatprep.subr.mxu0 0.0
    %1976 = vmatpush1.msra.mxu0 0.0
    %1977 = vmatprep.subr.mxu0 0.0
    %1978 = vmatpush1.msra.mxu0 0.0
    %1979 = vmatprep.subr.mxu0 0.0
    %1980 = vmatpush1.msra.mxu0 0.0
    %1981 = vmatprep.subr.mxu0 0.0
    %1982 = vmatpush1.msra.mxu0 0.0
    %1983 = vmatprep.mubr.f32.mxu0 0.0
    %v1984 = vand.u32 %v1779, 4294901760
    %1985 = vmatmul.mubr.f32.gmra.mrb[0].mxu0 %v1984
    %v1986 = vpop.f32.mrb[0].mxu0
    %v1987 = vadd.f32 %v1866, %v1986
    %v1988 = vpop.f32.mrb[0].mxu0
    %1989 = vmatprep.mubr.f32.mxu0 0.0
    %v1990 = vand.u32 %v1782, 4294901760
    %1991 = vmatmul.mubr.f32.gmra.mrb[0].mxu0 %v1990
    %v1992 = vpop.f32.mrb[0].mxu0
    %v1993 = vadd.f32 %v1876, %v1992
    %v1994 = vpop.f32.mrb[0].mxu0
    %1995 = vmatprep.mubr.f32.mxu0 0.0
    %v1996 = vand.u32 %v1785, 4294901760
    %1997 = vmatmul.mubr.f32.gmra.mrb[0].mxu0 %v1996
    %v1998 = vpop.f32.mrb[0].mxu0
    %v1999 = vadd.f32 %v1886, %v1998
    %v2000 = vpop.f32.mrb[0].mxu0
    %2001 = vmatprep.mubr.f32.mxu0 0.0
    %v2002 = vand.u32 %v1788, 4294901760
    %2003 = vmatmul.mubr.f32.gmra.mrb[0].mxu0 %v2002
    %v2004 = vpop.f32.mrb[0].mxu0
    %v2005 = vadd.f32 %v1896, %v2004
    %v2006 = vpop.f32.mrb[0].mxu0
    %2007 = vdwg.mxu0
    %2008 = vmatprep.subr.mxu0 0.0
    %v2009 = vand.u32 %v1757, 4294901760
    %v2010 = vsub.f32 %v1757, %v2009
    %2011 = vmatpush1.msra.mxu0 %v2010
    %2012 = vmatprep.subr.mxu0 0.0
    %v2013 = vand.u32 %v1758, 4294901760
    %v2014 = vsub.f32 %v1758, %v2013
    %2015 = vmatpush1.msra.mxu0 %v2014
    %2016 = vmatprep.subr.mxu0 0.0
    %v2017 = vand.u32 %v1759, 4294901760
    %v2018 = vsub.f32 %v1759, %v2017
    %2019 = vmatpush1.msra.mxu0 %v2018
    %2020 = vmatprep.subr.mxu0 0.0
    %v2021 = vand.u32 %v1760, 4294901760
    %v2022 = vsub.f32 %v1760, %v2021
    %2023 = vmatpush1.msra.mxu0 %v2022
    %2024 = vmatprep.subr.mxu0 0.0
    %2025 = vmatpush1.msra.mxu0 0.0
    %2026 = vmatprep.subr.mxu0 0.0
    %2027 = vmatpush1.msra.mxu0 0.0
    %2028 = vmatprep.subr.mxu0 0.0
    %2029 = vmatpush1.msra.mxu0 0.0
    %2030 = vmatprep.subr.mxu0 0.0
    %2031 = vmatpush1.msra.mxu0 0.0
    %2032 = vmatprep.subr.mxu0 0.0
    %2033 = vmatpush1.msra.mxu0 0.0
    %2034 = vmatprep.subr.mxu0 0.0
    %2035 = vmatpush1.msra.mxu0 0.0
    %2036 = vmatprep.subr.mxu0 0.0
    %2037 = vmatpush1.msra.mxu0 0.0
    %2038 = vmatprep.subr.mxu0 0.0
    %2039 = vmatpush1.msra.mxu0 0.0
    %2040 = vmatprep.subr.mxu0 0.0
    %2041 = vmatpush1.msra.mxu0 0.0
    %2042 = vmatprep.subr.mxu0 0.0
    %2043 = vmatpush1.msra.mxu0 0.0
    %2044 = vmatprep.subr.mxu0 0.0
    %2045 = vmatpush1.msra.mxu0 0.0
    %2046 = vmatprep.subr.mxu0 0.0
    %2047 = vmatpush1.msra.mxu0 0.0
    %2048 = vmatprep.subr.mxu0 0.0
    %2049 = vmatpush1.msra.mxu0 0.0
    %2050 = vmatprep.subr.mxu0 0.0
    %2051 = vmatpush1.msra.mxu0 0.0
    %2052 = vmatprep.subr.mxu0 0.0
    %2053 = vmatpush1.msra.mxu0 0.0
    %2054 = vmatprep.subr.mxu0 0.0
    %2055 = vmatpush1.msra.mxu0 0.0
    %2056 = vmatprep.subr.mxu0 0.0
    %2057 = vmatpush1.msra.mxu0 0.0
    %2058 = vmatprep.subr.mxu0 0.0
    %2059 = vmatpush1.msra.mxu0 0.0
    %2060 = vmatprep.subr.mxu0 0.0
    %2061 = vmatpush1.msra.mxu0 0.0
    %2062 = vmatprep.subr.mxu0 0.0
    %2063 = vmatpush1.msra.mxu0 0.0
    %2064 = vmatprep.subr.mxu0 0.0
    %2065 = vmatpush1.msra.mxu0 0.0
    %2066 = vmatprep.subr.mxu0 0.0
    %2067 = vmatpush1.msra.mxu0 0.0
    %2068 = vmatprep.subr.mxu0 0.0
    %2069 = vmatpush1.msra.mxu0 0.0
    %2070 = vmatprep.subr.mxu0 0.0
    %2071 = vmatpush1.msra.mxu0 0.0
    %2072 = vmatprep.subr.mxu0 0.0
    %2073 = vmatpush1.msra.mxu0 0.0
    %2074 = vmatprep.subr.mxu0 0.0
    %2075 = vmatpush1.msra.mxu0 0.0
    %2076 = vmatprep.subr.mxu0 0.0
    %2077 = vmatpush1.msra.mxu0 0.0
    %2078 = vmatprep.subr.mxu0 0.0
    %2079 = vmatpush1.msra.mxu0 0.0
    %2080 = vmatprep.mubr.f32.mxu0 0.0
    %v2081 = vand.u32 %v1779, 4294901760
    %v2082 = vsub.f32 %v1779, %v2081
    %2083 = vmatmul.mubr.f32.gmra.mrb[0].mxu0 %v2082
    %v2084 = vpop.f32.mrb[0].mxu0
    %v2085 = vadd.f32 %v1987, %v2084
    %v2086 = vpop.f32.mrb[0].mxu0
    %2087 = vmatprep.mubr.f32.mxu0 0.0
    %v2088 = vand.u32 %v1782, 4294901760
    %v2089 = vsub.f32 %v1782, %v2088
    %2090 = vmatmul.mubr.f32.gmra.mrb[0].mxu0 %v2089
    %v2091 = vpop.f32.mrb[0].mxu0
    %v2092 = vadd.f32 %v1993, %v2091
    %v2093 = vpop.f32.mrb[0].mxu0
    %2094 = vmatprep.mubr.f32.mxu0 0.0
    %v2095 = vand.u32 %v1785, 4294901760
    %v2096 = vsub.f32 %v1785, %v2095
    %2097 = vmatmul.mubr.f32.gmra.mrb[0].mxu0 %v2096
    %v2098 = vpop.f32.mrb[0].mxu0
    %v2099 = vadd.f32 %v1999, %v2098
    %v2100 = vpop.f32.mrb[0].mxu0
    %2101 = vmatprep.mubr.f32.mxu0 0.0
    %v2102 = vand.u32 %v1788, 4294901760
    %v2103 = vsub.f32 %v1788, %v2102
    %2104 = vmatmul.mubr.f32.gmra.mrb[0].mxu0 %v2103
    %v2105 = vpop.f32.mrb[0].mxu0
    %v2106 = vadd.f32 %v2005, %v2105
    %v2107 = vpop.f32.mrb[0].mxu0
    %2108 = vdwg.mxu0
    %2109 = vmatprep.subr.mxu0 0.0
    %v2110 = vand.u32 %v1757, 4294901760
    %2111 = vmatpush1.msra.mxu0 %v2110
    %2112 = vmatprep.subr.mxu0 0.0
    %v2113 = vand.u32 %v1758, 4294901760
    %2114 = vmatpush1.msra.mxu0 %v2113
    %2115 = vmatprep.subr.mxu0 0.0
    %v2116 = vand.u32 %v1759, 4294901760
    %2117 = vmatpush1.msra.mxu0 %v2116
    %2118 = vmatprep.subr.mxu0 0.0
    %v2119 = vand.u32 %v1760, 4294901760
    %2120 = vmatpush1.msra.mxu0 %v2119
    %2121 = vmatprep.subr.mxu0 0.0
    %2122 = vmatpush1.msra.mxu0 0.0
    %2123 = vmatprep.subr.mxu0 0.0
    %2124 = vmatpush1.msra.mxu0 0.0
    %2125 = vmatprep.subr.mxu0 0.0
    %2126 = vmatpush1.msra.mxu0 0.0
    %2127 = vmatprep.subr.mxu0 0.0
    %2128 = vmatpush1.msra.mxu0 0.0
    %2129 = vmatprep.subr.mxu0 0.0
    %2130 = vmatpush1.msra.mxu0 0.0
    %2131 = vmatprep.subr.mxu0 0.0
    %2132 = vmatpush1.msra.mxu0 0.0
    %2133 = vmatprep.subr.mxu0 0.0
    %2134 = vmatpush1.msra.mxu0 0.0
    %2135 = vmatprep.subr.mxu0 0.0
    %2136 = vmatpush1.msra.mxu0 0.0
    %2137 = vmatprep.subr.mxu0 0.0
    %2138 = vmatpush1.msra.mxu0 0.0
    %2139 = vmatprep.subr.mxu0 0.0
    %2140 = vmatpush1.msra.mxu0 0.0
    %2141 = vmatprep.subr.mxu0 0.0
    %2142 = vmatpush1.msra.mxu0 0.0
    %2143 = vmatprep.subr.mxu0 0.0
    %2144 = vmatpush1.msra.mxu0 0.0
    %2145 = vmatprep.subr.mxu0 0.0
    %2146 = vmatpush1.msra.mxu0 0.0
    %2147 = vmatprep.subr.mxu0 0.0
    %2148 = vmatpush1.msra.mxu0 0.0
    %2149 = vmatprep.subr.mxu0 0.0
    %2150 = vmatpush1.msra.mxu0 0.0
    %2151 = vmatprep.subr.mxu0 0.0
    %2152 = vmatpush1.msra.mxu0 0.0
    %2153 = vmatprep.subr.mxu0 0.0
    %2154 = vmatpush1.msra.mxu0 0.0
    %2155 = vmatprep.subr.mxu0 0.0
    %2156 = vmatpush1.msra.mxu0 0.0
    %2157 = vmatprep.subr.mxu0 0.0
    %2158 = vmatpush1.msra.mxu0 0.0
    %2159 = vmatprep.subr.mxu0 0.0
    %2160 = vmatpush1.msra.mxu0 0.0
    %2161 = vmatprep.subr.mxu0 0.0
    %2162 = vmatpush1.msra.mxu0 0.0
    %2163 = vmatprep.subr.mxu0 0.0
    %2164 = vmatpush1.msra.mxu0 0.0
    %2165 = vmatprep.subr.mxu0 0.0
    %2166 = vmatpush1.msra.mxu0 0.0
    %2167 = vmatprep.subr.mxu0 0.0
    %2168 = vmatpush1.msra.mxu0 0.0
    %2169 = vmatprep.subr.mxu0 0.0
    %2170 = vmatpush1.msra.mxu0 0.0
    %2171 = vmatprep.subr.mxu0 0.0
    %2172 = vmatpush1.msra.mxu0 0.0
    %2173 = vmatprep.subr.mxu0 0.0
    %2174 = vmatpush1.msra.mxu0 0.0
    %2175 = vmatprep.subr.mxu0 0.0
    %2176 = vmatpush1.msra.mxu0 0.0
    %2177 = vmatprep.mubr.f32.mxu0 0.0
    %v2178 = vand.u32 %v1779, 4294901760
    %v2179 = vsub.f32 %v1779, %v2178
    %v2180 = vand.u32 %v2179, 4294901760
    %2181 = vmatmul.mubr.f32.gmra.mrb[0].mxu0 %v2180
    %v2182 = vpop.f32.mrb[0].mxu0
    %v2183 = vadd.f32 %v2085, %v2182
    %v2184 = vpop.f32.mrb[0].mxu0
    %2185 = vmatprep.mubr.f32.mxu0 0.0
    %v2186 = vand.u32 %v1782, 4294901760
    %v2187 = vsub.f32 %v1782, %v2186
    %v2188 = vand.u32 %v2187, 4294901760
    %2189 = vmatmul.mubr.f32.gmra.mrb[0].mxu0 %v2188
    %v2190 = vpop.f32.mrb[0].mxu0
    %v2191 = vadd.f32 %v2092, %v2190
    %v2192 = vpop.f32.mrb[0].mxu0
    %2193 = vmatprep.mubr.f32.mxu0 0.0
    %v2194 = vand.u32 %v1785, 4294901760
    %v2195 = vsub.f32 %v1785, %v2194
    %v2196 = vand.u32 %v2195, 4294901760
    %2197 = vmatmul.mubr.f32.gmra.mrb[0].mxu0 %v2196
    %v2198 = vpop.f32.mrb[0].mxu0
    %v2199 = vadd.f32 %v2099, %v2198
    %v2200 = vpop.f32.mrb[0].mxu0
    %2201 = vmatprep.mubr.f32.mxu0 0.0
    %v2202 = vand.u32 %v1788, 4294901760
    %v2203 = vsub.f32 %v1788, %v2202
    %v2204 = vand.u32 %v2203, 4294901760
    %2205 = vmatmul.mubr.f32.gmra.mrb[0].mxu0 %v2204
    %v2206 = vpop.f32.mrb[0].mxu0
    %v2207 = vadd.f32 %v2106, %v2206
    %v2208 = vpop.f32.mrb[0].mxu0
    %2209 = vdwg.mxu0
    %2210 = vmatprep.subr.mxu0 0.0
    %v2211 = vand.u32 %v1757, 4294901760
    %v2212 = vsub.f32 %v1757, %v2211
    %v2213 = vand.u32 %v2212, 4294901760
    %2214 = vmatpush1.msra.mxu0 %v2213
    %2215 = vmatprep.subr.mxu0 0.0
    %v2216 = vand.u32 %v1758, 4294901760
    %v2217 = vsub.f32 %v1758, %v2216
    %v2218 = vand.u32 %v2217, 4294901760
    %2219 = vmatpush1.msra.mxu0 %v2218
    %2220 = vmatprep.subr.mxu0 0.0
    %v2221 = vand.u32 %v1759, 4294901760
    %v2222 = vsub.f32 %v1759, %v2221
    %v2223 = vand.u32 %v2222, 4294901760
    %2224 = vmatpush1.msra.mxu0 %v2223
    %2225 = vmatprep.subr.mxu0 0.0
    %v2226 = vand.u32 %v1760, 4294901760
    %v2227 = vsub.f32 %v1760, %v2226
    %v2228 = vand.u32 %v2227, 4294901760
    %2229 = vmatpush1.msra.mxu0 %v2228
    %2230 = vmatprep.subr.mxu0 0.0
    %2231 = vmatpush1.msra.mxu0 0.0
    %2232 = vmatprep.subr.mxu0 0.0
    %2233 = vmatpush1.msra.mxu0 0.0
    %2234 = vmatprep.subr.mxu0 0.0
    %2235 = vmatpush1.msra.mxu0 0.0
    %2236 = vmatprep.subr.mxu0 0.0
    %2237 = vmatpush1.msra.mxu0 0.0
    %2238 = vmatprep.subr.mxu0 0.0
    %2239 = vmatpush1.msra.mxu0 0.0
    %2240 = vmatprep.subr.mxu0 0.0
    %2241 = vmatpush1.msra.mxu0 0.0
    %2242 = vmatprep.subr.mxu0 0.0
    %2243 = vmatpush1.msra.mxu0 0.0
    %2244 = vmatprep.subr.mxu0 0.0
    %2245 = vmatpush1.msra.mxu0 0.0
    %2246 = vmatprep.subr.mxu0 0.0
    %2247 = vmatpush1.msra.mxu0 0.0
    %2248 = vmatprep.subr.mxu0 0.0
    %2249 = vmatpush1.msra.mxu0 0.0
    %2250 = vmatprep.subr.mxu0 0.0
    %2251 = vmatpush1.msra.mxu0 0.0
    %2252 = vmatprep.subr.mxu0 0.0
    %2253 = vmatpush1.msra.mxu0 0.0
    %2254 = vmatprep.subr.mxu0 0.0
    %2255 = vmatpush1.msra.mxu0 0.0
    %2256 = vmatprep.subr.mxu0 0.0
    %2257 = vmatpush1.msra.mxu0 0.0
    %2258 = vmatprep.subr.mxu0 0.0
    %2259 = vmatpush1.msra.mxu0 0.0
    %2260 = vmatprep.subr.mxu0 0.0
    %2261 = vmatpush1.msra.mxu0 0.0
    %2262 = vmatprep.subr.mxu0 0.0
    %2263 = vmatpush1.msra.mxu0 0.0
    %2264 = vmatprep.subr.mxu0 0.0
    %2265 = vmatpush1.msra.mxu0 0.0
    %2266 = vmatprep.subr.mxu0 0.0
    %2267 = vmatpush1.msra.mxu0 0.0
    %2268 = vmatprep.subr.mxu0 0.0
    %2269 = vmatpush1.msra.mxu0 0.0
    %2270 = vmatprep.subr.mxu0 0.0
    %2271 = vmatpush1.msra.mxu0 0.0
    %2272 = vmatprep.subr.mxu0 0.0
    %2273 = vmatpush1.msra.mxu0 0.0
    %2274 = vmatprep.subr.mxu0 0.0
    %2275 = vmatpush1.msra.mxu0 0.0
    %2276 = vmatprep.subr.mxu0 0.0
    %2277 = vmatpush1.msra.mxu0 0.0
    %2278 = vmatprep.subr.mxu0 0.0
    %2279 = vmatpush1.msra.mxu0 0.0
    %2280 = vmatprep.subr.mxu0 0.0
    %2281 = vmatpush1.msra.mxu0 0.0
    %2282 = vmatprep.subr.mxu0 0.0
    %2283 = vmatpush1.msra.mxu0 0.0
    %2284 = vmatprep.subr.mxu0 0.0
    %2285 = vmatpush1.msra.mxu0 0.0
    %2286 = vmatprep.mubr.f32.mxu0 0.0
    %v2287 = vand.u32 %v1779, 4294901760
    %2288 = vmatmul.mubr.f32.gmra.mrb[0].mxu0 %v2287
    %v2289 = vpop.f32.mrb[0].mxu0
    %v2290 = vadd.f32 %v2183, %v2289
    %v2291 = vpop.f32.mrb[0].mxu0
    %2292 = vmatprep.mubr.f32.mxu0 0.0
    %v2293 = vand.u32 %v1782, 4294901760
    %2294 = vmatmul.mubr.f32.gmra.mrb[0].mxu0 %v2293
    %v2295 = vpop.f32.mrb[0].mxu0
    %v2296 = vadd.f32 %v2191, %v2295
    %v2297 = vpop.f32.mrb[0].mxu0
    %2298 = vmatprep.mubr.f32.mxu0 0.0
    %v2299 = vand.u32 %v1785, 4294901760
    %2300 = vmatmul.mubr.f32.gmra.mrb[0].mxu0 %v2299
    %v2301 = vpop.f32.mrb[0].mxu0
    %v2302 = vadd.f32 %v2199, %v2301
    %v2303 = vpop.f32.mrb[0].mxu0
    %2304 = vmatprep.mubr.f32.mxu0 0.0
    %v2305 = vand.u32 %v1788, 4294901760
    %2306 = vmatmul.mubr.f32.gmra.mrb[0].mxu0 %v2305
    %v2307 = vpop.f32.mrb[0].mxu0
    %v2308 = vadd.f32 %v2207, %v2307
    %v2309 = vpop.f32.mrb[0].mxu0
    %2310 = vdwg.mxu0
    %2311 = vmatprep.subr.mxu0 0.0
    %v2312 = vand.u32 %v1757, 4294901760
    %2313 = vmatpush1.msra.mxu0 %v2312
    %2314 = vmatprep.subr.mxu0 0.0
    %v2315 = vand.u32 %v1758, 4294901760
    %2316 = vmatpush1.msra.mxu0 %v2315
    %2317 = vmatprep.subr.mxu0 0.0
    %v2318 = vand.u32 %v1759, 4294901760
    %2319 = vmatpush1.msra.mxu0 %v2318
    %2320 = vmatprep.subr.mxu0 0.0
    %v2321 = vand.u32 %v1760, 4294901760
    %2322 = vmatpush1.msra.mxu0 %v2321
    %2323 = vmatprep.subr.mxu0 0.0
    %2324 = vmatpush1.msra.mxu0 0.0
    %2325 = vmatprep.subr.mxu0 0.0
    %2326 = vmatpush1.msra.mxu0 0.0
    %2327 = vmatprep.subr.mxu0 0.0
    %2328 = vmatpush1.msra.mxu0 0.0
    %2329 = vmatprep.subr.mxu0 0.0
    %2330 = vmatpush1.msra.mxu0 0.0
    %2331 = vmatprep.subr.mxu0 0.0
    %2332 = vmatpush1.msra.mxu0 0.0
    %2333 = vmatprep.subr.mxu0 0.0
    %2334 = vmatpush1.msra.mxu0 0.0
    %2335 = vmatprep.subr.mxu0 0.0
    %2336 = vmatpush1.msra.mxu0 0.0
    %2337 = vmatprep.subr.mxu0 0.0
    %2338 = vmatpush1.msra.mxu0 0.0
    %2339 = vmatprep.subr.mxu0 0.0
    %2340 = vmatpush1.msra.mxu0 0.0
    %2341 = vmatprep.subr.mxu0 0.0
    %2342 = vmatpush1.msra.mxu0 0.0
    %2343 = vmatprep.subr.mxu0 0.0
    %2344 = vmatpush1.msra.mxu0 0.0
    %2345 = vmatprep.subr.mxu0 0.0
    %2346 = vmatpush1.msra.mxu0 0.0
    %2347 = vmatprep.subr.mxu0 0.0
    %2348 = vmatpush1.msra.mxu0 0.0
    %2349 = vmatprep.subr.mxu0 0.0
    %2350 = vmatpush1.msra.mxu0 0.0
    %2351 = vmatprep.subr.mxu0 0.0
    %2352 = vmatpush1.msra.mxu0 0.0
    %2353 = vmatprep.subr.mxu0 0.0
    %2354 = vmatpush1.msra.mxu0 0.0
    %2355 = vmatprep.subr.mxu0 0.0
    %2356 = vmatpush1.msra.mxu0 0.0
    %2357 = vmatprep.subr.mxu0 0.0
    %2358 = vmatpush1.msra.mxu0 0.0
    %2359 = vmatprep.subr.mxu0 0.0
    %2360 = vmatpush1.msra.mxu0 0.0
    %2361 = vmatprep.subr.mxu0 0.0
    %2362 = vmatpush1.msra.mxu0 0.0
    %2363 = vmatprep.subr.mxu0 0.0
    %2364 = vmatpush1.msra.mxu0 0.0
    %2365 = vmatprep.subr.mxu0 0.0
    %2366 = vmatpush1.msra.mxu0 0.0
    %2367 = vmatprep.subr.mxu0 0.0
    %2368 = vmatpush1.msra.mxu0 0.0
    %2369 = vmatprep.subr.mxu0 0.0
    %2370 = vmatpush1.msra.mxu0 0.0
    %2371 = vmatprep.subr.mxu0 0.0
    %2372 = vmatpush1.msra.mxu0 0.0
    %2373 = vmatprep.subr.mxu0 0.0
    %2374 = vmatpush1.msra.mxu0 0.0
    %2375 = vmatprep.subr.mxu0 0.0
    %2376 = vmatpush1.msra.mxu0 0.0
    %2377 = vmatprep.subr.mxu0 0.0
    %2378 = vmatpush1.msra.mxu0 0.0
    %2379 = vmatprep.mubr.f32.mxu0 0.0
    %v2380 = vand.u32 %v1779, 4294901760
    %2381 = vmatmul.mubr.f32.gmra.mrb[0].mxu0 %v2380
    %v2382 = vpop.f32.mrb[0].mxu0
    %v2383 = vadd.f32 %v2290, %v2382
    %v2384 = vpop.f32.mrb[0].mxu0
    %2385 = vmatprep.mubr.f32.mxu0 0.0
    %v2386 = vand.u32 %v1782, 4294901760
    %2387 = vmatmul.mubr.f32.gmra.mrb[0].mxu0 %v2386
    %v2388 = vpop.f32.mrb[0].mxu0
    %v2389 = vadd.f32 %v2296, %v2388
    %v2390 = vpop.f32.mrb[0].mxu0
    %2391 = vmatprep.mubr.f32.mxu0 0.0
    %v2392 = vand.u32 %v1785, 4294901760
    %2393 = vmatmul.mubr.f32.gmra.mrb[0].mxu0 %v2392
    %v2394 = vpop.f32.mrb[0].mxu0
    %v2395 = vadd.f32 %v2302, %v2394
    %v2396 = vpop.f32.mrb[0].mxu0
    %2397 = vmatprep.mubr.f32.mxu0 0.0
    %v2398 = vand.u32 %v1788, 4294901760
    %2399 = vmatmul.mubr.f32.gmra.mrb[0].mxu0 %v2398
    %v2400 = vpop.f32.mrb[0].mxu0
    %v2401 = vadd.f32 %v2308, %v2400
    %v2402 = vpop.f32.mrb[0].mxu0
    %2403 = vdwg.mxu0
    %v2404 = vmax.f32 %v2383, 0.0
    %v2405 = vmax.f32 %v2389, 0.0
    %v2406 = vmax.f32 %v2395, 0.0
    %v2407 = vmax.f32 %v2401, 0.0
    %2408 = vset.pattern.permute.xlu0 2
    %2409 = vperm.xlu0 %2408, %v63
    %v2410 = vpop.permute.xlu0 %2409
    %2412 = vset.pattern.permute.xlu0 2
    %2413 = vperm.xlu0 %2412, %v64
    %v2414 = vpop.permute.xlu0 %2413
    %2416 = vset.pattern.permute.xlu0 2
    %2417 = vperm.xlu0 %2416, %v65
    %v2418 = vpop.permute.xlu0 %2417
    %2420 = vset.pattern.permute.xlu0 2
    %2421 = vperm.xlu0 %2420, %v66
    %v2422 = vpop.permute.xlu0 %2421
    %v2425 = vsel %vm1777, %v58, 0
    %v2428 = vsel %vm1777, %v59, 0
    %v2431 = vsel %vm1777, %v60, 0
    %v2434 = vsel %vm1777, %v61, 0
    %2436 = vmatprep.subr.mxu0 0.0
    %v2437 = vand.u32 %v2404, 4294901760
    %2438 = vmatpush1.msra.mxu0 %v2437
    %2439 = vmatprep.subr.mxu0 0.0
    %v2440 = vand.u32 %v2405, 4294901760
    %2441 = vmatpush1.msra.mxu0 %v2440
    %2442 = vmatprep.subr.mxu0 0.0
    %v2443 = vand.u32 %v2406, 4294901760
    %2444 = vmatpush1.msra.mxu0 %v2443
    %2445 = vmatprep.subr.mxu0 0.0
    %v2446 = vand.u32 %v2407, 4294901760
    %2447 = vmatpush1.msra.mxu0 %v2446
    %2448 = vmatprep.subr.mxu0 0.0
    %2449 = vmatpush1.msra.mxu0 0.0
    %2450 = vmatprep.subr.mxu0 0.0
    %2451 = vmatpush1.msra.mxu0 0.0
    %2452 = vmatprep.subr.mxu0 0.0
    %2453 = vmatpush1.msra.mxu0 0.0
    %2454 = vmatprep.subr.mxu0 0.0
    %2455 = vmatpush1.msra.mxu0 0.0
    %2456 = vmatprep.subr.mxu0 0.0
    %2457 = vmatpush1.msra.mxu0 0.0
    %2458 = vmatprep.subr.mxu0 0.0
    %2459 = vmatpush1.msra.mxu0 0.0
    %2460 = vmatprep.subr.mxu0 0.0
    %2461 = vmatpush1.msra.mxu0 0.0
    %2462 = vmatprep.subr.mxu0 0.0
    %2463 = vmatpush1.msra.mxu0 0.0
    %2464 = vmatprep.subr.mxu0 0.0
    %2465 = vmatpush1.msra.mxu0 0.0
    %2466 = vmatprep.subr.mxu0 0.0
    %2467 = vmatpush1.msra.mxu0 0.0
    %2468 = vmatprep.subr.mxu0 0.0
    %2469 = vmatpush1.msra.mxu0 0.0
    %2470 = vmatprep.subr.mxu0 0.0
    %2471 = vmatpush1.msra.mxu0 0.0
    %2472 = vmatprep.subr.mxu0 0.0
    %2473 = vmatpush1.msra.mxu0 0.0
    %2474 = vmatprep.subr.mxu0 0.0
    %2475 = vmatpush1.msra.mxu0 0.0
    %2476 = vmatprep.subr.mxu0 0.0
    %2477 = vmatpush1.msra.mxu0 0.0
    %2478 = vmatprep.subr.mxu0 0.0
    %2479 = vmatpush1.msra.mxu0 0.0
    %2480 = vmatprep.subr.mxu0 0.0
    %2481 = vmatpush1.msra.mxu0 0.0
    %2482 = vmatprep.subr.mxu0 0.0
    %2483 = vmatpush1.msra.mxu0 0.0
    %2484 = vmatprep.subr.mxu0 0.0
    %2485 = vmatpush1.msra.mxu0 0.0
    %2486 = vmatprep.subr.mxu0 0.0
    %2487 = vmatpush1.msra.mxu0 0.0
    %2488 = vmatprep.subr.mxu0 0.0
    %2489 = vmatpush1.msra.mxu0 0.0
    %2490 = vmatprep.subr.mxu0 0.0
    %2491 = vmatpush1.msra.mxu0 0.0
    %2492 = vmatprep.subr.mxu0 0.0
    %2493 = vmatpush1.msra.mxu0 0.0
    %2494 = vmatprep.subr.mxu0 0.0
    %2495 = vmatpush1.msra.mxu0 0.0
    %2496 = vmatprep.subr.mxu0 0.0
    %2497 = vmatpush1.msra.mxu0 0.0
    %2498 = vmatprep.subr.mxu0 0.0
    %2499 = vmatpush1.msra.mxu0 0.0
    %2500 = vmatprep.subr.mxu0 0.0
    %2501 = vmatpush1.msra.mxu0 0.0
    %2502 = vmatprep.subr.mxu0 0.0
    %2503 = vmatpush1.msra.mxu0 0.0
    %2504 = vmatprep.mubr.f32.mxu0 0.0
    %v2505 = vand.u32 %v2425, 4294901760
    %v2506 = vsub.f32 %v2425, %v2505
    %v2507 = vand.u32 %v2506, 4294901760
    %v2508 = vsub.f32 %v2506, %v2507
    %v2509 = vand.u32 %v2508, 4294901760
    %2510 = vmatmul.mubr.f32.gmra.mrb[0].mxu0 %v2509
    %v2511 = vpop.f32.mrb[0].mxu0
    %v2512 = vadd.f32 %v2410, %v2511
    %v2513 = vpop.f32.mrb[0].mxu0
    %2514 = vmatprep.mubr.f32.mxu0 0.0
    %v2515 = vand.u32 %v2428, 4294901760
    %v2516 = vsub.f32 %v2428, %v2515
    %v2517 = vand.u32 %v2516, 4294901760
    %v2518 = vsub.f32 %v2516, %v2517
    %v2519 = vand.u32 %v2518, 4294901760
    %2520 = vmatmul.mubr.f32.gmra.mrb[0].mxu0 %v2519
    %v2521 = vpop.f32.mrb[0].mxu0
    %v2522 = vadd.f32 %v2414, %v2521
    %v2523 = vpop.f32.mrb[0].mxu0
    %2524 = vmatprep.mubr.f32.mxu0 0.0
    %v2525 = vand.u32 %v2431, 4294901760
    %v2526 = vsub.f32 %v2431, %v2525
    %v2527 = vand.u32 %v2526, 4294901760
    %v2528 = vsub.f32 %v2526, %v2527
    %v2529 = vand.u32 %v2528, 4294901760
    %2530 = vmatmul.mubr.f32.gmra.mrb[0].mxu0 %v2529
    %v2531 = vpop.f32.mrb[0].mxu0
    %v2532 = vadd.f32 %v2418, %v2531
    %v2533 = vpop.f32.mrb[0].mxu0
    %2534 = vmatprep.mubr.f32.mxu0 0.0
    %v2535 = vand.u32 %v2434, 4294901760
    %v2536 = vsub.f32 %v2434, %v2535
    %v2537 = vand.u32 %v2536, 4294901760
    %v2538 = vsub.f32 %v2536, %v2537
    %v2539 = vand.u32 %v2538, 4294901760
    %2540 = vmatmul.mubr.f32.gmra.mrb[0].mxu0 %v2539
    %v2541 = vpop.f32.mrb[0].mxu0
    %v2542 = vadd.f32 %v2422, %v2541
    %v2543 = vpop.f32.mrb[0].mxu0
    %2544 = vdwg.mxu0
    %2545 = vmatprep.subr.mxu0 0.0
    %v2546 = vand.u32 %v2404, 4294901760
    %v2547 = vsub.f32 %v2404, %v2546
    %v2548 = vand.u32 %v2547, 4294901760
    %v2549 = vsub.f32 %v2547, %v2548
    %v2550 = vand.u32 %v2549, 4294901760
    %2551 = vmatpush1.msra.mxu0 %v2550
    %2552 = vmatprep.subr.mxu0 0.0
    %v2553 = vand.u32 %v2405, 4294901760
    %v2554 = vsub.f32 %v2405, %v2553
    %v2555 = vand.u32 %v2554, 4294901760
    %v2556 = vsub.f32 %v2554, %v2555
    %v2557 = vand.u32 %v2556, 4294901760
    %2558 = vmatpush1.msra.mxu0 %v2557
    %2559 = vmatprep.subr.mxu0 0.0
    %v2560 = vand.u32 %v2406, 4294901760
    %v2561 = vsub.f32 %v2406, %v2560
    %v2562 = vand.u32 %v2561, 4294901760
    %v2563 = vsub.f32 %v2561, %v2562
    %v2564 = vand.u32 %v2563, 4294901760
    %2565 = vmatpush1.msra.mxu0 %v2564
    %2566 = vmatprep.subr.mxu0 0.0
    %v2567 = vand.u32 %v2407, 4294901760
    %v2568 = vsub.f32 %v2407, %v2567
    %v2569 = vand.u32 %v2568, 4294901760
    %v2570 = vsub.f32 %v2568, %v2569
    %v2571 = vand.u32 %v2570, 4294901760
    %2572 = vmatpush1.msra.mxu0 %v2571
    %2573 = vmatprep.subr.mxu0 0.0
    %2574 = vmatpush1.msra.mxu0 0.0
    %2575 = vmatprep.subr.mxu0 0.0
    %2576 = vmatpush1.msra.mxu0 0.0
    %2577 = vmatprep.subr.mxu0 0.0
    %2578 = vmatpush1.msra.mxu0 0.0
    %2579 = vmatprep.subr.mxu0 0.0
    %2580 = vmatpush1.msra.mxu0 0.0
    %2581 = vmatprep.subr.mxu0 0.0
    %2582 = vmatpush1.msra.mxu0 0.0
    %2583 = vmatprep.subr.mxu0 0.0
    %2584 = vmatpush1.msra.mxu0 0.0
    %2585 = vmatprep.subr.mxu0 0.0
    %2586 = vmatpush1.msra.mxu0 0.0
    %2587 = vmatprep.subr.mxu0 0.0
    %2588 = vmatpush1.msra.mxu0 0.0
    %2589 = vmatprep.subr.mxu0 0.0
    %2590 = vmatpush1.msra.mxu0 0.0
    %2591 = vmatprep.subr.mxu0 0.0
    %2592 = vmatpush1.msra.mxu0 0.0
    %2593 = vmatprep.subr.mxu0 0.0
    %2594 = vmatpush1.msra.mxu0 0.0
    %2595 = vmatprep.subr.mxu0 0.0
    %2596 = vmatpush1.msra.mxu0 0.0
    %2597 = vmatprep.subr.mxu0 0.0
    %2598 = vmatpush1.msra.mxu0 0.0
    %2599 = vmatprep.subr.mxu0 0.0
    %2600 = vmatpush1.msra.mxu0 0.0
    %2601 = vmatprep.subr.mxu0 0.0
    %2602 = vmatpush1.msra.mxu0 0.0
    %2603 = vmatprep.subr.mxu0 0.0
    %2604 = vmatpush1.msra.mxu0 0.0
    %2605 = vmatprep.subr.mxu0 0.0
    %2606 = vmatpush1.msra.mxu0 0.0
    %2607 = vmatprep.subr.mxu0 0.0
    %2608 = vmatpush1.msra.mxu0 0.0
    %2609 = vmatprep.subr.mxu0 0.0
    %2610 = vmatpush1.msra.mxu0 0.0
    %2611 = vmatprep.subr.mxu0 0.0
    %2612 = vmatpush1.msra.mxu0 0.0
    %2613 = vmatprep.subr.mxu0 0.0
    %2614 = vmatpush1.msra.mxu0 0.0
    %2615 = vmatprep.subr.mxu0 0.0
    %2616 = vmatpush1.msra.mxu0 0.0
    %2617 = vmatprep.subr.mxu0 0.0
    %2618 = vmatpush1.msra.mxu0 0.0
    %2619 = vmatprep.subr.mxu0 0.0
    %2620 = vmatpush1.msra.mxu0 0.0
    %2621 = vmatprep.subr.mxu0 0.0
    %2622 = vmatpush1.msra.mxu0 0.0
    %2623 = vmatprep.subr.mxu0 0.0
    %2624 = vmatpush1.msra.mxu0 0.0
    %2625 = vmatprep.subr.mxu0 0.0
    %2626 = vmatpush1.msra.mxu0 0.0
    %2627 = vmatprep.subr.mxu0 0.0
    %2628 = vmatpush1.msra.mxu0 0.0
    %2629 = vmatprep.mubr.f32.mxu0 0.0
    %v2630 = vand.u32 %v2425, 4294901760
    %2631 = vmatmul.mubr.f32.gmra.mrb[0].mxu0 %v2630
    %v2632 = vpop.f32.mrb[0].mxu0
    %v2633 = vadd.f32 %v2512, %v2632
    %v2634 = vpop.f32.mrb[0].mxu0
    %2635 = vmatprep.mubr.f32.mxu0 0.0
    %v2636 = vand.u32 %v2428, 4294901760
    %2637 = vmatmul.mubr.f32.gmra.mrb[0].mxu0 %v2636
    %v2638 = vpop.f32.mrb[0].mxu0
    %v2639 = vadd.f32 %v2522, %v2638
    %v2640 = vpop.f32.mrb[0].mxu0
    %2641 = vmatprep.mubr.f32.mxu0 0.0
    %v2642 = vand.u32 %v2431, 4294901760
    %2643 = vmatmul.mubr.f32.gmra.mrb[0].mxu0 %v2642
    %v2644 = vpop.f32.mrb[0].mxu0
    %v2645 = vadd.f32 %v2532, %v2644
    %v2646 = vpop.f32.mrb[0].mxu0
    %2647 = vmatprep.mubr.f32.mxu0 0.0
    %v2648 = vand.u32 %v2434, 4294901760
    %2649 = vmatmul.mubr.f32.gmra.mrb[0].mxu0 %v2648
    %v2650 = vpop.f32.mrb[0].mxu0
    %v2651 = vadd.f32 %v2542, %v2650
    %v2652 = vpop.f32.mrb[0].mxu0
    %2653 = vdwg.mxu0
    %2654 = vmatprep.subr.mxu0 0.0
    %v2655 = vand.u32 %v2404, 4294901760
    %v2656 = vsub.f32 %v2404, %v2655
    %2657 = vmatpush1.msra.mxu0 %v2656
    %2658 = vmatprep.subr.mxu0 0.0
    %v2659 = vand.u32 %v2405, 4294901760
    %v2660 = vsub.f32 %v2405, %v2659
    %2661 = vmatpush1.msra.mxu0 %v2660
    %2662 = vmatprep.subr.mxu0 0.0
    %v2663 = vand.u32 %v2406, 4294901760
    %v2664 = vsub.f32 %v2406, %v2663
    %2665 = vmatpush1.msra.mxu0 %v2664
    %2666 = vmatprep.subr.mxu0 0.0
    %v2667 = vand.u32 %v2407, 4294901760
    %v2668 = vsub.f32 %v2407, %v2667
    %2669 = vmatpush1.msra.mxu0 %v2668
    %2670 = vmatprep.subr.mxu0 0.0
    %2671 = vmatpush1.msra.mxu0 0.0
    %2672 = vmatprep.subr.mxu0 0.0
    %2673 = vmatpush1.msra.mxu0 0.0
    %2674 = vmatprep.subr.mxu0 0.0
    %2675 = vmatpush1.msra.mxu0 0.0
    %2676 = vmatprep.subr.mxu0 0.0
    %2677 = vmatpush1.msra.mxu0 0.0
    %2678 = vmatprep.subr.mxu0 0.0
    %2679 = vmatpush1.msra.mxu0 0.0
    %2680 = vmatprep.subr.mxu0 0.0
    %2681 = vmatpush1.msra.mxu0 0.0
    %2682 = vmatprep.subr.mxu0 0.0
    %2683 = vmatpush1.msra.mxu0 0.0
    %2684 = vmatprep.subr.mxu0 0.0
    %2685 = vmatpush1.msra.mxu0 0.0
    %2686 = vmatprep.subr.mxu0 0.0
    %2687 = vmatpush1.msra.mxu0 0.0
    %2688 = vmatprep.subr.mxu0 0.0
    %2689 = vmatpush1.msra.mxu0 0.0
    %2690 = vmatprep.subr.mxu0 0.0
    %2691 = vmatpush1.msra.mxu0 0.0
    %2692 = vmatprep.subr.mxu0 0.0
    %2693 = vmatpush1.msra.mxu0 0.0
    %2694 = vmatprep.subr.mxu0 0.0
    %2695 = vmatpush1.msra.mxu0 0.0
    %2696 = vmatprep.subr.mxu0 0.0
    %2697 = vmatpush1.msra.mxu0 0.0
    %2698 = vmatprep.subr.mxu0 0.0
    %2699 = vmatpush1.msra.mxu0 0.0
    %2700 = vmatprep.subr.mxu0 0.0
    %2701 = vmatpush1.msra.mxu0 0.0
    %2702 = vmatprep.subr.mxu0 0.0
    %2703 = vmatpush1.msra.mxu0 0.0
    %2704 = vmatprep.subr.mxu0 0.0
    %2705 = vmatpush1.msra.mxu0 0.0
    %2706 = vmatprep.subr.mxu0 0.0
    %2707 = vmatpush1.msra.mxu0 0.0
    %2708 = vmatprep.subr.mxu0 0.0
    %2709 = vmatpush1.msra.mxu0 0.0
    %2710 = vmatprep.subr.mxu0 0.0
    %2711 = vmatpush1.msra.mxu0 0.0
    %2712 = vmatprep.subr.mxu0 0.0
    %2713 = vmatpush1.msra.mxu0 0.0
    %2714 = vmatprep.subr.mxu0 0.0
    %2715 = vmatpush1.msra.mxu0 0.0
    %2716 = vmatprep.subr.mxu0 0.0
    %2717 = vmatpush1.msra.mxu0 0.0
    %2718 = vmatprep.subr.mxu0 0.0
    %2719 = vmatpush1.msra.mxu0 0.0
    %2720 = vmatprep.subr.mxu0 0.0
    %2721 = vmatpush1.msra.mxu0 0.0
    %2722 = vmatprep.subr.mxu0 0.0
    %2723 = vmatpush1.msra.mxu0 0.0
    %2724 = vmatprep.subr.mxu0 0.0
    %2725 = vmatpush1.msra.mxu0 0.0
    %2726 = vmatprep.mubr.f32.mxu0 0.0
    %v2727 = vand.u32 %v2425, 4294901760
    %v2728 = vsub.f32 %v2425, %v2727
    %2729 = vmatmul.mubr.f32.gmra.mrb[0].mxu0 %v2728
    %v2730 = vpop.f32.mrb[0].mxu0
    %v2731 = vadd.f32 %v2633, %v2730
    %v2732 = vpop.f32.mrb[0].mxu0
    %2733 = vmatprep.mubr.f32.mxu0 0.0
    %v2734 = vand.u32 %v2428, 4294901760
    %v2735 = vsub.f32 %v2428, %v2734
    %2736 = vmatmul.mubr.f32.gmra.mrb[0].mxu0 %v2735
    %v2737 = vpop.f32.mrb[0].mxu0
    %v2738 = vadd.f32 %v2639, %v2737
    %v2739 = vpop.f32.mrb[0].mxu0
    %2740 = vmatprep.mubr.f32.mxu0 0.0
    %v2741 = vand.u32 %v2431, 4294901760
    %v2742 = vsub.f32 %v2431, %v2741
    %2743 = vmatmul.mubr.f32.gmra.mrb[0].mxu0 %v2742
    %v2744 = vpop.f32.mrb[0].mxu0
    %v2745 = vadd.f32 %v2645, %v2744
    %v2746 = vpop.f32.mrb[0].mxu0
    %2747 = vmatprep.mubr.f32.mxu0 0.0
    %v2748 = vand.u32 %v2434, 4294901760
    %v2749 = vsub.f32 %v2434, %v2748
    %2750 = vmatmul.mubr.f32.gmra.mrb[0].mxu0 %v2749
    %v2751 = vpop.f32.mrb[0].mxu0
    %v2752 = vadd.f32 %v2651, %v2751
    %v2753 = vpop.f32.mrb[0].mxu0
    %2754 = vdwg.mxu0
    %2755 = vmatprep.subr.mxu0 0.0
    %v2756 = vand.u32 %v2404, 4294901760
    %2757 = vmatpush1.msra.mxu0 %v2756
    %2758 = vmatprep.subr.mxu0 0.0
    %v2759 = vand.u32 %v2405, 4294901760
    %2760 = vmatpush1.msra.mxu0 %v2759
    %2761 = vmatprep.subr.mxu0 0.0
    %v2762 = vand.u32 %v2406, 4294901760
    %2763 = vmatpush1.msra.mxu0 %v2762
    %2764 = vmatprep.subr.mxu0 0.0
    %v2765 = vand.u32 %v2407, 4294901760
    %2766 = vmatpush1.msra.mxu0 %v2765
    %2767 = vmatprep.subr.mxu0 0.0
    %2768 = vmatpush1.msra.mxu0 0.0
    %2769 = vmatprep.subr.mxu0 0.0
    %2770 = vmatpush1.msra.mxu0 0.0
    %2771 = vmatprep.subr.mxu0 0.0
    %2772 = vmatpush1.msra.mxu0 0.0
    %2773 = vmatprep.subr.mxu0 0.0
    %2774 = vmatpush1.msra.mxu0 0.0
    %2775 = vmatprep.subr.mxu0 0.0
    %2776 = vmatpush1.msra.mxu0 0.0
    %2777 = vmatprep.subr.mxu0 0.0
    %2778 = vmatpush1.msra.mxu0 0.0
    %2779 = vmatprep.subr.mxu0 0.0
    %2780 = vmatpush1.msra.mxu0 0.0
    %2781 = vmatprep.subr.mxu0 0.0
    %2782 = vmatpush1.msra.mxu0 0.0
    %2783 = vmatprep.subr.mxu0 0.0
    %2784 = vmatpush1.msra.mxu0 0.0
    %2785 = vmatprep.subr.mxu0 0.0
    %2786 = vmatpush1.msra.mxu0 0.0
    %2787 = vmatprep.subr.mxu0 0.0
    %2788 = vmatpush1.msra.mxu0 0.0
    %2789 = vmatprep.subr.mxu0 0.0
    %2790 = vmatpush1.msra.mxu0 0.0
    %2791 = vmatprep.subr.mxu0 0.0
    %2792 = vmatpush1.msra.mxu0 0.0
    %2793 = vmatprep.subr.mxu0 0.0
    %2794 = vmatpush1.msra.mxu0 0.0
    %2795 = vmatprep.subr.mxu0 0.0
    %2796 = vmatpush1.msra.mxu0 0.0
    %2797 = vmatprep.subr.mxu0 0.0
    %2798 = vmatpush1.msra.mxu0 0.0
    %2799 = vmatprep.subr.mxu0 0.0
    %2800 = vmatpush1.msra.mxu0 0.0
    %2801 = vmatprep.subr.mxu0 0.0
    %2802 = vmatpush1.msra.mxu0 0.0
    %2803 = vmatprep.subr.mxu0 0.0
    %2804 = vmatpush1.msra.mxu0 0.0
    %2805 = vmatprep.subr.mxu0 0.0
    %2806 = vmatpush1.msra.mxu0 0.0
    %2807 = vmatprep.subr.mxu0 0.0
    %2808 = vmatpush1.msra.mxu0 0.0
    %2809 = vmatprep.subr.mxu0 0.0
    %2810 = vmatpush1.msra.mxu0 0.0
    %2811 = vmatprep.subr.mxu0 0.0
    %2812 = vmatpush1.msra.mxu0 0.0
    %2813 = vmatprep.subr.mxu0 0.0
    %2814 = vmatpush1.msra.mxu0 0.0
    %2815 = vmatprep.subr.mxu0 0.0
    %2816 = vmatpush1.msra.mxu0 0.0
    %2817 = vmatprep.subr.mxu0 0.0
    %2818 = vmatpush1.msra.mxu0 0.0
    %2819 = vmatprep.subr.mxu0 0.0
    %2820 = vmatpush1.msra.mxu0 0.0
    %2821 = vmatprep.subr.mxu0 0.0
    %2822 = vmatpush1.msra.mxu0 0.0
    %2823 = vmatprep.mubr.f32.mxu0 0.0
    %v2824 = vand.u32 %v2425, 4294901760
    %v2825 = vsub.f32 %v2425, %v2824
    %v2826 = vand.u32 %v2825, 4294901760
    %2827 = vmatmul.mubr.f32.gmra.mrb[0].mxu0 %v2826
    %v2828 = vpop.f32.mrb[0].mxu0
    %v2829 = vadd.f32 %v2731, %v2828
    %v2830 = vpop.f32.mrb[0].mxu0
    %2831 = vmatprep.mubr.f32.mxu0 0.0
    %v2832 = vand.u32 %v2428, 4294901760
    %v2833 = vsub.f32 %v2428, %v2832
    %v2834 = vand.u32 %v2833, 4294901760
    %2835 = vmatmul.mubr.f32.gmra.mrb[0].mxu0 %v2834
    %v2836 = vpop.f32.mrb[0].mxu0
    %v2837 = vadd.f32 %v2738, %v2836
    %v2838 = vpop.f32.mrb[0].mxu0
    %2839 = vmatprep.mubr.f32.mxu0 0.0
    %v2840 = vand.u32 %v2431, 4294901760
    %v2841 = vsub.f32 %v2431, %v2840
    %v2842 = vand.u32 %v2841, 4294901760
    %2843 = vmatmul.mubr.f32.gmra.mrb[0].mxu0 %v2842
    %v2844 = vpop.f32.mrb[0].mxu0
    %v2845 = vadd.f32 %v2745, %v2844
    %v2846 = vpop.f32.mrb[0].mxu0
    %2847 = vmatprep.mubr.f32.mxu0 0.0
    %v2848 = vand.u32 %v2434, 4294901760
    %v2849 = vsub.f32 %v2434, %v2848
    %v2850 = vand.u32 %v2849, 4294901760
    %2851 = vmatmul.mubr.f32.gmra.mrb[0].mxu0 %v2850
    %v2852 = vpop.f32.mrb[0].mxu0
    %v2853 = vadd.f32 %v2752, %v2852
    %v2854 = vpop.f32.mrb[0].mxu0
    %2855 = vdwg.mxu0
    %2856 = vmatprep.subr.mxu0 0.0
    %v2857 = vand.u32 %v2404, 4294901760
    %v2858 = vsub.f32 %v2404, %v2857
    %v2859 = vand.u32 %v2858, 4294901760
    %2860 = vmatpush1.msra.mxu0 %v2859
    %2861 = vmatprep.subr.mxu0 0.0
    %v2862 = vand.u32 %v2405, 4294901760
    %v2863 = vsub.f32 %v2405, %v2862
    %v2864 = vand.u32 %v2863, 4294901760
    %2865 = vmatpush1.msra.mxu0 %v2864
    %2866 = vmatprep.subr.mxu0 0.0
    %v2867 = vand.u32 %v2406, 4294901760
    %v2868 = vsub.f32 %v2406, %v2867
    %v2869 = vand.u32 %v2868, 4294901760
    %2870 = vmatpush1.msra.mxu0 %v2869
    %2871 = vmatprep.subr.mxu0 0.0
    %v2872 = vand.u32 %v2407, 4294901760
    %v2873 = vsub.f32 %v2407, %v2872
    %v2874 = vand.u32 %v2873, 4294901760
    %2875 = vmatpush1.msra.mxu0 %v2874
    %2876 = vmatprep.subr.mxu0 0.0
    %2877 = vmatpush1.msra.mxu0 0.0
    %2878 = vmatprep.subr.mxu0 0.0
    %2879 = vmatpush1.msra.mxu0 0.0
    %2880 = vmatprep.subr.mxu0 0.0
    %2881 = vmatpush1.msra.mxu0 0.0
    %2882 = vmatprep.subr.mxu0 0.0
    %2883 = vmatpush1.msra.mxu0 0.0
    %2884 = vmatprep.subr.mxu0 0.0
    %2885 = vmatpush1.msra.mxu0 0.0
    %2886 = vmatprep.subr.mxu0 0.0
    %2887 = vmatpush1.msra.mxu0 0.0
    %2888 = vmatprep.subr.mxu0 0.0
    %2889 = vmatpush1.msra.mxu0 0.0
    %2890 = vmatprep.subr.mxu0 0.0
    %2891 = vmatpush1.msra.mxu0 0.0
    %2892 = vmatprep.subr.mxu0 0.0
    %2893 = vmatpush1.msra.mxu0 0.0
    %2894 = vmatprep.subr.mxu0 0.0
    %2895 = vmatpush1.msra.mxu0 0.0
    %2896 = vmatprep.subr.mxu0 0.0
    %2897 = vmatpush1.msra.mxu0 0.0
    %2898 = vmatprep.subr.mxu0 0.0
    %2899 = vmatpush1.msra.mxu0 0.0
    %2900 = vmatprep.subr.mxu0 0.0
    %2901 = vmatpush1.msra.mxu0 0.0
    %2902 = vmatprep.subr.mxu0 0.0
    %2903 = vmatpush1.msra.mxu0 0.0
    %2904 = vmatprep.subr.mxu0 0.0
    %2905 = vmatpush1.msra.mxu0 0.0
    %2906 = vmatprep.subr.mxu0 0.0
    %2907 = vmatpush1.msra.mxu0 0.0
    %2908 = vmatprep.subr.mxu0 0.0
    %2909 = vmatpush1.msra.mxu0 0.0
    %2910 = vmatprep.subr.mxu0 0.0
    %2911 = vmatpush1.msra.mxu0 0.0
    %2912 = vmatprep.subr.mxu0 0.0
    %2913 = vmatpush1.msra.mxu0 0.0
    %2914 = vmatprep.subr.mxu0 0.0
    %2915 = vmatpush1.msra.mxu0 0.0
    %2916 = vmatprep.subr.mxu0 0.0
    %2917 = vmatpush1.msra.mxu0 0.0
    %2918 = vmatprep.subr.mxu0 0.0
    %2919 = vmatpush1.msra.mxu0 0.0
    %2920 = vmatprep.subr.mxu0 0.0
    %2921 = vmatpush1.msra.mxu0 0.0
    %2922 = vmatprep.subr.mxu0 0.0
    %2923 = vmatpush1.msra.mxu0 0.0
    %2924 = vmatprep.subr.mxu0 0.0
    %2925 = vmatpush1.msra.mxu0 0.0
    %2926 = vmatprep.subr.mxu0 0.0
    %2927 = vmatpush1.msra.mxu0 0.0
    %2928 = vmatprep.subr.mxu0 0.0
    %2929 = vmatpush1.msra.mxu0 0.0
    %2930 = vmatprep.subr.mxu0 0.0
    %2931 = vmatpush1.msra.mxu0 0.0
    %2932 = vmatprep.mubr.f32.mxu0 0.0
    %v2933 = vand.u32 %v2425, 4294901760
    %2934 = vmatmul.mubr.f32.gmra.mrb[0].mxu0 %v2933
    %v2935 = vpop.f32.mrb[0].mxu0
    %v2936 = vadd.f32 %v2829, %v2935
    %v2937 = vpop.f32.mrb[0].mxu0
    %2938 = vmatprep.mubr.f32.mxu0 0.0
    %v2939 = vand.u32 %v2428, 4294901760
    %2940 = vmatmul.mubr.f32.gmra.mrb[0].mxu0 %v2939
    %v2941 = vpop.f32.mrb[0].mxu0
    %v2942 = vadd.f32 %v2837, %v2941
    %v2943 = vpop.f32.mrb[0].mxu0
    %2944 = vmatprep.mubr.f32.mxu0 0.0
    %v2945 = vand.u32 %v2431, 4294901760
    %2946 = vmatmul.mubr.f32.gmra.mrb[0].mxu0 %v2945
    %v2947 = vpop.f32.mrb[0].mxu0
    %v2948 = vadd.f32 %v2845, %v2947
    %v2949 = vpop.f32.mrb[0].mxu0
    %2950 = vmatprep.mubr.f32.mxu0 0.0
    %v2951 = vand.u32 %v2434, 4294901760
    %2952 = vmatmul.mubr.f32.gmra.mrb[0].mxu0 %v2951
    %v2953 = vpop.f32.mrb[0].mxu0
    %v2954 = vadd.f32 %v2853, %v2953
    %v2955 = vpop.f32.mrb[0].mxu0
    %2956 = vdwg.mxu0
    %2957 = vmatprep.subr.mxu0 0.0
    %v2958 = vand.u32 %v2404, 4294901760
    %2959 = vmatpush1.msra.mxu0 %v2958
    %2960 = vmatprep.subr.mxu0 0.0
    %v2961 = vand.u32 %v2405, 4294901760
    %2962 = vmatpush1.msra.mxu0 %v2961
    %2963 = vmatprep.subr.mxu0 0.0
    %v2964 = vand.u32 %v2406, 4294901760
    %2965 = vmatpush1.msra.mxu0 %v2964
    %2966 = vmatprep.subr.mxu0 0.0
    %v2967 = vand.u32 %v2407, 4294901760
    %2968 = vmatpush1.msra.mxu0 %v2967
    %2969 = vmatprep.subr.mxu0 0.0
    %2970 = vmatpush1.msra.mxu0 0.0
    %2971 = vmatprep.subr.mxu0 0.0
    %2972 = vmatpush1.msra.mxu0 0.0
    %2973 = vmatprep.subr.mxu0 0.0
    %2974 = vmatpush1.msra.mxu0 0.0
    %2975 = vmatprep.subr.mxu0 0.0
    %2976 = vmatpush1.msra.mxu0 0.0
    %2977 = vmatprep.subr.mxu0 0.0
    %2978 = vmatpush1.msra.mxu0 0.0
    %2979 = vmatprep.subr.mxu0 0.0
    %2980 = vmatpush1.msra.mxu0 0.0
    %2981 = vmatprep.subr.mxu0 0.0
    %2982 = vmatpush1.msra.mxu0 0.0
    %2983 = vmatprep.subr.mxu0 0.0
    %2984 = vmatpush1.msra.mxu0 0.0
    %2985 = vmatprep.subr.mxu0 0.0
    %2986 = vmatpush1.msra.mxu0 0.0
    %2987 = vmatprep.subr.mxu0 0.0
    %2988 = vmatpush1.msra.mxu0 0.0
    %2989 = vmatprep.subr.mxu0 0.0
    %2990 = vmatpush1.msra.mxu0 0.0
    %2991 = vmatprep.subr.mxu0 0.0
    %2992 = vmatpush1.msra.mxu0 0.0
    %2993 = vmatprep.subr.mxu0 0.0
    %2994 = vmatpush1.msra.mxu0 0.0
    %2995 = vmatprep.subr.mxu0 0.0
    %2996 = vmatpush1.msra.mxu0 0.0
    %2997 = vmatprep.subr.mxu0 0.0
    %2998 = vmatpush1.msra.mxu0 0.0
    %2999 = vmatprep.subr.mxu0 0.0
    %3000 = vmatpush1.msra.mxu0 0.0
    %3001 = vmatprep.subr.mxu0 0.0
    %3002 = vmatpush1.msra.mxu0 0.0
    %3003 = vmatprep.subr.mxu0 0.0
    %3004 = vmatpush1.msra.mxu0 0.0
    %3005 = vmatprep.subr.mxu0 0.0
    %3006 = vmatpush1.msra.mxu0 0.0
    %3007 = vmatprep.subr.mxu0 0.0
    %3008 = vmatpush1.msra.mxu0 0.0
    %3009 = vmatprep.subr.mxu0 0.0
    %3010 = vmatpush1.msra.mxu0 0.0
    %3011 = vmatprep.subr.mxu0 0.0
    %3012 = vmatpush1.msra.mxu0 0.0
    %3013 = vmatprep.subr.mxu0 0.0
    %3014 = vmatpush1.msra.mxu0 0.0
    %3015 = vmatprep.subr.mxu0 0.0
    %3016 = vmatpush1.msra.mxu0 0.0
    %3017 = vmatprep.subr.mxu0 0.0
    %3018 = vmatpush1.msra.mxu0 0.0
    %3019 = vmatprep.subr.mxu0 0.0
    %3020 = vmatpush1.msra.mxu0 0.0
    %3021 = vmatprep.subr.mxu0 0.0
    %3022 = vmatpush1.msra.mxu0 0.0
    %3023 = vmatprep.subr.mxu0 0.0
    %3024 = vmatpush1.msra.mxu0 0.0
    %3025 = vmatprep.mubr.f32.mxu0 0.0
    %v3026 = vand.u32 %v2425, 4294901760
    %3027 = vmatmul.mubr.f32.gmra.mrb[0].mxu0 %v3026
    %v3028 = vpop.f32.mrb[0].mxu0
    %v3029 = vadd.f32 %v2936, %v3028
    %v3030 = vpop.f32.mrb[0].mxu0
    %3031 = vmatprep.mubr.f32.mxu0 0.0
    %v3032 = vand.u32 %v2428, 4294901760
    %3033 = vmatmul.mubr.f32.gmra.mrb[0].mxu0 %v3032
    %v3034 = vpop.f32.mrb[0].mxu0
    %v3035 = vadd.f32 %v2942, %v3034
    %v3036 = vpop.f32.mrb[0].mxu0
    %3037 = vmatprep.mubr.f32.mxu0 0.0
    %v3038 = vand.u32 %v2431, 4294901760
    %3039 = vmatmul.mubr.f32.gmra.mrb[0].mxu0 %v3038
    %v3040 = vpop.f32.mrb[0].mxu0
    %v3041 = vadd.f32 %v2948, %v3040
    %v3042 = vpop.f32.mrb[0].mxu0
    %3043 = vmatprep.mubr.f32.mxu0 0.0
    %v3044 = vand.u32 %v2434, 4294901760
    %3045 = vmatmul.mubr.f32.gmra.mrb[0].mxu0 %v3044
    %v3046 = vpop.f32.mrb[0].mxu0
    %v3047 = vadd.f32 %v2954, %v3046
    %v3048 = vpop.f32.mrb[0].mxu0
    %3049 = vdwg.mxu0
    %v3050 = vmax.f32 %v3029, 0.0
    %v3051 = vmax.f32 %v3035, 0.0
    %v3052 = vmax.f32 %v3041, 0.0
    %v3053 = vmax.f32 %v3047, 0.0
    %3055 = vset.pattern.permute.xlu0 3
    %3056 = vperm.xlu0 %3055, %v67
    %v3057 = vpop.permute.xlu0 %3056
    %v3060 = vsel %vm1777, %v62, 0
    %3062 = vmatprep.subr.mxu0 0.0
    %v3063 = vand.u32 %v3050, 4294901760
    %3064 = vmatpush1.msra.mxu0 %v3063
    %3065 = vmatprep.subr.mxu0 0.0
    %v3066 = vand.u32 %v3051, 4294901760
    %3067 = vmatpush1.msra.mxu0 %v3066
    %3068 = vmatprep.subr.mxu0 0.0
    %v3069 = vand.u32 %v3052, 4294901760
    %3070 = vmatpush1.msra.mxu0 %v3069
    %3071 = vmatprep.subr.mxu0 0.0
    %v3072 = vand.u32 %v3053, 4294901760
    %3073 = vmatpush1.msra.mxu0 %v3072
    %3074 = vmatprep.subr.mxu0 0.0
    %3075 = vmatpush1.msra.mxu0 0.0
    %3076 = vmatprep.subr.mxu0 0.0
    %3077 = vmatpush1.msra.mxu0 0.0
    %3078 = vmatprep.subr.mxu0 0.0
    %3079 = vmatpush1.msra.mxu0 0.0
    %3080 = vmatprep.subr.mxu0 0.0
    %3081 = vmatpush1.msra.mxu0 0.0
    %3082 = vmatprep.subr.mxu0 0.0
    %3083 = vmatpush1.msra.mxu0 0.0
    %3084 = vmatprep.subr.mxu0 0.0
    %3085 = vmatpush1.msra.mxu0 0.0
    %3086 = vmatprep.subr.mxu0 0.0
    %3087 = vmatpush1.msra.mxu0 0.0
    %3088 = vmatprep.subr.mxu0 0.0
    %3089 = vmatpush1.msra.mxu0 0.0
    %3090 = vmatprep.subr.mxu0 0.0
    %3091 = vmatpush1.msra.mxu0 0.0
    %3092 = vmatprep.subr.mxu0 0.0
    %3093 = vmatpush1.msra.mxu0 0.0
    %3094 = vmatprep.subr.mxu0 0.0
    %3095 = vmatpush1.msra.mxu0 0.0
    %3096 = vmatprep.subr.mxu0 0.0
    %3097 = vmatpush1.msra.mxu0 0.0
    %3098 = vmatprep.subr.mxu0 0.0
    %3099 = vmatpush1.msra.mxu0 0.0
    %3100 = vmatprep.subr.mxu0 0.0
    %3101 = vmatpush1.msra.mxu0 0.0
    %3102 = vmatprep.subr.mxu0 0.0
    %3103 = vmatpush1.msra.mxu0 0.0
    %3104 = vmatprep.subr.mxu0 0.0
    %3105 = vmatpush1.msra.mxu0 0.0
    %3106 = vmatprep.subr.mxu0 0.0
    %3107 = vmatpush1.msra.mxu0 0.0
    %3108 = vmatprep.subr.mxu0 0.0
    %3109 = vmatpush1.msra.mxu0 0.0
    %3110 = vmatprep.subr.mxu0 0.0
    %3111 = vmatpush1.msra.mxu0 0.0
    %3112 = vmatprep.subr.mxu0 0.0
    %3113 = vmatpush1.msra.mxu0 0.0
    %3114 = vmatprep.subr.mxu0 0.0
    %3115 = vmatpush1.msra.mxu0 0.0
    %3116 = vmatprep.subr.mxu0 0.0
    %3117 = vmatpush1.msra.mxu0 0.0
    %3118 = vmatprep.subr.mxu0 0.0
    %3119 = vmatpush1.msra.mxu0 0.0
    %3120 = vmatprep.subr.mxu0 0.0
    %3121 = vmatpush1.msra.mxu0 0.0
    %3122 = vmatprep.subr.mxu0 0.0
    %3123 = vmatpush1.msra.mxu0 0.0
    %3124 = vmatprep.subr.mxu0 0.0
    %3125 = vmatpush1.msra.mxu0 0.0
    %3126 = vmatprep.subr.mxu0 0.0
    %3127 = vmatpush1.msra.mxu0 0.0
    %3128 = vmatprep.subr.mxu0 0.0
    %3129 = vmatpush1.msra.mxu0 0.0
    %3130 = vmatprep.mubr.f32.mxu0 0.0
    %v3131 = vand.u32 %v3060, 4294901760
    %v3132 = vsub.f32 %v3060, %v3131
    %v3133 = vand.u32 %v3132, 4294901760
    %v3134 = vsub.f32 %v3132, %v3133
    %v3135 = vand.u32 %v3134, 4294901760
    %3136 = vmatmul.mubr.f32.gmra.mrb[0].mxu0 %v3135
    %v3137 = vpop.f32.mrb[0].mxu0
    %v3138 = vadd.f32 %v3057, %v3137
    %v3139 = vpop.f32.mrb[0].mxu0
    %3140 = vdwg.mxu0
    %3141 = vmatprep.subr.mxu0 0.0
    %v3142 = vand.u32 %v3050, 4294901760
    %v3143 = vsub.f32 %v3050, %v3142
    %v3144 = vand.u32 %v3143, 4294901760
    %v3145 = vsub.f32 %v3143, %v3144
    %v3146 = vand.u32 %v3145, 4294901760
    %3147 = vmatpush1.msra.mxu0 %v3146
    %3148 = vmatprep.subr.mxu0 0.0
    %v3149 = vand.u32 %v3051, 4294901760
    %v3150 = vsub.f32 %v3051, %v3149
    %v3151 = vand.u32 %v3150, 4294901760
    %v3152 = vsub.f32 %v3150, %v3151
    %v3153 = vand.u32 %v3152, 4294901760
    %3154 = vmatpush1.msra.mxu0 %v3153
    %3155 = vmatprep.subr.mxu0 0.0
    %v3156 = vand.u32 %v3052, 4294901760
    %v3157 = vsub.f32 %v3052, %v3156
    %v3158 = vand.u32 %v3157, 4294901760
    %v3159 = vsub.f32 %v3157, %v3158
    %v3160 = vand.u32 %v3159, 4294901760
    %3161 = vmatpush1.msra.mxu0 %v3160
    %3162 = vmatprep.subr.mxu0 0.0
    %v3163 = vand.u32 %v3053, 4294901760
    %v3164 = vsub.f32 %v3053, %v3163
    %v3165 = vand.u32 %v3164, 4294901760
    %v3166 = vsub.f32 %v3164, %v3165
    %v3167 = vand.u32 %v3166, 4294901760
    %3168 = vmatpush1.msra.mxu0 %v3167
    %3169 = vmatprep.subr.mxu0 0.0
    %3170 = vmatpush1.msra.mxu0 0.0
    %3171 = vmatprep.subr.mxu0 0.0
    %3172 = vmatpush1.msra.mxu0 0.0
    %3173 = vmatprep.subr.mxu0 0.0
    %3174 = vmatpush1.msra.mxu0 0.0
    %3175 = vmatprep.subr.mxu0 0.0
    %3176 = vmatpush1.msra.mxu0 0.0
    %3177 = vmatprep.subr.mxu0 0.0
    %3178 = vmatpush1.msra.mxu0 0.0
    %3179 = vmatprep.subr.mxu0 0.0
    %3180 = vmatpush1.msra.mxu0 0.0
    %3181 = vmatprep.subr.mxu0 0.0
    %3182 = vmatpush1.msra.mxu0 0.0
    %3183 = vmatprep.subr.mxu0 0.0
    %3184 = vmatpush1.msra.mxu0 0.0
    %3185 = vmatprep.subr.mxu0 0.0
    %3186 = vmatpush1.msra.mxu0 0.0
    %3187 = vmatprep.subr.mxu0 0.0
    %3188 = vmatpush1.msra.mxu0 0.0
    %3189 = vmatprep.subr.mxu0 0.0
    %3190 = vmatpush1.msra.mxu0 0.0
    %3191 = vmatprep.subr.mxu0 0.0
    %3192 = vmatpush1.msra.mxu0 0.0
    %3193 = vmatprep.subr.mxu0 0.0
    %3194 = vmatpush1.msra.mxu0 0.0
    %3195 = vmatprep.subr.mxu0 0.0
    %3196 = vmatpush1.msra.mxu0 0.0
    %3197 = vmatprep.subr.mxu0 0.0
    %3198 = vmatpush1.msra.mxu0 0.0
    %3199 = vmatprep.subr.mxu0 0.0
    %3200 = vmatpush1.msra.mxu0 0.0
    %3201 = vmatprep.subr.mxu0 0.0
    %3202 = vmatpush1.msra.mxu0 0.0
    %3203 = vmatprep.subr.mxu0 0.0
    %3204 = vmatpush1.msra.mxu0 0.0
    %3205 = vmatprep.subr.mxu0 0.0
    %3206 = vmatpush1.msra.mxu0 0.0
    %3207 = vmatprep.subr.mxu0 0.0
    %3208 = vmatpush1.msra.mxu0 0.0
    %3209 = vmatprep.subr.mxu0 0.0
    %3210 = vmatpush1.msra.mxu0 0.0
    %3211 = vmatprep.subr.mxu0 0.0
    %3212 = vmatpush1.msra.mxu0 0.0
    %3213 = vmatprep.subr.mxu0 0.0
    %3214 = vmatpush1.msra.mxu0 0.0
    %3215 = vmatprep.subr.mxu0 0.0
    %3216 = vmatpush1.msra.mxu0 0.0
    %3217 = vmatprep.subr.mxu0 0.0
    %3218 = vmatpush1.msra.mxu0 0.0
    %3219 = vmatprep.subr.mxu0 0.0
    %3220 = vmatpush1.msra.mxu0 0.0
    %3221 = vmatprep.subr.mxu0 0.0
    %3222 = vmatpush1.msra.mxu0 0.0
    %3223 = vmatprep.subr.mxu0 0.0
    %3224 = vmatpush1.msra.mxu0 0.0
    %3225 = vmatprep.mubr.f32.mxu0 0.0
    %v3226 = vand.u32 %v3060, 4294901760
    %3227 = vmatmul.mubr.f32.gmra.mrb[0].mxu0 %v3226
    %v3228 = vpop.f32.mrb[0].mxu0
    %v3229 = vadd.f32 %v3138, %v3228
    %v3230 = vpop.f32.mrb[0].mxu0
    %3231 = vdwg.mxu0
    %3232 = vmatprep.subr.mxu0 0.0
    %v3233 = vand.u32 %v3050, 4294901760
    %v3234 = vsub.f32 %v3050, %v3233
    %3235 = vmatpush1.msra.mxu0 %v3234
    %3236 = vmatprep.subr.mxu0 0.0
    %v3237 = vand.u32 %v3051, 4294901760
    %v3238 = vsub.f32 %v3051, %v3237
    %3239 = vmatpush1.msra.mxu0 %v3238
    %3240 = vmatprep.subr.mxu0 0.0
    %v3241 = vand.u32 %v3052, 4294901760
    %v3242 = vsub.f32 %v3052, %v3241
    %3243 = vmatpush1.msra.mxu0 %v3242
    %3244 = vmatprep.subr.mxu0 0.0
    %v3245 = vand.u32 %v3053, 4294901760
    %v3246 = vsub.f32 %v3053, %v3245
    %3247 = vmatpush1.msra.mxu0 %v3246
    %3248 = vmatprep.subr.mxu0 0.0
    %3249 = vmatpush1.msra.mxu0 0.0
    %3250 = vmatprep.subr.mxu0 0.0
    %3251 = vmatpush1.msra.mxu0 0.0
    %3252 = vmatprep.subr.mxu0 0.0
    %3253 = vmatpush1.msra.mxu0 0.0
    %3254 = vmatprep.subr.mxu0 0.0
    %3255 = vmatpush1.msra.mxu0 0.0
    %3256 = vmatprep.subr.mxu0 0.0
    %3257 = vmatpush1.msra.mxu0 0.0
    %3258 = vmatprep.subr.mxu0 0.0
    %3259 = vmatpush1.msra.mxu0 0.0
    %3260 = vmatprep.subr.mxu0 0.0
    %3261 = vmatpush1.msra.mxu0 0.0
    %3262 = vmatprep.subr.mxu0 0.0
    %3263 = vmatpush1.msra.mxu0 0.0
    %3264 = vmatprep.subr.mxu0 0.0
    %3265 = vmatpush1.msra.mxu0 0.0
    %3266 = vmatprep.subr.mxu0 0.0
    %3267 = vmatpush1.msra.mxu0 0.0
    %3268 = vmatprep.subr.mxu0 0.0
    %3269 = vmatpush1.msra.mxu0 0.0
    %3270 = vmatprep.subr.mxu0 0.0
    %3271 = vmatpush1.msra.mxu0 0.0
    %3272 = vmatprep.subr.mxu0 0.0
    %3273 = vmatpush1.msra.mxu0 0.0
    %3274 = vmatprep.subr.mxu0 0.0
    %3275 = vmatpush1.msra.mxu0 0.0
    %3276 = vmatprep.subr.mxu0 0.0
    %3277 = vmatpush1.msra.mxu0 0.0
    %3278 = vmatprep.subr.mxu0 0.0
    %3279 = vmatpush1.msra.mxu0 0.0
    %3280 = vmatprep.subr.mxu0 0.0
    %3281 = vmatpush1.msra.mxu0 0.0
    %3282 = vmatprep.subr.mxu0 0.0
    %3283 = vmatpush1.msra.mxu0 0.0
    %3284 = vmatprep.subr.mxu0 0.0
    %3285 = vmatpush1.msra.mxu0 0.0
    %3286 = vmatprep.subr.mxu0 0.0
    %3287 = vmatpush1.msra.mxu0 0.0
    %3288 = vmatprep.subr.mxu0 0.0
    %3289 = vmatpush1.msra.mxu0 0.0
    %3290 = vmatprep.subr.mxu0 0.0
    %3291 = vmatpush1.msra.mxu0 0.0
    %3292 = vmatprep.subr.mxu0 0.0
    %3293 = vmatpush1.msra.mxu0 0.0
    %3294 = vmatprep.subr.mxu0 0.0
    %3295 = vmatpush1.msra.mxu0 0.0
    %3296 = vmatprep.subr.mxu0 0.0
    %3297 = vmatpush1.msra.mxu0 0.0
    %3298 = vmatprep.subr.mxu0 0.0
    %3299 = vmatpush1.msra.mxu0 0.0
    %3300 = vmatprep.subr.mxu0 0.0
    %3301 = vmatpush1.msra.mxu0 0.0
    %3302 = vmatprep.subr.mxu0 0.0
    %3303 = vmatpush1.msra.mxu0 0.0
    %3304 = vmatprep.mubr.f32.mxu0 0.0
    %v3305 = vand.u32 %v3060, 4294901760
    %v3306 = vsub.f32 %v3060, %v3305
    %3307 = vmatmul.mubr.f32.gmra.mrb[0].mxu0 %v3306
    %v3308 = vpop.f32.mrb[0].mxu0
    %v3309 = vadd.f32 %v3229, %v3308
    %v3310 = vpop.f32.mrb[0].mxu0
    %3311 = vdwg.mxu0
    %3312 = vmatprep.subr.mxu0 0.0
    %v3313 = vand.u32 %v3050, 4294901760
    %3314 = vmatpush1.msra.mxu0 %v3313
    %3315 = vmatprep.subr.mxu0 0.0
    %v3316 = vand.u32 %v3051, 4294901760
    %3317 = vmatpush1.msra.mxu0 %v3316
    %3318 = vmatprep.subr.mxu0 0.0
    %v3319 = vand.u32 %v3052, 4294901760
    %3320 = vmatpush1.msra.mxu0 %v3319
    %3321 = vmatprep.subr.mxu0 0.0
    %v3322 = vand.u32 %v3053, 4294901760
    %3323 = vmatpush1.msra.mxu0 %v3322
    %3324 = vmatprep.subr.mxu0 0.0
    %3325 = vmatpush1.msra.mxu0 0.0
    %3326 = vmatprep.subr.mxu0 0.0
    %3327 = vmatpush1.msra.mxu0 0.0
    %3328 = vmatprep.subr.mxu0 0.0
    %3329 = vmatpush1.msra.mxu0 0.0
    %3330 = vmatprep.subr.mxu0 0.0
    %3331 = vmatpush1.msra.mxu0 0.0
    %3332 = vmatprep.subr.mxu0 0.0
    %3333 = vmatpush1.msra.mxu0 0.0
    %3334 = vmatprep.subr.mxu0 0.0
    %3335 = vmatpush1.msra.mxu0 0.0
    %3336 = vmatprep.subr.mxu0 0.0
    %3337 = vmatpush1.msra.mxu0 0.0
    %3338 = vmatprep.subr.mxu0 0.0
    %3339 = vmatpush1.msra.mxu0 0.0
    %3340 = vmatprep.subr.mxu0 0.0
    %3341 = vmatpush1.msra.mxu0 0.0
    %3342 = vmatprep.subr.mxu0 0.0
    %3343 = vmatpush1.msra.mxu0 0.0
    %3344 = vmatprep.subr.mxu0 0.0
    %3345 = vmatpush1.msra.mxu0 0.0
    %3346 = vmatprep.subr.mxu0 0.0
    %3347 = vmatpush1.msra.mxu0 0.0
    %3348 = vmatprep.subr.mxu0 0.0
    %3349 = vmatpush1.msra.mxu0 0.0
    %3350 = vmatprep.subr.mxu0 0.0
    %3351 = vmatpush1.msra.mxu0 0.0
    %3352 = vmatprep.subr.mxu0 0.0
    %3353 = vmatpush1.msra.mxu0 0.0
    %3354 = vmatprep.subr.mxu0 0.0
    %3355 = vmatpush1.msra.mxu0 0.0
    %3356 = vmatprep.subr.mxu0 0.0
    %3357 = vmatpush1.msra.mxu0 0.0
    %3358 = vmatprep.subr.mxu0 0.0
    %3359 = vmatpush1.msra.mxu0 0.0
    %3360 = vmatprep.subr.mxu0 0.0
    %3361 = vmatpush1.msra.mxu0 0.0
    %3362 = vmatprep.subr.mxu0 0.0
    %3363 = vmatpush1.msra.mxu0 0.0
    %3364 = vmatprep.subr.mxu0 0.0
    %3365 = vmatpush1.msra.mxu0 0.0
    %3366 = vmatprep.subr.mxu0 0.0
    %3367 = vmatpush1.msra.mxu0 0.0
    %3368 = vmatprep.subr.mxu0 0.0
    %3369 = vmatpush1.msra.mxu0 0.0
    %3370 = vmatprep.subr.mxu0 0.0
    %3371 = vmatpush1.msra.mxu0 0.0
    %3372 = vmatprep.subr.mxu0 0.0
    %3373 = vmatpush1.msra.mxu0 0.0
    %3374 = vmatprep.subr.mxu0 0.0
    %3375 = vmatpush1.msra.mxu0 0.0
    %3376 = vmatprep.subr.mxu0 0.0
    %3377 = vmatpush1.msra.mxu0 0.0
    %3378 = vmatprep.subr.mxu0 0.0
    %3379 = vmatpush1.msra.mxu0 0.0
    %3380 = vmatprep.mubr.f32.mxu0 0.0
    %v3381 = vand.u32 %v3060, 4294901760
    %v3382 = vsub.f32 %v3060, %v3381
    %v3383 = vand.u32 %v3382, 4294901760
    %3384 = vmatmul.mubr.f32.gmra.mrb[0].mxu0 %v3383
    %v3385 = vpop.f32.mrb[0].mxu0
    %v3386 = vadd.f32 %v3309, %v3385
    %v3387 = vpop.f32.mrb[0].mxu0
    %3388 = vdwg.mxu0
    %3389 = vmatprep.subr.mxu0 0.0
    %v3390 = vand.u32 %v3050, 4294901760
    %v3391 = vsub.f32 %v3050, %v3390
    %v3392 = vand.u32 %v3391, 4294901760
    %3393 = vmatpush1.msra.mxu0 %v3392
    %3394 = vmatprep.subr.mxu0 0.0
    %v3395 = vand.u32 %v3051, 4294901760
    %v3396 = vsub.f32 %v3051, %v3395
    %v3397 = vand.u32 %v3396, 4294901760
    %3398 = vmatpush1.msra.mxu0 %v3397
    %3399 = vmatprep.subr.mxu0 0.0
    %v3400 = vand.u32 %v3052, 4294901760
    %v3401 = vsub.f32 %v3052, %v3400
    %v3402 = vand.u32 %v3401, 4294901760
    %3403 = vmatpush1.msra.mxu0 %v3402
    %3404 = vmatprep.subr.mxu0 0.0
    %v3405 = vand.u32 %v3053, 4294901760
    %v3406 = vsub.f32 %v3053, %v3405
    %v3407 = vand.u32 %v3406, 4294901760
    %3408 = vmatpush1.msra.mxu0 %v3407
    %3409 = vmatprep.subr.mxu0 0.0
    %3410 = vmatpush1.msra.mxu0 0.0
    %3411 = vmatprep.subr.mxu0 0.0
    %3412 = vmatpush1.msra.mxu0 0.0
    %3413 = vmatprep.subr.mxu0 0.0
    %3414 = vmatpush1.msra.mxu0 0.0
    %3415 = vmatprep.subr.mxu0 0.0
    %3416 = vmatpush1.msra.mxu0 0.0
    %3417 = vmatprep.subr.mxu0 0.0
    %3418 = vmatpush1.msra.mxu0 0.0
    %3419 = vmatprep.subr.mxu0 0.0
    %3420 = vmatpush1.msra.mxu0 0.0
    %3421 = vmatprep.subr.mxu0 0.0
    %3422 = vmatpush1.msra.mxu0 0.0
    %3423 = vmatprep.subr.mxu0 0.0
    %3424 = vmatpush1.msra.mxu0 0.0
    %3425 = vmatprep.subr.mxu0 0.0
    %3426 = vmatpush1.msra.mxu0 0.0
    %3427 = vmatprep.subr.mxu0 0.0
    %3428 = vmatpush1.msra.mxu0 0.0
    %3429 = vmatprep.subr.mxu0 0.0
    %3430 = vmatpush1.msra.mxu0 0.0
    %3431 = vmatprep.subr.mxu0 0.0
    %3432 = vmatpush1.msra.mxu0 0.0
    %3433 = vmatprep.subr.mxu0 0.0
    %3434 = vmatpush1.msra.mxu0 0.0
    %3435 = vmatprep.subr.mxu0 0.0
    %3436 = vmatpush1.msra.mxu0 0.0
    %3437 = vmatprep.subr.mxu0 0.0
    %3438 = vmatpush1.msra.mxu0 0.0
    %3439 = vmatprep.subr.mxu0 0.0
    %3440 = vmatpush1.msra.mxu0 0.0
    %3441 = vmatprep.subr.mxu0 0.0
    %3442 = vmatpush1.msra.mxu0 0.0
    %3443 = vmatprep.subr.mxu0 0.0
    %3444 = vmatpush1.msra.mxu0 0.0
    %3445 = vmatprep.subr.mxu0 0.0
    %3446 = vmatpush1.msra.mxu0 0.0
    %3447 = vmatprep.subr.mxu0 0.0
    %3448 = vmatpush1.msra.mxu0 0.0
    %3449 = vmatprep.subr.mxu0 0.0
    %3450 = vmatpush1.msra.mxu0 0.0
    %3451 = vmatprep.subr.mxu0 0.0
    %3452 = vmatpush1.msra.mxu0 0.0
    %3453 = vmatprep.subr.mxu0 0.0
    %3454 = vmatpush1.msra.mxu0 0.0
    %3455 = vmatprep.subr.mxu0 0.0
    %3456 = vmatpush1.msra.mxu0 0.0
    %3457 = vmatprep.subr.mxu0 0.0
    %3458 = vmatpush1.msra.mxu0 0.0
    %3459 = vmatprep.subr.mxu0 0.0
    %3460 = vmatpush1.msra.mxu0 0.0
    %3461 = vmatprep.subr.mxu0 0.0
    %3462 = vmatpush1.msra.mxu0 0.0
    %3463 = vmatprep.subr.mxu0 0.0
    %3464 = vmatpush1.msra.mxu0 0.0
    %3465 = vmatprep.mubr.f32.mxu0 0.0
    %v3466 = vand.u32 %v3060, 4294901760
    %3467 = vmatmul.mubr.f32.gmra.mrb[0].mxu0 %v3466
    %v3468 = vpop.f32.mrb[0].mxu0
    %v3469 = vadd.f32 %v3386, %v3468
    %v3470 = vpop.f32.mrb[0].mxu0
    %3471 = vdwg.mxu0
    %3472 = vmatprep.subr.mxu0 0.0
    %v3473 = vand.u32 %v3050, 4294901760
    %3474 = vmatpush1.msra.mxu0 %v3473
    %3475 = vmatprep.subr.mxu0 0.0
    %v3476 = vand.u32 %v3051, 4294901760
    %3477 = vmatpush1.msra.mxu0 %v3476
    %3478 = vmatprep.subr.mxu0 0.0
    %v3479 = vand.u32 %v3052, 4294901760
    %3480 = vmatpush1.msra.mxu0 %v3479
    %3481 = vmatprep.subr.mxu0 0.0
    %v3482 = vand.u32 %v3053, 4294901760
    %3483 = vmatpush1.msra.mxu0 %v3482
    %3484 = vmatprep.subr.mxu0 0.0
    %3485 = vmatpush1.msra.mxu0 0.0
    %3486 = vmatprep.subr.mxu0 0.0
    %3487 = vmatpush1.msra.mxu0 0.0
    %3488 = vmatprep.subr.mxu0 0.0
    %3489 = vmatpush1.msra.mxu0 0.0
    %3490 = vmatprep.subr.mxu0 0.0
    %3491 = vmatpush1.msra.mxu0 0.0
    %3492 = vmatprep.subr.mxu0 0.0
    %3493 = vmatpush1.msra.mxu0 0.0
    %3494 = vmatprep.subr.mxu0 0.0
    %3495 = vmatpush1.msra.mxu0 0.0
    %3496 = vmatprep.subr.mxu0 0.0
    %3497 = vmatpush1.msra.mxu0 0.0
    %3498 = vmatprep.subr.mxu0 0.0
    %3499 = vmatpush1.msra.mxu0 0.0
    %3500 = vmatprep.subr.mxu0 0.0
    %3501 = vmatpush1.msra.mxu0 0.0
    %3502 = vmatprep.subr.mxu0 0.0
    %3503 = vmatpush1.msra.mxu0 0.0
    %3504 = vmatprep.subr.mxu0 0.0
    %3505 = vmatpush1.msra.mxu0 0.0
    %3506 = vmatprep.subr.mxu0 0.0
    %3507 = vmatpush1.msra.mxu0 0.0
    %3508 = vmatprep.subr.mxu0 0.0
    %3509 = vmatpush1.msra.mxu0 0.0
    %3510 = vmatprep.subr.mxu0 0.0
    %3511 = vmatpush1.msra.mxu0 0.0
    %3512 = vmatprep.subr.mxu0 0.0
    %3513 = vmatpush1.msra.mxu0 0.0
    %3514 = vmatprep.subr.mxu0 0.0
    %3515 = vmatpush1.msra.mxu0 0.0
    %3516 = vmatprep.subr.mxu0 0.0
    %3517 = vmatpush1.msra.mxu0 0.0
    %3518 = vmatprep.subr.mxu0 0.0
    %3519 = vmatpush1.msra.mxu0 0.0
    %3520 = vmatprep.subr.mxu0 0.0
    %3521 = vmatpush1.msra.mxu0 0.0
    %3522 = vmatprep.subr.mxu0 0.0
    %3523 = vmatpush1.msra.mxu0 0.0
    %3524 = vmatprep.subr.mxu0 0.0
    %3525 = vmatpush1.msra.mxu0 0.0
    %3526 = vmatprep.subr.mxu0 0.0
    %3527 = vmatpush1.msra.mxu0 0.0
    %3528 = vmatprep.subr.mxu0 0.0
    %3529 = vmatpush1.msra.mxu0 0.0
    %3530 = vmatprep.subr.mxu0 0.0
    %3531 = vmatpush1.msra.mxu0 0.0
    %3532 = vmatprep.subr.mxu0 0.0
    %3533 = vmatpush1.msra.mxu0 0.0
    %3534 = vmatprep.subr.mxu0 0.0
    %3535 = vmatpush1.msra.mxu0 0.0
    %3536 = vmatprep.subr.mxu0 0.0
    %3537 = vmatpush1.msra.mxu0 0.0
    %3538 = vmatprep.subr.mxu0 0.0
    %3539 = vmatpush1.msra.mxu0 0.0
    %3540 = vmatprep.mubr.f32.mxu0 0.0
    %v3541 = vand.u32 %v3060, 4294901760
    %3542 = vmatmul.mubr.f32.gmra.mrb[0].mxu0 %v3541
    %v3543 = vpop.f32.mrb[0].mxu0
    %v3544 = vadd.f32 %v3469, %v3543
    %v3545 = vpop.f32.mrb[0].mxu0
    %3546 = vdwg.mxu0
    %3547 = vst [vmem:[#allocation2] sm:$0x1] %v3544
    // Predicated region
    $region18: #{link_predictor.1} parent=1 // pred_check
      _
    $region19: #{link_predictor.1} parent=1 // pred_check_branch
      %3549 = sbr.rel (0) target = $region21
    $region20: #{link_predictor.1} parent=1 // pred_region
      %s3551 = ssub.s32 16, 16
      %3552 = vsyncadd [#allocation3], %s3551
      %s3554 = sshll.u32 [#allocation2], 4
      %s3555 = int_to_ptr.vmem [resolvable:$true] %s3554
      %3557 = dma.vmem_to_hbm [thread:$0]  %s3555, 16, %s4, [#allocation3]
    $region21: #{link_predictor.1} parent=1 // pred_fallthru
      _
    // Predicated region
    $region22: #{link_predictor.1} parent=1 // pred_check
      _
    $region23: #{link_predictor.1} parent=1 // pred_check_branch
      %3559 = sbr.rel (0) target = $region25
    $region24: #{link_predictor.1} parent=1 // pred_region
      %3560 = dma.done [#allocation3], 16
    $region25: #{link_predictor.1} parent=1 // pred_fallthru
      _
    %3561 = vsyncpa [#allocation3], 1

</llo_original>
